<compile_context>
chip_gen: v7x
topology: tpu7x:2x2x1
jax: 0.10.0
libtpu: 0.0.40
codegen_flags: <defaults>
</compile_context>

<pallas_src>
import functools

import jax
import jax.numpy as jnp
from jax import lax
from jax.experimental import pallas as pl
from jax.experimental.pallas import tpu as pltpu


def _round_up(x, m):
    return ((x + m - 1) // m) * m


def _grid_pooling_kernel(cid_ref, feat_ref, out_ref, acc_ref,
                         *, TM, TN, C, P, UNROLL):
    """One (cell-block, point-block) grid step.

    cid_ref : (TN, 1) int32   precomputed linear cell id per point (-1 = skip)
    feat_ref: (TN, C) float32 point features
    out_ref : (C, TM) float32 lane-dense output block (cells on lanes)
    acc_ref : (C, TM) float32 running max across point blocks
    """
    i = pl.program_id(0)          # cell-block index   (parallel)
    j = pl.program_id(1)          # point-block index  (reduction / arbitrary)

    @pl.when(j == 0)
    def _():
        # matches torch.zeros initialization of feat_cells
        acc_ref[...] = jnp.zeros_like(acc_ref)

    # Linear cell ids covered by this output block, on lanes: (1, TM).
    cell_ids = i * TM + lax.broadcasted_iota(jnp.int32, (1, TM), 1)
    neg_inf = jnp.float32(-jnp.inf)

    def chunk_body(s, carry):
        start = pl.multiple_of(s * P, P)
        cid_sub = cid_ref[pl.ds(start, P), :]        # (P, 1) int32
        feat_sub = feat_ref[pl.ds(start, P), :]      # (P, C) float32
        mask = cid_sub == cell_ids                   # (P, TM) bool (lane-dense)
        for c in range(C):                           # static channel loop
            cand = jnp.where(mask, feat_sub[:, c:c + 1], neg_inf)   # (P, TM)
            red = jnp.max(cand, axis=0, keepdims=True)              # (1, TM)
            acc_ref[c:c + 1, :] = jnp.maximum(acc_ref[c:c + 1, :], red)
        return carry

    lax.fori_loop(0, TN // P, chunk_body, 0, unroll=UNROLL)

    @pl.when(j == pl.num_programs(1) - 1)
    def _():
        # acc started at 0, so empty cells / all-negative features stay 0,
        # matching the "update only if greater than current" CUDA semantics.
        out_ref[...] = acc_ref[...]


def grid_pooling(features, points, gridshape, *, tm=None, tn=None):
    """Pallas GridPooling forward.

    features : [N, C] float32 point features
    points   : [N, 3] float32 point locations
    gridshape: (W, H, D) python ints
    returns  : [W*H*D, C] float32 feature grid
    """
    W, H, D = int(gridshape[0]), int(gridshape[1]), int(gridshape[2])
    M = W * H * D
    N, C = features.shape

    features = features.astype(jnp.float32)
    points = points.astype(jnp.float32)

    # --- precompute linear cell ids once (outside the kernel) -------------
    px, py, pz = points[:, 0], points[:, 1], points[:, 2]
    valid = ((px >= 0) & (px < W) & (py >= 0) & (py < H) &
             (pz >= 0) & (pz < D))
    cid = (jnp.floor(px).astype(jnp.int32) * (H * D)
           + jnp.floor(py).astype(jnp.int32) * D
           + jnp.floor(pz).astype(jnp.int32))
    cid = jnp.where(valid, cid, -1).astype(jnp.int32)   # -1 never matches a cell

    # --- tiling: cells on lanes (multiple of 128), points on sublanes -----
    P = 8                                               # sub-chunk of points
    if tm is None:
        tm = min(512, _round_up(M, 128))
    if tn is None:
        tn = min(512, _round_up(N, P))
    M_pad = _round_up(M, tm)
    N_pad = _round_up(N, tn)

    cid_p = jnp.full((N_pad, 1), -1, dtype=jnp.int32).at[:N, 0].set(cid)
    feat_p = jnp.zeros((N_pad, C), dtype=jnp.float32).at[:N, :].set(features)

    kernel = functools.partial(_grid_pooling_kernel, TM=tm, TN=tn, C=C, P=P,
                               UNROLL=(tn // P) <= 16)

    out_t = pl.pallas_call(
        kernel,
        out_shape=jax.ShapeDtypeStruct((C, M_pad), jnp.float32),
        grid_spec=pltpu.PrefetchScalarGridSpec(
            num_scalar_prefetch=0,
            grid=(M_pad // tm, N_pad // tn),
            in_specs=[
                pl.BlockSpec((tn, 1), lambda i, j: (j, 0)),   # cell ids
                pl.BlockSpec((tn, C), lambda i, j: (j, 0)),   # features
            ],
            out_specs=pl.BlockSpec((C, tm), lambda i, j: (0, i)),
            scratch_shapes=[pltpu.VMEM((C, tm), jnp.float32)],
        ),
        compiler_params=pltpu.CompilerParams(
            dimension_semantics=("parallel", "arbitrary")),
    )(cid_p, feat_p)

    # back to the original [W*H*D, C] layout; drop cell padding.
    return out_t.T[:M]


def grid_pooling_ref(features, points, gridshape):
    """Pure-JAX reference with identical semantics."""
    W, H, D = int(gridshape[0]), int(gridshape[1]), int(gridshape[2])
    M = W * H * D
    px, py, pz = points[:, 0], points[:, 1], points[:, 2]
    valid = ((px >= 0) & (px < W) & (py >= 0) & (py < H) &
             (pz >= 0) & (pz < D))
    cid = (jnp.floor(px).astype(jnp.int32) * (H * D)
           + jnp.floor(py).astype(jnp.int32) * D
           + jnp.floor(pz).astype(jnp.int32))
    cid = jnp.where(valid, cid, M)           # dump invalid points into extra segment
    masked = jnp.where(valid[:, None], features, -jnp.inf)
    seg = jax.ops.segment_max(masked, cid, num_segments=M + 1)
    return jnp.maximum(seg[:M], 0.0)         # zero-init semantics (empty cells -> 0)


if __name__ == "__main__":
    # GridPooling has no learnable parameters; only gridshape.
    gridshape = (4, 4, 4)        # W, H, D -> 64 cells
    N, C = 128, 8

    key = jax.random.PRNGKey(0)
    kf, kp, ko = jax.random.split(key, 3)

    # Point features (some negative, to exercise max-with-zero behavior).
    features = jax.random.normal(kf, (N, C), dtype=jnp.float32)
    # Point locations mostly inside [0,4)^3, a few pushed out of range so the
    # "ignore out-of-grid points" path is exercised.
    points = jax.random.uniform(kp, (N, 3), dtype=jnp.float32,
                                minval=0.0, maxval=4.0)
    offsets = jnp.where(jax.random.uniform(ko, (N, 1)) < 0.1, 2.5, 0.0)
    points = points + offsets    # ~10% of points land outside the grid

    out = grid_pooling(features, points, gridshape)
    out = jax.block_until_ready(out)

    ref = grid_pooling_ref(features, points, gridshape)
    assert out.shape == (gridshape[0] * gridshape[1] * gridshape[2], C)
    assert jnp.allclose(out, ref, atol=1e-6), "mismatch vs reference"

    print("KERNEL_OK")
</pallas_src>

<mosaic_0001>
module attributes {stable_mosaic.version = 11 : i64} {
  func.func @_grid_pooling_kernel(%arg0: i32, %arg1: i32, %arg2: memref<128x1xi32, #tpu.memory_space<vmem>>, %arg3: memref<128x8xf32, #tpu.memory_space<vmem>>, %arg4: memref<8x128xf32, #tpu.memory_space<vmem>>, %arg5: memref<8x128xf32, #tpu.memory_space<vmem>>) attributes {dimension_semantics = [#tpu.dimension_semantics<parallel>, #tpu.dimension_semantics<arbitrary>], iteration_bounds = array<i64: 1, 1>, scalar_prefetch = 0 : i64, scratch_operands = 1 : i64, tpu.core_type = #tpu.core_type<tc>, window_params = [{transform_indices = @transform_0, window_bounds = array<i64: 128, 1>}, {transform_indices = @transform_1, window_bounds = array<i64: 128, 8>}, {transform_indices = @transform_2, window_bounds = array<i64: 8, 128>}]} {
    %c0_i32 = arith.constant 0 : i32
    %0 = arith.cmpi eq, %arg1, %c0_i32 : i32
    %1 = arith.extui %0 : i1 to i32
    %c0_i32_0 = arith.constant 0 : i32
    %2 = arith.cmpi ne, %1, %c0_i32_0 : i32
    scf.if %2 {
      %cst_684 = arith.constant 0.000000e+00 : f32
      %1434 = vector.broadcast %cst_684 : f32 to vector<8x128xf32>
      %c0_685 = arith.constant 0 : index
      %c0_686 = arith.constant 0 : index
      %1435 = vector.load %arg5[%c0_685, %c0_686] : memref<8x128xf32, #tpu.memory_space<vmem>>, vector<8x128xf32>
      tpu.vector_store %arg5[%c0_685, %c0_686], %1434 {strides = array<i32>} : memref<8x128xf32, #tpu.memory_space<vmem>>, vector<8x128xf32>,
    } else {
    }
    %c128_i32 = arith.constant 128 : i32
    %3 = arith.muli %arg0, %c128_i32 : i32
    %4 = tpu.iota {dimensions = array<i32: 1>} : vector<1x128xi32>
    %5 = vector.broadcast %3 : i32 to vector<1x128xi32>
    %6 = arith.addi %5, %4 : vector<1x128xi32>
    %cst = arith.constant 0xFF800000 : f32
    %c0_i32_1 = arith.constant 0 : i32
    %c8_i32 = arith.constant 8 : i32
    %7 = arith.muli %c0_i32_1, %c8_i32 : i32
    %8 = tpu.assume_multiple %7, 8 : i32
    %9 = arith.index_cast %8 : i32 to index
    %c0 = arith.constant 0 : index
    %10 = vector.load %arg2[%9, %c0] : memref<128x1xi32, #tpu.memory_space<vmem>>, vector<8x1xi32>
    %11 = arith.index_cast %8 : i32 to index
    %c0_2 = arith.constant 0 : index
    %12 = vector.load %arg3[%11, %c0_2] : memref<128x8xf32, #tpu.memory_space<vmem>>, vector<8x8xf32>
    %13 = vector.broadcast %10 : vector<8x1xi32> to vector<8x128xi32>
    %14 = vector.broadcast %6 : vector<1x128xi32> to vector<8x128xi32>
    %15 = arith.cmpi eq, %13, %14 : vector<8x128xi32>
    %16 = vector.extract_strided_slice %12 {offsets = [0, 0], sizes = [8, 1], strides = [1, 1]} : vector<8x8xf32> to vector<8x1xf32>
    %17 = vector.shape_cast %16 : vector<8x1xf32> to vector<8x1xf32>
    %18 = vector.broadcast %17 : vector<8x1xf32> to vector<8x128xf32>
    %19 = vector.broadcast %cst : f32 to vector<8x128xf32>
    %20 = arith.select %15, %18, %19 : vector<8x128xi1>, vector<8x128xf32>
    %cst_3 = arith.constant dense<0xFF800000> : vector<128xf32>
    %21 = vector.multi_reduction <maximumf>, %20, %cst_3 [0] : vector<8x128xf32> to vector<128xf32>
    %22 = vector.shape_cast %21 : vector<128xf32> to vector<1x128xf32>
    %c0_4 = arith.constant 0 : index
    %c0_5 = arith.constant 0 : index
    %23 = vector.load %arg5[%c0_4, %c0_5] : memref<8x128xf32, #tpu.memory_space<vmem>>, vector<1x128xf32>
    %24 = arith.maximumf %23, %22 : vector<1x128xf32>
    %c0_6 = arith.constant 0 : index
    %c0_7 = arith.constant 0 : index
    %25 = vector.load %arg5[%c0_6, %c0_7] : memref<8x128xf32, #tpu.memory_space<vmem>>, vector<1x128xf32>
    tpu.vector_store %arg5[%c0_6, %c0_7], %24 {strides = array<i32>} : memref<8x128xf32, #tpu.memory_space<vmem>>, vector<1x128xf32>,
    %26 = vector.extract_strided_slice %12 {offsets = [0, 1], sizes = [8, 1], strides = [1, 1]} : vector<8x8xf32> to vector<8x1xf32>
    %27 = vector.shape_cast %26 : vector<8x1xf32> to vector<8x1xf32>
    %28 = vector.broadcast %27 : vector<8x1xf32> to vector<8x128xf32>
    %29 = vector.broadcast %cst : f32 to vector<8x128xf32>
    %30 = arith.select %15, %28, %29 : vector<8x128xi1>, vector<8x128xf32>
    %cst_8 = arith.constant dense<0xFF800000> : vector<128xf32>
    %31 = vector.multi_reduction <maximumf>, %30, %cst_8 [0] : vector<8x128xf32> to vector<128xf32>
    %32 = vector.shape_cast %31 : vector<128xf32> to vector<1x128xf32>
    %c1 = arith.constant 1 : index
    %c0_9 = arith.constant 0 : index
    %33 = vector.load %arg5[%c1, %c0_9] : memref<8x128xf32, #tpu.memory_space<vmem>>, vector<1x128xf32>
    %34 = arith.maximumf %33, %32 : vector<1x128xf32>
    %c1_10 = arith.constant 1 : index
    %c0_11 = arith.constant 0 : index
    %35 = vector.load %arg5[%c1_10, %c0_11] : memref<8x128xf32, #tpu.memory_space<vmem>>, vector<1x128xf32>
    tpu.vector_store %arg5[%c1_10, %c0_11], %34 {strides = array<i32>} : memref<8x128xf32, #tpu.memory_space<vmem>>, vector<1x128xf32>,
    %36 = vector.extract_strided_slice %12 {offsets = [0, 2], sizes = [8, 1], strides = [1, 1]} : vector<8x8xf32> to vector<8x1xf32>
    %37 = vector.shape_cast %36 : vector<8x1xf32> to vector<8x1xf32>
    %38 = vector.broadcast %37 : vector<8x1xf32> to vector<8x128xf32>
    %39 = vector.broadcast %cst : f32 to vector<8x128xf32>
    %40 = arith.select %15, %38, %39 : vector<8x128xi1>, vector<8x128xf32>
    %cst_12 = arith.constant dense<0xFF800000> : vector<128xf32>
    %41 = vector.multi_reduction <maximumf>, %40, %cst_12 [0] : vector<8x128xf32> to vector<128xf32>
    %42 = vector.shape_cast %41 : vector<128xf32> to vector<1x128xf32>
    %c2 = arith.constant 2 : index
    %c0_13 = arith.constant 0 : index
    %43 = vector.load %arg5[%c2, %c0_13] : memref<8x128xf32, #tpu.memory_space<vmem>>, vector<1x128xf32>
    %44 = arith.maximumf %43, %42 : vector<1x128xf32>
    %c2_14 = arith.constant 2 : index
    %c0_15 = arith.constant 0 : index
    %45 = vector.load %arg5[%c2_14, %c0_15] : memref<8x128xf32, #tpu.memory_space<vmem>>, vector<1x128xf32>
    tpu.vector_store %arg5[%c2_14, %c0_15], %44 {strides = array<i32>} : memref<8x128xf32, #tpu.memory_space<vmem>>, vector<1x128xf32>,
    %46 = vector.extract_strided_slice %12 {offsets = [0, 3], sizes = [8, 1], strides = [1, 1]} : vector<8x8xf32> to vector<8x1xf32>
    %47 = vector.shape_cast %46 : vector<8x1xf32> to vector<8x1xf32>
    %48 = vector.broadcast %47 : vector<8x1xf32> to vector<8x128xf32>
    %49 = vector.broadcast %cst : f32 to vector<8x128xf32>
    %50 = arith.select %15, %48, %49 : vector<8x128xi1>, vector<8x128xf32>
    %cst_16 = arith.constant dense<0xFF800000> : vector<128xf32>
    %51 = vector.multi_reduction <maximumf>, %50, %cst_16 [0] : vector<8x128xf32> to vector<128xf32>
    %52 = vector.shape_cast %51 : vector<128xf32> to vector<1x128xf32>
    %c3 = arith.constant 3 : index
    %c0_17 = arith.constant 0 : index
    %53 = vector.load %arg5[%c3, %c0_17] : memref<8x128xf32, #tpu.memory_space<vmem>>, vector<1x128xf32>
    %54 = arith.maximumf %53, %52 : vector<1x128xf32>
    %c3_18 = arith.constant 3 : index
    %c0_19 = arith.constant 0 : index
    %55 = vector.load %arg5[%c3_18, %c0_19] : memref<8x128xf32, #tpu.memory_space<vmem>>, vector<1x128xf32>
    tpu.vector_store %arg5[%c3_18, %c0_19], %54 {strides = array<i32>} : memref<8x128xf32, #tpu.memory_space<vmem>>, vector<1x128xf32>,
    %56 = vector.extract_strided_slice %12 {offsets = [0, 4], sizes = [8, 1], strides = [1, 1]} : vector<8x8xf32> to vector<8x1xf32>
    %57 = vector.shape_cast %56 : vector<8x1xf32> to vector<8x1xf32>
    %58 = vector.broadcast %57 : vector<8x1xf32> to vector<8x128xf32>
    %59 = vector.broadcast %cst : f32 to vector<8x128xf32>
    %60 = arith.select %15, %58, %59 : vector<8x128xi1>, vector<8x128xf32>
    %cst_20 = arith.constant dense<0xFF800000> : vector<128xf32>
    %61 = vector.multi_reduction <maximumf>, %60, %cst_20 [0] : vector<8x128xf32> to vector<128xf32>
    %62 = vector.shape_cast %61 : vector<128xf32> to vector<1x128xf32>
    %c4 = arith.constant 4 : index
    %c0_21 = arith.constant 0 : index
    %63 = vector.load %arg5[%c4, %c0_21] : memref<8x128xf32, #tpu.memory_space<vmem>>, vector<1x128xf32>
    %64 = arith.maximumf %63, %62 : vector<1x128xf32>
    %c4_22 = arith.constant 4 : index
    %c0_23 = arith.constant 0 : index
    %65 = vector.load %arg5[%c4_22, %c0_23] : memref<8x128xf32, #tpu.memory_space<vmem>>, vector<1x128xf32>
    tpu.vector_store %arg5[%c4_22, %c0_23], %64 {strides = array<i32>} : memref<8x128xf32, #tpu.memory_space<vmem>>, vector<1x128xf32>,
    %66 = vector.extract_strided_slice %12 {offsets = [0, 5], sizes = [8, 1], strides = [1, 1]} : vector<8x8xf32> to vector<8x1xf32>
    %67 = vector.shape_cast %66 : vector<8x1xf32> to vector<8x1xf32>
    %68 = vector.broadcast %67 : vector<8x1xf32> to vector<8x128xf32>
    %69 = vector.broadcast %cst : f32 to vector<8x128xf32>
    %70 = arith.select %15, %68, %69 : vector<8x128xi1>, vector<8x128xf32>
    %cst_24 = arith.constant dense<0xFF800000> : vector<128xf32>
    %71 = vector.multi_reduction <maximumf>, %70, %cst_24 [0] : vector<8x128xf32> to vector<128xf32>
    %72 = vector.shape_cast %71 : vector<128xf32> to vector<1x128xf32>
    %c5 = arith.constant 5 : index
    %c0_25 = arith.constant 0 : index
    %73 = vector.load %arg5[%c5, %c0_25] : memref<8x128xf32, #tpu.memory_space<vmem>>, vector<1x128xf32>
    %74 = arith.maximumf %73, %72 : vector<1x128xf32>
    %c5_26 = arith.constant 5 : index
    %c0_27 = arith.constant 0 : index
    %75 = vector.load %arg5[%c5_26, %c0_27] : memref<8x128xf32, #tpu.memory_space<vmem>>, vector<1x128xf32>
    tpu.vector_store %arg5[%c5_26, %c0_27], %74 {strides = array<i32>} : memref<8x128xf32, #tpu.memory_space<vmem>>, vector<1x128xf32>,
    %76 = vector.extract_strided_slice %12 {offsets = [0, 6], sizes = [8, 1], strides = [1, 1]} : vector<8x8xf32> to vector<8x1xf32>
    %77 = vector.shape_cast %76 : vector<8x1xf32> to vector<8x1xf32>
    %78 = vector.broadcast %77 : vector<8x1xf32> to vector<8x128xf32>
    %79 = vector.broadcast %cst : f32 to vector<8x128xf32>
    %80 = arith.select %15, %78, %79 : vector<8x128xi1>, vector<8x128xf32>
    %cst_28 = arith.constant dense<0xFF800000> : vector<128xf32>
    %81 = vector.multi_reduction <maximumf>, %80, %cst_28 [0] : vector<8x128xf32> to vector<128xf32>
    %82 = vector.shape_cast %81 : vector<128xf32> to vector<1x128xf32>
    %c6 = arith.constant 6 : index
    %c0_29 = arith.constant 0 : index
    %83 = vector.load %arg5[%c6, %c0_29] : memref<8x128xf32, #tpu.memory_space<vmem>>, vector<1x128xf32>
    %84 = arith.maximumf %83, %82 : vector<1x128xf32>
    %c6_30 = arith.constant 6 : index
    %c0_31 = arith.constant 0 : index
    %85 = vector.load %arg5[%c6_30, %c0_31] : memref<8x128xf32, #tpu.memory_space<vmem>>, vector<1x128xf32>
    tpu.vector_store %arg5[%c6_30, %c0_31], %84 {strides = array<i32>} : memref<8x128xf32, #tpu.memory_space<vmem>>, vector<1x128xf32>,
    %86 = vector.extract_strided_slice %12 {offsets = [0, 7], sizes = [8, 1], strides = [1, 1]} : vector<8x8xf32> to vector<8x1xf32>
    %87 = vector.shape_cast %86 : vector<8x1xf32> to vector<8x1xf32>
    %88 = vector.broadcast %87 : vector<8x1xf32> to vector<8x128xf32>
    %89 = vector.broadcast %cst : f32 to vector<8x128xf32>
    %90 = arith.select %15, %88, %89 : vector<8x128xi1>, vector<8x128xf32>
    %cst_32 = arith.constant dense<0xFF800000> : vector<128xf32>
    %91 = vector.multi_reduction <maximumf>, %90, %cst_32 [0] : vector<8x128xf32> to vector<128xf32>
    %92 = vector.shape_cast %91 : vector<128xf32> to vector<1x128xf32>
    %c7 = arith.constant 7 : index
    %c0_33 = arith.constant 0 : index
    %93 = vector.load %arg5[%c7, %c0_33] : memref<8x128xf32, #tpu.memory_space<vmem>>, vector<1x128xf32>
    %94 = arith.maximumf %93, %92 : vector<1x128xf32>
    %c7_34 = arith.constant 7 : index
    %c0_35 = arith.constant 0 : index
    %95 = vector.load %arg5[%c7_34, %c0_35] : memref<8x128xf32, #tpu.memory_space<vmem>>, vector<1x128xf32>
    tpu.vector_store %arg5[%c7_34, %c0_35], %94 {strides = array<i32>} : memref<8x128xf32, #tpu.memory_space<vmem>>, vector<1x128xf32>,
    %c1_i32 = arith.constant 1 : i32
    %c8_i32_36 = arith.constant 8 : i32
    %96 = arith.muli %c1_i32, %c8_i32_36 : i32
    %97 = tpu.assume_multiple %96, 8 : i32
    %98 = arith.index_cast %97 : i32 to index
    %c0_37 = arith.constant 0 : index
    %99 = vector.load %arg2[%98, %c0_37] : memref<128x1xi32, #tpu.memory_space<vmem>>, vector<8x1xi32>
    %100 = arith.index_cast %97 : i32 to index
    %c0_38 = arith.constant 0 : index
    %101 = vector.load %arg3[%100, %c0_38] : memref<128x8xf32, #tpu.memory_space<vmem>>, vector<8x8xf32>
    %102 = vector.broadcast %99 : vector<8x1xi32> to vector<8x128xi32>
    %103 = vector.broadcast %6 : vector<1x128xi32> to vector<8x128xi32>
    %104 = arith.cmpi eq, %102, %103 : vector<8x128xi32>
    %105 = vector.extract_strided_slice %101 {offsets = [0, 0], sizes = [8, 1], strides = [1, 1]} : vector<8x8xf32> to vector<8x1xf32>
    %106 = vector.shape_cast %105 : vector<8x1xf32> to vector<8x1xf32>
    %107 = vector.broadcast %106 : vector<8x1xf32> to vector<8x128xf32>
    %108 = vector.broadcast %cst : f32 to vector<8x128xf32>
    %109 = arith.select %104, %107, %108 : vector<8x128xi1>, vector<8x128xf32>
    %cst_39 = arith.constant dense<0xFF800000> : vector<128xf32>
    %110 = vector.multi_reduction <maximumf>, %109, %cst_39 [0] : vector<8x128xf32> to vector<128xf32>
    %111 = vector.shape_cast %110 : vector<128xf32> to vector<1x128xf32>
    %c0_40 = arith.constant 0 : index
    %c0_41 = arith.constant 0 : index
    %112 = vector.load %arg5[%c0_40, %c0_41] : memref<8x128xf32, #tpu.memory_space<vmem>>, vector<1x128xf32>
    %113 = arith.maximumf %112, %111 : vector<1x128xf32>
    %c0_42 = arith.constant 0 : index
    %c0_43 = arith.constant 0 : index
    %114 = vector.load %arg5[%c0_42, %c0_43] : memref<8x128xf32, #tpu.memory_space<vmem>>, vector<1x128xf32>
    tpu.vector_store %arg5[%c0_42, %c0_43], %113 {strides = array<i32>} : memref<8x128xf32, #tpu.memory_space<vmem>>, vector<1x128xf32>,
    %115 = vector.extract_strided_slice %101 {offsets = [0, 1], sizes = [8, 1], strides = [1, 1]} : vector<8x8xf32> to vector<8x1xf32>
    %116 = vector.shape_cast %115 : vector<8x1xf32> to vector<8x1xf32>
    %117 = vector.broadcast %116 : vector<8x1xf32> to vector<8x128xf32>
    %118 = vector.broadcast %cst : f32 to vector<8x128xf32>
    %119 = arith.select %104, %117, %118 : vector<8x128xi1>, vector<8x128xf32>
    %cst_44 = arith.constant dense<0xFF800000> : vector<128xf32>
    %120 = vector.multi_reduction <maximumf>, %119, %cst_44 [0] : vector<8x128xf32> to vector<128xf32>
    %121 = vector.shape_cast %120 : vector<128xf32> to vector<1x128xf32>
    %c1_45 = arith.constant 1 : index
    %c0_46 = arith.constant 0 : index
    %122 = vector.load %arg5[%c1_45, %c0_46] : memref<8x128xf32, #tpu.memory_space<vmem>>, vector<1x128xf32>
    %123 = arith.maximumf %122, %121 : vector<1x128xf32>
    %c1_47 = arith.constant 1 : index
    %c0_48 = arith.constant 0 : index
    %124 = vector.load %arg5[%c1_47, %c0_48] : memref<8x128xf32, #tpu.memory_space<vmem>>, vector<1x128xf32>
    tpu.vector_store %arg5[%c1_47, %c0_48], %123 {strides = array<i32>} : memref<8x128xf32, #tpu.memory_space<vmem>>, vector<1x128xf32>,
    %125 = vector.extract_strided_slice %101 {offsets = [0, 2], sizes = [8, 1], strides = [1, 1]} : vector<8x8xf32> to vector<8x1xf32>
    %126 = vector.shape_cast %125 : vector<8x1xf32> to vector<8x1xf32>
    %127 = vector.broadcast %126 : vector<8x1xf32> to vector<8x128xf32>
    %128 = vector.broadcast %cst : f32 to vector<8x128xf32>
    %129 = arith.select %104, %127, %128 : vector<8x128xi1>, vector<8x128xf32>
    %cst_49 = arith.constant dense<0xFF800000> : vector<128xf32>
    %130 = vector.multi_reduction <maximumf>, %129, %cst_49 [0] : vector<8x128xf32> to vector<128xf32>
    %131 = vector.shape_cast %130 : vector<128xf32> to vector<1x128xf32>
    %c2_50 = arith.constant 2 : index
    %c0_51 = arith.constant 0 : index
    %132 = vector.load %arg5[%c2_50, %c0_51] : memref<8x128xf32, #tpu.memory_space<vmem>>, vector<1x128xf32>
    %133 = arith.maximumf %132, %131 : vector<1x128xf32>
    %c2_52 = arith.constant 2 : index
    %c0_53 = arith.constant 0 : index
    %134 = vector.load %arg5[%c2_52, %c0_53] : memref<8x128xf32, #tpu.memory_space<vmem>>, vector<1x128xf32>
    tpu.vector_store %arg5[%c2_52, %c0_53], %133 {strides = array<i32>} : memref<8x128xf32, #tpu.memory_space<vmem>>, vector<1x128xf32>,
    %135 = vector.extract_strided_slice %101 {offsets = [0, 3], sizes = [8, 1], strides = [1, 1]} : vector<8x8xf32> to vector<8x1xf32>
    %136 = vector.shape_cast %135 : vector<8x1xf32> to vector<8x1xf32>
    %137 = vector.broadcast %136 : vector<8x1xf32> to vector<8x128xf32>
    %138 = vector.broadcast %cst : f32 to vector<8x128xf32>
    %139 = arith.select %104, %137, %138 : vector<8x128xi1>, vector<8x128xf32>
    %cst_54 = arith.constant dense<0xFF800000> : vector<128xf32>
    %140 = vector.multi_reduction <maximumf>, %139, %cst_54 [0] : vector<8x128xf32> to vector<128xf32>
    %141 = vector.shape_cast %140 : vector<128xf32> to vector<1x128xf32>
    %c3_55 = arith.constant 3 : index
    %c0_56 = arith.constant 0 : index
    %142 = vector.load %arg5[%c3_55, %c0_56] : memref<8x128xf32, #tpu.memory_space<vmem>>, vector<1x128xf32>
    %143 = arith.maximumf %142, %141 : vector<1x128xf32>
    %c3_57 = arith.constant 3 : index
    %c0_58 = arith.constant 0 : index
    %144 = vector.load %arg5[%c3_57, %c0_58] : memref<8x128xf32, #tpu.memory_space<vmem>>, vector<1x128xf32>
    tpu.vector_store %arg5[%c3_57, %c0_58], %143 {strides = array<i32>} : memref<8x128xf32, #tpu.memory_space<vmem>>, vector<1x128xf32>,
    %145 = vector.extract_strided_slice %101 {offsets = [0, 4], sizes = [8, 1], strides = [1, 1]} : vector<8x8xf32> to vector<8x1xf32>
    %146 = vector.shape_cast %145 : vector<8x1xf32> to vector<8x1xf32>
    %147 = vector.broadcast %146 : vector<8x1xf32> to vector<8x128xf32>
    %148 = vector.broadcast %cst : f32 to vector<8x128xf32>
    %149 = arith.select %104, %147, %148 : vector<8x128xi1>, vector<8x128xf32>
    %cst_59 = arith.constant dense<0xFF800000> : vector<128xf32>
    %150 = vector.multi_reduction <maximumf>, %149, %cst_59 [0] : vector<8x128xf32> to vector<128xf32>
    %151 = vector.shape_cast %150 : vector<128xf32> to vector<1x128xf32>
    %c4_60 = arith.constant 4 : index
    %c0_61 = arith.constant 0 : index
    %152 = vector.load %arg5[%c4_60, %c0_61] : memref<8x128xf32, #tpu.memory_space<vmem>>, vector<1x128xf32>
    %153 = arith.maximumf %152, %151 : vector<1x128xf32>
    %c4_62 = arith.constant 4 : index
    %c0_63 = arith.constant 0 : index
    %154 = vector.load %arg5[%c4_62, %c0_63] : memref<8x128xf32, #tpu.memory_space<vmem>>, vector<1x128xf32>
    tpu.vector_store %arg5[%c4_62, %c0_63], %153 {strides = array<i32>} : memref<8x128xf32, #tpu.memory_space<vmem>>, vector<1x128xf32>,
    %155 = vector.extract_strided_slice %101 {offsets = [0, 5], sizes = [8, 1], strides = [1, 1]} : vector<8x8xf32> to vector<8x1xf32>
    %156 = vector.shape_cast %155 : vector<8x1xf32> to vector<8x1xf32>
    %157 = vector.broadcast %156 : vector<8x1xf32> to vector<8x128xf32>
    %158 = vector.broadcast %cst : f32 to vector<8x128xf32>
    %159 = arith.select %104, %157, %158 : vector<8x128xi1>, vector<8x128xf32>
    %cst_64 = arith.constant dense<0xFF800000> : vector<128xf32>
    %160 = vector.multi_reduction <maximumf>, %159, %cst_64 [0] : vector<8x128xf32> to vector<128xf32>
    %161 = vector.shape_cast %160 : vector<128xf32> to vector<1x128xf32>
    %c5_65 = arith.constant 5 : index
    %c0_66 = arith.constant 0 : index
    %162 = vector.load %arg5[%c5_65, %c0_66] : memref<8x128xf32, #tpu.memory_space<vmem>>, vector<1x128xf32>
    %163 = arith.maximumf %162, %161 : vector<1x128xf32>
    %c5_67 = arith.constant 5 : index
    %c0_68 = arith.constant 0 : index
    %164 = vector.load %arg5[%c5_67, %c0_68] : memref<8x128xf32, #tpu.memory_space<vmem>>, vector<1x128xf32>
    tpu.vector_store %arg5[%c5_67, %c0_68], %163 {strides = array<i32>} : memref<8x128xf32, #tpu.memory_space<vmem>>, vector<1x128xf32>,
    %165 = vector.extract_strided_slice %101 {offsets = [0, 6], sizes = [8, 1], strides = [1, 1]} : vector<8x8xf32> to vector<8x1xf32>
    %166 = vector.shape_cast %165 : vector<8x1xf32> to vector<8x1xf32>
    %167 = vector.broadcast %166 : vector<8x1xf32> to vector<8x128xf32>
    %168 = vector.broadcast %cst : f32 to vector<8x128xf32>
    %169 = arith.select %104, %167, %168 : vector<8x128xi1>, vector<8x128xf32>
    %cst_69 = arith.constant dense<0xFF800000> : vector<128xf32>
    %170 = vector.multi_reduction <maximumf>, %169, %cst_69 [0] : vector<8x128xf32> to vector<128xf32>
    %171 = vector.shape_cast %170 : vector<128xf32> to vector<1x128xf32>
    %c6_70 = arith.constant 6 : index
    %c0_71 = arith.constant 0 : index
    %172 = vector.load %arg5[%c6_70, %c0_71] : memref<8x128xf32, #tpu.memory_space<vmem>>, vector<1x128xf32>
    %173 = arith.maximumf %172, %171 : vector<1x128xf32>
    %c6_72 = arith.constant 6 : index
    %c0_73 = arith.constant 0 : index
    %174 = vector.load %arg5[%c6_72, %c0_73] : memref<8x128xf32, #tpu.memory_space<vmem>>, vector<1x128xf32>
    tpu.vector_store %arg5[%c6_72, %c0_73], %173 {strides = array<i32>} : memref<8x128xf32, #tpu.memory_space<vmem>>, vector<1x128xf32>,
    %175 = vector.extract_strided_slice %101 {offsets = [0, 7], sizes = [8, 1], strides = [1, 1]} : vector<8x8xf32> to vector<8x1xf32>
    %176 = vector.shape_cast %175 : vector<8x1xf32> to vector<8x1xf32>
    %177 = vector.broadcast %176 : vector<8x1xf32> to vector<8x128xf32>
    %178 = vector.broadcast %cst : f32 to vector<8x128xf32>
    %179 = arith.select %104, %177, %178 : vector<8x128xi1>, vector<8x128xf32>
    %cst_74 = arith.constant dense<0xFF800000> : vector<128xf32>
    %180 = vector.multi_reduction <maximumf>, %179, %cst_74 [0] : vector<8x128xf32> to vector<128xf32>
    %181 = vector.shape_cast %180 : vector<128xf32> to vector<1x128xf32>
    %c7_75 = arith.constant 7 : index
    %c0_76 = arith.constant 0 : index
    %182 = vector.load %arg5[%c7_75, %c0_76] : memref<8x128xf32, #tpu.memory_space<vmem>>, vector<1x128xf32>
    %183 = arith.maximumf %182, %181 : vector<1x128xf32>
    %c7_77 = arith.constant 7 : index
    %c0_78 = arith.constant 0 : index
    %184 = vector.load %arg5[%c7_77, %c0_78] : memref<8x128xf32, #tpu.memory_space<vmem>>, vector<1x128xf32>
    tpu.vector_store %arg5[%c7_77, %c0_78], %183 {strides = array<i32>} : memref<8x128xf32, #tpu.memory_space<vmem>>, vector<1x128xf32>,
    %c2_i32 = arith.constant 2 : i32
    %c8_i32_79 = arith.constant 8 : i32
    %185 = arith.muli %c2_i32, %c8_i32_79 : i32
    %186 = tpu.assume_multiple %185, 8 : i32
    %187 = arith.index_cast %186 : i32 to index
    %c0_80 = arith.constant 0 : index
    %188 = vector.load %arg2[%187, %c0_80] : memref<128x1xi32, #tpu.memory_space<vmem>>, vector<8x1xi32>
    %189 = arith.index_cast %186 : i32 to index
    %c0_81 = arith.constant 0 : index
    %190 = vector.load %arg3[%189, %c0_81] : memref<128x8xf32, #tpu.memory_space<vmem>>, vector<8x8xf32>
    %191 = vector.broadcast %188 : vector<8x1xi32> to vector<8x128xi32>
    %192 = vector.broadcast %6 : vector<1x128xi32> to vector<8x128xi32>
    %193 = arith.cmpi eq, %191, %192 : vector<8x128xi32>
    %194 = vector.extract_strided_slice %190 {offsets = [0, 0], sizes = [8, 1], strides = [1, 1]} : vector<8x8xf32> to vector<8x1xf32>
    %195 = vector.shape_cast %194 : vector<8x1xf32> to vector<8x1xf32>
    %196 = vector.broadcast %195 : vector<8x1xf32> to vector<8x128xf32>
    %197 = vector.broadcast %cst : f32 to vector<8x128xf32>
    %198 = arith.select %193, %196, %197 : vector<8x128xi1>, vector<8x128xf32>
    %cst_82 = arith.constant dense<0xFF800000> : vector<128xf32>
    %199 = vector.multi_reduction <maximumf>, %198, %cst_82 [0] : vector<8x128xf32> to vector<128xf32>
    %200 = vector.shape_cast %199 : vector<128xf32> to vector<1x128xf32>
    %c0_83 = arith.constant 0 : index
    %c0_84 = arith.constant 0 : index
    %201 = vector.load %arg5[%c0_83, %c0_84] : memref<8x128xf32, #tpu.memory_space<vmem>>, vector<1x128xf32>
    %202 = arith.maximumf %201, %200 : vector<1x128xf32>
    %c0_85 = arith.constant 0 : index
    %c0_86 = arith.constant 0 : index
    %203 = vector.load %arg5[%c0_85, %c0_86] : memref<8x128xf32, #tpu.memory_space<vmem>>, vector<1x128xf32>
    tpu.vector_store %arg5[%c0_85, %c0_86], %202 {strides = array<i32>} : memref<8x128xf32, #tpu.memory_space<vmem>>, vector<1x128xf32>,
    %204 = vector.extract_strided_slice %190 {offsets = [0, 1], sizes = [8, 1], strides = [1, 1]} : vector<8x8xf32> to vector<8x1xf32>
    %205 = vector.shape_cast %204 : vector<8x1xf32> to vector<8x1xf32>
    %206 = vector.broadcast %205 : vector<8x1xf32> to vector<8x128xf32>
    %207 = vector.broadcast %cst : f32 to vector<8x128xf32>
    %208 = arith.select %193, %206, %207 : vector<8x128xi1>, vector<8x128xf32>
    %cst_87 = arith.constant dense<0xFF800000> : vector<128xf32>
    %209 = vector.multi_reduction <maximumf>, %208, %cst_87 [0] : vector<8x128xf32> to vector<128xf32>
    %210 = vector.shape_cast %209 : vector<128xf32> to vector<1x128xf32>
    %c1_88 = arith.constant 1 : index
    %c0_89 = arith.constant 0 : index
    %211 = vector.load %arg5[%c1_88, %c0_89] : memref<8x128xf32, #tpu.memory_space<vmem>>, vector<1x128xf32>
    %212 = arith.maximumf %211, %210 : vector<1x128xf32>
    %c1_90 = arith.constant 1 : index
    %c0_91 = arith.constant 0 : index
    %213 = vector.load %arg5[%c1_90, %c0_91] : memref<8x128xf32, #tpu.memory_space<vmem>>, vector<1x128xf32>
    tpu.vector_store %arg5[%c1_90, %c0_91], %212 {strides = array<i32>} : memref<8x128xf32, #tpu.memory_space<vmem>>, vector<1x128xf32>,
    %214 = vector.extract_strided_slice %190 {offsets = [0, 2], sizes = [8, 1], strides = [1, 1]} : vector<8x8xf32> to vector<8x1xf32>
    %215 = vector.shape_cast %214 : vector<8x1xf32> to vector<8x1xf32>
    %216 = vector.broadcast %215 : vector<8x1xf32> to vector<8x128xf32>
    %217 = vector.broadcast %cst : f32 to vector<8x128xf32>
    %218 = arith.select %193, %216, %217 : vector<8x128xi1>, vector<8x128xf32>
    %cst_92 = arith.constant dense<0xFF800000> : vector<128xf32>
    %219 = vector.multi_reduction <maximumf>, %218, %cst_92 [0] : vector<8x128xf32> to vector<128xf32>
    %220 = vector.shape_cast %219 : vector<128xf32> to vector<1x128xf32>
    %c2_93 = arith.constant 2 : index
    %c0_94 = arith.constant 0 : index
    %221 = vector.load %arg5[%c2_93, %c0_94] : memref<8x128xf32, #tpu.memory_space<vmem>>, vector<1x128xf32>
    %222 = arith.maximumf %221, %220 : vector<1x128xf32>
    %c2_95 = arith.constant 2 : index
    %c0_96 = arith.constant 0 : index
    %223 = vector.load %arg5[%c2_95, %c0_96] : memref<8x128xf32, #tpu.memory_space<vmem>>, vector<1x128xf32>
    tpu.vector_store %arg5[%c2_95, %c0_96], %222 {strides = array<i32>} : memref<8x128xf32, #tpu.memory_space<vmem>>, vector<1x128xf32>,
    %224 = vector.extract_strided_slice %190 {offsets = [0, 3], sizes = [8, 1], strides = [1, 1]} : vector<8x8xf32> to vector<8x1xf32>
    %225 = vector.shape_cast %224 : vector<8x1xf32> to vector<8x1xf32>
    %226 = vector.broadcast %225 : vector<8x1xf32> to vector<8x128xf32>
    %227 = vector.broadcast %cst : f32 to vector<8x128xf32>
    %228 = arith.select %193, %226, %227 : vector<8x128xi1>, vector<8x128xf32>
    %cst_97 = arith.constant dense<0xFF800000> : vector<128xf32>
    %229 = vector.multi_reduction <maximumf>, %228, %cst_97 [0] : vector<8x128xf32> to vector<128xf32>
    %230 = vector.shape_cast %229 : vector<128xf32> to vector<1x128xf32>
    %c3_98 = arith.constant 3 : index
    %c0_99 = arith.constant 0 : index
    %231 = vector.load %arg5[%c3_98, %c0_99] : memref<8x128xf32, #tpu.memory_space<vmem>>, vector<1x128xf32>
    %232 = arith.maximumf %231, %230 : vector<1x128xf32>
    %c3_100 = arith.constant 3 : index
    %c0_101 = arith.constant 0 : index
    %233 = vector.load %arg5[%c3_100, %c0_101] : memref<8x128xf32, #tpu.memory_space<vmem>>, vector<1x128xf32>
    tpu.vector_store %arg5[%c3_100, %c0_101], %232 {strides = array<i32>} : memref<8x128xf32, #tpu.memory_space<vmem>>, vector<1x128xf32>,
    %234 = vector.extract_strided_slice %190 {offsets = [0, 4], sizes = [8, 1], strides = [1, 1]} : vector<8x8xf32> to vector<8x1xf32>
    %235 = vector.shape_cast %234 : vector<8x1xf32> to vector<8x1xf32>
    %236 = vector.broadcast %235 : vector<8x1xf32> to vector<8x128xf32>
    %237 = vector.broadcast %cst : f32 to vector<8x128xf32>
    %238 = arith.select %193, %236, %237 : vector<8x128xi1>, vector<8x128xf32>
    %cst_102 = arith.constant dense<0xFF800000> : vector<128xf32>
    %239 = vector.multi_reduction <maximumf>, %238, %cst_102 [0] : vector<8x128xf32> to vector<128xf32>
    %240 = vector.shape_cast %239 : vector<128xf32> to vector<1x128xf32>
    %c4_103 = arith.constant 4 : index
    %c0_104 = arith.constant 0 : index
    %241 = vector.load %arg5[%c4_103, %c0_104] : memref<8x128xf32, #tpu.memory_space<vmem>>, vector<1x128xf32>
    %242 = arith.maximumf %241, %240 : vector<1x128xf32>
    %c4_105 = arith.constant 4 : index
    %c0_106 = arith.constant 0 : index
    %243 = vector.load %arg5[%c4_105, %c0_106] : memref<8x128xf32, #tpu.memory_space<vmem>>, vector<1x128xf32>
    tpu.vector_store %arg5[%c4_105, %c0_106], %242 {strides = array<i32>} : memref<8x128xf32, #tpu.memory_space<vmem>>, vector<1x128xf32>,
    %244 = vector.extract_strided_slice %190 {offsets = [0, 5], sizes = [8, 1], strides = [1, 1]} : vector<8x8xf32> to vector<8x1xf32>
    %245 = vector.shape_cast %244 : vector<8x1xf32> to vector<8x1xf32>
    %246 = vector.broadcast %245 : vector<8x1xf32> to vector<8x128xf32>
    %247 = vector.broadcast %cst : f32 to vector<8x128xf32>
    %248 = arith.select %193, %246, %247 : vector<8x128xi1>, vector<8x128xf32>
    %cst_107 = arith.constant dense<0xFF800000> : vector<128xf32>
    %249 = vector.multi_reduction <maximumf>, %248, %cst_107 [0] : vector<8x128xf32> to vector<128xf32>
    %250 = vector.shape_cast %249 : vector<128xf32> to vector<1x128xf32>
    %c5_108 = arith.constant 5 : index
    %c0_109 = arith.constant 0 : index
    %251 = vector.load %arg5[%c5_108, %c0_109] : memref<8x128xf32, #tpu.memory_space<vmem>>, vector<1x128xf32>
    %252 = arith.maximumf %251, %250 : vector<1x128xf32>
    %c5_110 = arith.constant 5 : index
    %c0_111 = arith.constant 0 : index
    %253 = vector.load %arg5[%c5_110, %c0_111] : memref<8x128xf32, #tpu.memory_space<vmem>>, vector<1x128xf32>
    tpu.vector_store %arg5[%c5_110, %c0_111], %252 {strides = array<i32>} : memref<8x128xf32, #tpu.memory_space<vmem>>, vector<1x128xf32>,
    %254 = vector.extract_strided_slice %190 {offsets = [0, 6], sizes = [8, 1], strides = [1, 1]} : vector<8x8xf32> to vector<8x1xf32>
    %255 = vector.shape_cast %254 : vector<8x1xf32> to vector<8x1xf32>
    %256 = vector.broadcast %255 : vector<8x1xf32> to vector<8x128xf32>
    %257 = vector.broadcast %cst : f32 to vector<8x128xf32>
    %258 = arith.select %193, %256, %257 : vector<8x128xi1>, vector<8x128xf32>
    %cst_112 = arith.constant dense<0xFF800000> : vector<128xf32>
    %259 = vector.multi_reduction <maximumf>, %258, %cst_112 [0] : vector<8x128xf32> to vector<128xf32>
    %260 = vector.shape_cast %259 : vector<128xf32> to vector<1x128xf32>
    %c6_113 = arith.constant 6 : index
    %c0_114 = arith.constant 0 : index
    %261 = vector.load %arg5[%c6_113, %c0_114] : memref<8x128xf32, #tpu.memory_space<vmem>>, vector<1x128xf32>
    %262 = arith.maximumf %261, %260 : vector<1x128xf32>
    %c6_115 = arith.constant 6 : index
    %c0_116 = arith.constant 0 : index
    %263 = vector.load %arg5[%c6_115, %c0_116] : memref<8x128xf32, #tpu.memory_space<vmem>>, vector<1x128xf32>
    tpu.vector_store %arg5[%c6_115, %c0_116], %262 {strides = array<i32>} : memref<8x128xf32, #tpu.memory_space<vmem>>, vector<1x128xf32>,
    %264 = vector.extract_strided_slice %190 {offsets = [0, 7], sizes = [8, 1], strides = [1, 1]} : vector<8x8xf32> to vector<8x1xf32>
    %265 = vector.shape_cast %264 : vector<8x1xf32> to vector<8x1xf32>
    %266 = vector.broadcast %265 : vector<8x1xf32> to vector<8x128xf32>
    %267 = vector.broadcast %cst : f32 to vector<8x128xf32>
    %268 = arith.select %193, %266, %267 : vector<8x128xi1>, vector<8x128xf32>
    %cst_117 = arith.constant dense<0xFF800000> : vector<128xf32>
    %269 = vector.multi_reduction <maximumf>, %268, %cst_117 [0] : vector<8x128xf32> to vector<128xf32>
    %270 = vector.shape_cast %269 : vector<128xf32> to vector<1x128xf32>
    %c7_118 = arith.constant 7 : index
    %c0_119 = arith.constant 0 : index
    %271 = vector.load %arg5[%c7_118, %c0_119] : memref<8x128xf32, #tpu.memory_space<vmem>>, vector<1x128xf32>
    %272 = arith.maximumf %271, %270 : vector<1x128xf32>
    %c7_120 = arith.constant 7 : index
    %c0_121 = arith.constant 0 : index
    %273 = vector.load %arg5[%c7_120, %c0_121] : memref<8x128xf32, #tpu.memory_space<vmem>>, vector<1x128xf32>
    tpu.vector_store %arg5[%c7_120, %c0_121], %272 {strides = array<i32>} : memref<8x128xf32, #tpu.memory_space<vmem>>, vector<1x128xf32>,
    %c3_i32 = arith.constant 3 : i32
    %c8_i32_122 = arith.constant 8 : i32
    %274 = arith.muli %c3_i32, %c8_i32_122 : i32
    %275 = tpu.assume_multiple %274, 8 : i32
    %276 = arith.index_cast %275 : i32 to index
    %c0_123 = arith.constant 0 : index
    %277 = vector.load %arg2[%276, %c0_123] : memref<128x1xi32, #tpu.memory_space<vmem>>, vector<8x1xi32>
    %278 = arith.index_cast %275 : i32 to index
    %c0_124 = arith.constant 0 : index
    %279 = vector.load %arg3[%278, %c0_124] : memref<128x8xf32, #tpu.memory_space<vmem>>, vector<8x8xf32>
    %280 = vector.broadcast %277 : vector<8x1xi32> to vector<8x128xi32>
    %281 = vector.broadcast %6 : vector<1x128xi32> to vector<8x128xi32>
    %282 = arith.cmpi eq, %280, %281 : vector<8x128xi32>
    %283 = vector.extract_strided_slice %279 {offsets = [0, 0], sizes = [8, 1], strides = [1, 1]} : vector<8x8xf32> to vector<8x1xf32>
    %284 = vector.shape_cast %283 : vector<8x1xf32> to vector<8x1xf32>
    %285 = vector.broadcast %284 : vector<8x1xf32> to vector<8x128xf32>
    %286 = vector.broadcast %cst : f32 to vector<8x128xf32>
    %287 = arith.select %282, %285, %286 : vector<8x128xi1>, vector<8x128xf32>
    %cst_125 = arith.constant dense<0xFF800000> : vector<128xf32>
    %288 = vector.multi_reduction <maximumf>, %287, %cst_125 [0] : vector<8x128xf32> to vector<128xf32>
    %289 = vector.shape_cast %288 : vector<128xf32> to vector<1x128xf32>
    %c0_126 = arith.constant 0 : index
    %c0_127 = arith.constant 0 : index
    %290 = vector.load %arg5[%c0_126, %c0_127] : memref<8x128xf32, #tpu.memory_space<vmem>>, vector<1x128xf32>
    %291 = arith.maximumf %290, %289 : vector<1x128xf32>
    %c0_128 = arith.constant 0 : index
    %c0_129 = arith.constant 0 : index
    %292 = vector.load %arg5[%c0_128, %c0_129] : memref<8x128xf32, #tpu.memory_space<vmem>>, vector<1x128xf32>
    tpu.vector_store %arg5[%c0_128, %c0_129], %291 {strides = array<i32>} : memref<8x128xf32, #tpu.memory_space<vmem>>, vector<1x128xf32>,
    %293 = vector.extract_strided_slice %279 {offsets = [0, 1], sizes = [8, 1], strides = [1, 1]} : vector<8x8xf32> to vector<8x1xf32>
    %294 = vector.shape_cast %293 : vector<8x1xf32> to vector<8x1xf32>
    %295 = vector.broadcast %294 : vector<8x1xf32> to vector<8x128xf32>
    %296 = vector.broadcast %cst : f32 to vector<8x128xf32>
    %297 = arith.select %282, %295, %296 : vector<8x128xi1>, vector<8x128xf32>
    %cst_130 = arith.constant dense<0xFF800000> : vector<128xf32>
    %298 = vector.multi_reduction <maximumf>, %297, %cst_130 [0] : vector<8x128xf32> to vector<128xf32>
    %299 = vector.shape_cast %298 : vector<128xf32> to vector<1x128xf32>
    %c1_131 = arith.constant 1 : index
    %c0_132 = arith.constant 0 : index
    %300 = vector.load %arg5[%c1_131, %c0_132] : memref<8x128xf32, #tpu.memory_space<vmem>>, vector<1x128xf32>
    %301 = arith.maximumf %300, %299 : vector<1x128xf32>
    %c1_133 = arith.constant 1 : index
    %c0_134 = arith.constant 0 : index
    %302 = vector.load %arg5[%c1_133, %c0_134] : memref<8x128xf32, #tpu.memory_space<vmem>>, vector<1x128xf32>
    tpu.vector_store %arg5[%c1_133, %c0_134], %301 {strides = array<i32>} : memref<8x128xf32, #tpu.memory_space<vmem>>, vector<1x128xf32>,
    %303 = vector.extract_strided_slice %279 {offsets = [0, 2], sizes = [8, 1], strides = [1, 1]} : vector<8x8xf32> to vector<8x1xf32>
    %304 = vector.shape_cast %303 : vector<8x1xf32> to vector<8x1xf32>
    %305 = vector.broadcast %304 : vector<8x1xf32> to vector<8x128xf32>
    %306 = vector.broadcast %cst : f32 to vector<8x128xf32>
    %307 = arith.select %282, %305, %306 : vector<8x128xi1>, vector<8x128xf32>
    %cst_135 = arith.constant dense<0xFF800000> : vector<128xf32>
    %308 = vector.multi_reduction <maximumf>, %307, %cst_135 [0] : vector<8x128xf32> to vector<128xf32>
    %309 = vector.shape_cast %308 : vector<128xf32> to vector<1x128xf32>
    %c2_136 = arith.constant 2 : index
    %c0_137 = arith.constant 0 : index
    %310 = vector.load %arg5[%c2_136, %c0_137] : memref<8x128xf32, #tpu.memory_space<vmem>>, vector<1x128xf32>
    %311 = arith.maximumf %310, %309 : vector<1x128xf32>
    %c2_138 = arith.constant 2 : index
    %c0_139 = arith.constant 0 : index
    %312 = vector.load %arg5[%c2_138, %c0_139] : memref<8x128xf32, #tpu.memory_space<vmem>>, vector<1x128xf32>
    tpu.vector_store %arg5[%c2_138, %c0_139], %311 {strides = array<i32>} : memref<8x128xf32, #tpu.memory_space<vmem>>, vector<1x128xf32>,
    %313 = vector.extract_strided_slice %279 {offsets = [0, 3], sizes = [8, 1], strides = [1, 1]} : vector<8x8xf32> to vector<8x1xf32>
    %314 = vector.shape_cast %313 : vector<8x1xf32> to vector<8x1xf32>
    %315 = vector.broadcast %314 : vector<8x1xf32> to vector<8x128xf32>
    %316 = vector.broadcast %cst : f32 to vector<8x128xf32>
    %317 = arith.select %282, %315, %316 : vector<8x128xi1>, vector<8x128xf32>
    %cst_140 = arith.constant dense<0xFF800000> : vector<128xf32>
    %318 = vector.multi_reduction <maximumf>, %317, %cst_140 [0] : vector<8x128xf32> to vector<128xf32>
    %319 = vector.shape_cast %318 : vector<128xf32> to vector<1x128xf32>
    %c3_141 = arith.constant 3 : index
    %c0_142 = arith.constant 0 : index
    %320 = vector.load %arg5[%c3_141, %c0_142] : memref<8x128xf32, #tpu.memory_space<vmem>>, vector<1x128xf32>
    %321 = arith.maximumf %320, %319 : vector<1x128xf32>
    %c3_143 = arith.constant 3 : index
    %c0_144 = arith.constant 0 : index
    %322 = vector.load %arg5[%c3_143, %c0_144] : memref<8x128xf32, #tpu.memory_space<vmem>>, vector<1x128xf32>
    tpu.vector_store %arg5[%c3_143, %c0_144], %321 {strides = array<i32>} : memref<8x128xf32, #tpu.memory_space<vmem>>, vector<1x128xf32>,
    %323 = vector.extract_strided_slice %279 {offsets = [0, 4], sizes = [8, 1], strides = [1, 1]} : vector<8x8xf32> to vector<8x1xf32>
    %324 = vector.shape_cast %323 : vector<8x1xf32> to vector<8x1xf32>
    %325 = vector.broadcast %324 : vector<8x1xf32> to vector<8x128xf32>
    %326 = vector.broadcast %cst : f32 to vector<8x128xf32>
    %327 = arith.select %282, %325, %326 : vector<8x128xi1>, vector<8x128xf32>
    %cst_145 = arith.constant dense<0xFF800000> : vector<128xf32>
    %328 = vector.multi_reduction <maximumf>, %327, %cst_145 [0] : vector<8x128xf32> to vector<128xf32>
    %329 = vector.shape_cast %328 : vector<128xf32> to vector<1x128xf32>
    %c4_146 = arith.constant 4 : index
    %c0_147 = arith.constant 0 : index
    %330 = vector.load %arg5[%c4_146, %c0_147] : memref<8x128xf32, #tpu.memory_space<vmem>>, vector<1x128xf32>
    %331 = arith.maximumf %330, %329 : vector<1x128xf32>
    %c4_148 = arith.constant 4 : index
    %c0_149 = arith.constant 0 : index
    %332 = vector.load %arg5[%c4_148, %c0_149] : memref<8x128xf32, #tpu.memory_space<vmem>>, vector<1x128xf32>
    tpu.vector_store %arg5[%c4_148, %c0_149], %331 {strides = array<i32>} : memref<8x128xf32, #tpu.memory_space<vmem>>, vector<1x128xf32>,
    %333 = vector.extract_strided_slice %279 {offsets = [0, 5], sizes = [8, 1], strides = [1, 1]} : vector<8x8xf32> to vector<8x1xf32>
    %334 = vector.shape_cast %333 : vector<8x1xf32> to vector<8x1xf32>
    %335 = vector.broadcast %334 : vector<8x1xf32> to vector<8x128xf32>
    %336 = vector.broadcast %cst : f32 to vector<8x128xf32>
    %337 = arith.select %282, %335, %336 : vector<8x128xi1>, vector<8x128xf32>
    %cst_150 = arith.constant dense<0xFF800000> : vector<128xf32>
    %338 = vector.multi_reduction <maximumf>, %337, %cst_150 [0] : vector<8x128xf32> to vector<128xf32>
    %339 = vector.shape_cast %338 : vector<128xf32> to vector<1x128xf32>
    %c5_151 = arith.constant 5 : index
    %c0_152 = arith.constant 0 : index
    %340 = vector.load %arg5[%c5_151, %c0_152] : memref<8x128xf32, #tpu.memory_space<vmem>>, vector<1x128xf32>
    %341 = arith.maximumf %340, %339 : vector<1x128xf32>
    %c5_153 = arith.constant 5 : index
    %c0_154 = arith.constant 0 : index
    %342 = vector.load %arg5[%c5_153, %c0_154] : memref<8x128xf32, #tpu.memory_space<vmem>>, vector<1x128xf32>
    tpu.vector_store %arg5[%c5_153, %c0_154], %341 {strides = array<i32>} : memref<8x128xf32, #tpu.memory_space<vmem>>, vector<1x128xf32>,
    %343 = vector.extract_strided_slice %279 {offsets = [0, 6], sizes = [8, 1], strides = [1, 1]} : vector<8x8xf32> to vector<8x1xf32>
    %344 = vector.shape_cast %343 : vector<8x1xf32> to vector<8x1xf32>
    %345 = vector.broadcast %344 : vector<8x1xf32> to vector<8x128xf32>
    %346 = vector.broadcast %cst : f32 to vector<8x128xf32>
    %347 = arith.select %282, %345, %346 : vector<8x128xi1>, vector<8x128xf32>
    %cst_155 = arith.constant dense<0xFF800000> : vector<128xf32>
    %348 = vector.multi_reduction <maximumf>, %347, %cst_155 [0] : vector<8x128xf32> to vector<128xf32>
    %349 = vector.shape_cast %348 : vector<128xf32> to vector<1x128xf32>
    %c6_156 = arith.constant 6 : index
    %c0_157 = arith.constant 0 : index
    %350 = vector.load %arg5[%c6_156, %c0_157] : memref<8x128xf32, #tpu.memory_space<vmem>>, vector<1x128xf32>
    %351 = arith.maximumf %350, %349 : vector<1x128xf32>
    %c6_158 = arith.constant 6 : index
    %c0_159 = arith.constant 0 : index
    %352 = vector.load %arg5[%c6_158, %c0_159] : memref<8x128xf32, #tpu.memory_space<vmem>>, vector<1x128xf32>
    tpu.vector_store %arg5[%c6_158, %c0_159], %351 {strides = array<i32>} : memref<8x128xf32, #tpu.memory_space<vmem>>, vector<1x128xf32>,
    %353 = vector.extract_strided_slice %279 {offsets = [0, 7], sizes = [8, 1], strides = [1, 1]} : vector<8x8xf32> to vector<8x1xf32>
    %354 = vector.shape_cast %353 : vector<8x1xf32> to vector<8x1xf32>
    %355 = vector.broadcast %354 : vector<8x1xf32> to vector<8x128xf32>
    %356 = vector.broadcast %cst : f32 to vector<8x128xf32>
    %357 = arith.select %282, %355, %356 : vector<8x128xi1>, vector<8x128xf32>
    %cst_160 = arith.constant dense<0xFF800000> : vector<128xf32>
    %358 = vector.multi_reduction <maximumf>, %357, %cst_160 [0] : vector<8x128xf32> to vector<128xf32>
    %359 = vector.shape_cast %358 : vector<128xf32> to vector<1x128xf32>
    %c7_161 = arith.constant 7 : index
    %c0_162 = arith.constant 0 : index
    %360 = vector.load %arg5[%c7_161, %c0_162] : memref<8x128xf32, #tpu.memory_space<vmem>>, vector<1x128xf32>
    %361 = arith.maximumf %360, %359 : vector<1x128xf32>
    %c7_163 = arith.constant 7 : index
    %c0_164 = arith.constant 0 : index
    %362 = vector.load %arg5[%c7_163, %c0_164] : memref<8x128xf32, #tpu.memory_space<vmem>>, vector<1x128xf32>
    tpu.vector_store %arg5[%c7_163, %c0_164], %361 {strides = array<i32>} : memref<8x128xf32, #tpu.memory_space<vmem>>, vector<1x128xf32>,
    %c4_i32 = arith.constant 4 : i32
    %c8_i32_165 = arith.constant 8 : i32
    %363 = arith.muli %c4_i32, %c8_i32_165 : i32
    %364 = tpu.assume_multiple %363, 8 : i32
    %365 = arith.index_cast %364 : i32 to index
    %c0_166 = arith.constant 0 : index
    %366 = vector.load %arg2[%365, %c0_166] : memref<128x1xi32, #tpu.memory_space<vmem>>, vector<8x1xi32>
    %367 = arith.index_cast %364 : i32 to index
    %c0_167 = arith.constant 0 : index
    %368 = vector.load %arg3[%367, %c0_167] : memref<128x8xf32, #tpu.memory_space<vmem>>, vector<8x8xf32>
    %369 = vector.broadcast %366 : vector<8x1xi32> to vector<8x128xi32>
    %370 = vector.broadcast %6 : vector<1x128xi32> to vector<8x128xi32>
    %371 = arith.cmpi eq, %369, %370 : vector<8x128xi32>
    %372 = vector.extract_strided_slice %368 {offsets = [0, 0], sizes = [8, 1], strides = [1, 1]} : vector<8x8xf32> to vector<8x1xf32>
    %373 = vector.shape_cast %372 : vector<8x1xf32> to vector<8x1xf32>
    %374 = vector.broadcast %373 : vector<8x1xf32> to vector<8x128xf32>
    %375 = vector.broadcast %cst : f32 to vector<8x128xf32>
    %376 = arith.select %371, %374, %375 : vector<8x128xi1>, vector<8x128xf32>
    %cst_168 = arith.constant dense<0xFF800000> : vector<128xf32>
    %377 = vector.multi_reduction <maximumf>, %376, %cst_168 [0] : vector<8x128xf32> to vector<128xf32>
    %378 = vector.shape_cast %377 : vector<128xf32> to vector<1x128xf32>
    %c0_169 = arith.constant 0 : index
    %c0_170 = arith.constant 0 : index
    %379 = vector.load %arg5[%c0_169, %c0_170] : memref<8x128xf32, #tpu.memory_space<vmem>>, vector<1x128xf32>
    %380 = arith.maximumf %379, %378 : vector<1x128xf32>
    %c0_171 = arith.constant 0 : index
    %c0_172 = arith.constant 0 : index
    %381 = vector.load %arg5[%c0_171, %c0_172] : memref<8x128xf32, #tpu.memory_space<vmem>>, vector<1x128xf32>
    tpu.vector_store %arg5[%c0_171, %c0_172], %380 {strides = array<i32>} : memref<8x128xf32, #tpu.memory_space<vmem>>, vector<1x128xf32>,
    %382 = vector.extract_strided_slice %368 {offsets = [0, 1], sizes = [8, 1], strides = [1, 1]} : vector<8x8xf32> to vector<8x1xf32>
    %383 = vector.shape_cast %382 : vector<8x1xf32> to vector<8x1xf32>
    %384 = vector.broadcast %383 : vector<8x1xf32> to vector<8x128xf32>
    %385 = vector.broadcast %cst : f32 to vector<8x128xf32>
    %386 = arith.select %371, %384, %385 : vector<8x128xi1>, vector<8x128xf32>
    %cst_173 = arith.constant dense<0xFF800000> : vector<128xf32>
    %387 = vector.multi_reduction <maximumf>, %386, %cst_173 [0] : vector<8x128xf32> to vector<128xf32>
    %388 = vector.shape_cast %387 : vector<128xf32> to vector<1x128xf32>
    %c1_174 = arith.constant 1 : index
    %c0_175 = arith.constant 0 : index
    %389 = vector.load %arg5[%c1_174, %c0_175] : memref<8x128xf32, #tpu.memory_space<vmem>>, vector<1x128xf32>
    %390 = arith.maximumf %389, %388 : vector<1x128xf32>
    %c1_176 = arith.constant 1 : index
    %c0_177 = arith.constant 0 : index
    %391 = vector.load %arg5[%c1_176, %c0_177] : memref<8x128xf32, #tpu.memory_space<vmem>>, vector<1x128xf32>
    tpu.vector_store %arg5[%c1_176, %c0_177], %390 {strides = array<i32>} : memref<8x128xf32, #tpu.memory_space<vmem>>, vector<1x128xf32>,
    %392 = vector.extract_strided_slice %368 {offsets = [0, 2], sizes = [8, 1], strides = [1, 1]} : vector<8x8xf32> to vector<8x1xf32>
    %393 = vector.shape_cast %392 : vector<8x1xf32> to vector<8x1xf32>
    %394 = vector.broadcast %393 : vector<8x1xf32> to vector<8x128xf32>
    %395 = vector.broadcast %cst : f32 to vector<8x128xf32>
    %396 = arith.select %371, %394, %395 : vector<8x128xi1>, vector<8x128xf32>
    %cst_178 = arith.constant dense<0xFF800000> : vector<128xf32>
    %397 = vector.multi_reduction <maximumf>, %396, %cst_178 [0] : vector<8x128xf32> to vector<128xf32>
    %398 = vector.shape_cast %397 : vector<128xf32> to vector<1x128xf32>
    %c2_179 = arith.constant 2 : index
    %c0_180 = arith.constant 0 : index
    %399 = vector.load %arg5[%c2_179, %c0_180] : memref<8x128xf32, #tpu.memory_space<vmem>>, vector<1x128xf32>
    %400 = arith.maximumf %399, %398 : vector<1x128xf32>
    %c2_181 = arith.constant 2 : index
    %c0_182 = arith.constant 0 : index
    %401 = vector.load %arg5[%c2_181, %c0_182] : memref<8x128xf32, #tpu.memory_space<vmem>>, vector<1x128xf32>
    tpu.vector_store %arg5[%c2_181, %c0_182], %400 {strides = array<i32>} : memref<8x128xf32, #tpu.memory_space<vmem>>, vector<1x128xf32>,
    %402 = vector.extract_strided_slice %368 {offsets = [0, 3], sizes = [8, 1], strides = [1, 1]} : vector<8x8xf32> to vector<8x1xf32>
    %403 = vector.shape_cast %402 : vector<8x1xf32> to vector<8x1xf32>
    %404 = vector.broadcast %403 : vector<8x1xf32> to vector<8x128xf32>
    %405 = vector.broadcast %cst : f32 to vector<8x128xf32>
    %406 = arith.select %371, %404, %405 : vector<8x128xi1>, vector<8x128xf32>
    %cst_183 = arith.constant dense<0xFF800000> : vector<128xf32>
    %407 = vector.multi_reduction <maximumf>, %406, %cst_183 [0] : vector<8x128xf32> to vector<128xf32>
    %408 = vector.shape_cast %407 : vector<128xf32> to vector<1x128xf32>
    %c3_184 = arith.constant 3 : index
    %c0_185 = arith.constant 0 : index
    %409 = vector.load %arg5[%c3_184, %c0_185] : memref<8x128xf32, #tpu.memory_space<vmem>>, vector<1x128xf32>
    %410 = arith.maximumf %409, %408 : vector<1x128xf32>
    %c3_186 = arith.constant 3 : index
    %c0_187 = arith.constant 0 : index
    %411 = vector.load %arg5[%c3_186, %c0_187] : memref<8x128xf32, #tpu.memory_space<vmem>>, vector<1x128xf32>
    tpu.vector_store %arg5[%c3_186, %c0_187], %410 {strides = array<i32>} : memref<8x128xf32, #tpu.memory_space<vmem>>, vector<1x128xf32>,
    %412 = vector.extract_strided_slice %368 {offsets = [0, 4], sizes = [8, 1], strides = [1, 1]} : vector<8x8xf32> to vector<8x1xf32>
    %413 = vector.shape_cast %412 : vector<8x1xf32> to vector<8x1xf32>
    %414 = vector.broadcast %413 : vector<8x1xf32> to vector<8x128xf32>
    %415 = vector.broadcast %cst : f32 to vector<8x128xf32>
    %416 = arith.select %371, %414, %415 : vector<8x128xi1>, vector<8x128xf32>
    %cst_188 = arith.constant dense<0xFF800000> : vector<128xf32>
    %417 = vector.multi_reduction <maximumf>, %416, %cst_188 [0] : vector<8x128xf32> to vector<128xf32>
    %418 = vector.shape_cast %417 : vector<128xf32> to vector<1x128xf32>
    %c4_189 = arith.constant 4 : index
    %c0_190 = arith.constant 0 : index
    %419 = vector.load %arg5[%c4_189, %c0_190] : memref<8x128xf32, #tpu.memory_space<vmem>>, vector<1x128xf32>
    %420 = arith.maximumf %419, %418 : vector<1x128xf32>
    %c4_191 = arith.constant 4 : index
    %c0_192 = arith.constant 0 : index
    %421 = vector.load %arg5[%c4_191, %c0_192] : memref<8x128xf32, #tpu.memory_space<vmem>>, vector<1x128xf32>
    tpu.vector_store %arg5[%c4_191, %c0_192], %420 {strides = array<i32>} : memref<8x128xf32, #tpu.memory_space<vmem>>, vector<1x128xf32>,
    %422 = vector.extract_strided_slice %368 {offsets = [0, 5], sizes = [8, 1], strides = [1, 1]} : vector<8x8xf32> to vector<8x1xf32>
    %423 = vector.shape_cast %422 : vector<8x1xf32> to vector<8x1xf32>
    %424 = vector.broadcast %423 : vector<8x1xf32> to vector<8x128xf32>
    %425 = vector.broadcast %cst : f32 to vector<8x128xf32>
    %426 = arith.select %371, %424, %425 : vector<8x128xi1>, vector<8x128xf32>
    %cst_193 = arith.constant dense<0xFF800000> : vector<128xf32>
    %427 = vector.multi_reduction <maximumf>, %426, %cst_193 [0] : vector<8x128xf32> to vector<128xf32>
    %428 = vector.shape_cast %427 : vector<128xf32> to vector<1x128xf32>
    %c5_194 = arith.constant 5 : index
    %c0_195 = arith.constant 0 : index
    %429 = vector.load %arg5[%c5_194, %c0_195] : memref<8x128xf32, #tpu.memory_space<vmem>>, vector<1x128xf32>
    %430 = arith.maximumf %429, %428 : vector<1x128xf32>
    %c5_196 = arith.constant 5 : index
    %c0_197 = arith.constant 0 : index
    %431 = vector.load %arg5[%c5_196, %c0_197] : memref<8x128xf32, #tpu.memory_space<vmem>>, vector<1x128xf32>
    tpu.vector_store %arg5[%c5_196, %c0_197], %430 {strides = array<i32>} : memref<8x128xf32, #tpu.memory_space<vmem>>, vector<1x128xf32>,
    %432 = vector.extract_strided_slice %368 {offsets = [0, 6], sizes = [8, 1], strides = [1, 1]} : vector<8x8xf32> to vector<8x1xf32>
    %433 = vector.shape_cast %432 : vector<8x1xf32> to vector<8x1xf32>
    %434 = vector.broadcast %433 : vector<8x1xf32> to vector<8x128xf32>
    %435 = vector.broadcast %cst : f32 to vector<8x128xf32>
    %436 = arith.select %371, %434, %435 : vector<8x128xi1>, vector<8x128xf32>
    %cst_198 = arith.constant dense<0xFF800000> : vector<128xf32>
    %437 = vector.multi_reduction <maximumf>, %436, %cst_198 [0] : vector<8x128xf32> to vector<128xf32>
    %438 = vector.shape_cast %437 : vector<128xf32> to vector<1x128xf32>
    %c6_199 = arith.constant 6 : index
    %c0_200 = arith.constant 0 : index
    %439 = vector.load %arg5[%c6_199, %c0_200] : memref<8x128xf32, #tpu.memory_space<vmem>>, vector<1x128xf32>
    %440 = arith.maximumf %439, %438 : vector<1x128xf32>
    %c6_201 = arith.constant 6 : index
    %c0_202 = arith.constant 0 : index
    %441 = vector.load %arg5[%c6_201, %c0_202] : memref<8x128xf32, #tpu.memory_space<vmem>>, vector<1x128xf32>
    tpu.vector_store %arg5[%c6_201, %c0_202], %440 {strides = array<i32>} : memref<8x128xf32, #tpu.memory_space<vmem>>, vector<1x128xf32>,
    %442 = vector.extract_strided_slice %368 {offsets = [0, 7], sizes = [8, 1], strides = [1, 1]} : vector<8x8xf32> to vector<8x1xf32>
    %443 = vector.shape_cast %442 : vector<8x1xf32> to vector<8x1xf32>
    %444 = vector.broadcast %443 : vector<8x1xf32> to vector<8x128xf32>
    %445 = vector.broadcast %cst : f32 to vector<8x128xf32>
    %446 = arith.select %371, %444, %445 : vector<8x128xi1>, vector<8x128xf32>
    %cst_203 = arith.constant dense<0xFF800000> : vector<128xf32>
    %447 = vector.multi_reduction <maximumf>, %446, %cst_203 [0] : vector<8x128xf32> to vector<128xf32>
    %448 = vector.shape_cast %447 : vector<128xf32> to vector<1x128xf32>
    %c7_204 = arith.constant 7 : index
    %c0_205 = arith.constant 0 : index
    %449 = vector.load %arg5[%c7_204, %c0_205] : memref<8x128xf32, #tpu.memory_space<vmem>>, vector<1x128xf32>
    %450 = arith.maximumf %449, %448 : vector<1x128xf32>
    %c7_206 = arith.constant 7 : index
    %c0_207 = arith.constant 0 : index
    %451 = vector.load %arg5[%c7_206, %c0_207] : memref<8x128xf32, #tpu.memory_space<vmem>>, vector<1x128xf32>
    tpu.vector_store %arg5[%c7_206, %c0_207], %450 {strides = array<i32>} : memref<8x128xf32, #tpu.memory_space<vmem>>, vector<1x128xf32>,
    %c5_i32 = arith.constant 5 : i32
    %c8_i32_208 = arith.constant 8 : i32
    %452 = arith.muli %c5_i32, %c8_i32_208 : i32
    %453 = tpu.assume_multiple %452, 8 : i32
    %454 = arith.index_cast %453 : i32 to index
    %c0_209 = arith.constant 0 : index
    %455 = vector.load %arg2[%454, %c0_209] : memref<128x1xi32, #tpu.memory_space<vmem>>, vector<8x1xi32>
    %456 = arith.index_cast %453 : i32 to index
    %c0_210 = arith.constant 0 : index
    %457 = vector.load %arg3[%456, %c0_210] : memref<128x8xf32, #tpu.memory_space<vmem>>, vector<8x8xf32>
    %458 = vector.broadcast %455 : vector<8x1xi32> to vector<8x128xi32>
    %459 = vector.broadcast %6 : vector<1x128xi32> to vector<8x128xi32>
    %460 = arith.cmpi eq, %458, %459 : vector<8x128xi32>
    %461 = vector.extract_strided_slice %457 {offsets = [0, 0], sizes = [8, 1], strides = [1, 1]} : vector<8x8xf32> to vector<8x1xf32>
    %462 = vector.shape_cast %461 : vector<8x1xf32> to vector<8x1xf32>
    %463 = vector.broadcast %462 : vector<8x1xf32> to vector<8x128xf32>
    %464 = vector.broadcast %cst : f32 to vector<8x128xf32>
    %465 = arith.select %460, %463, %464 : vector<8x128xi1>, vector<8x128xf32>
    %cst_211 = arith.constant dense<0xFF800000> : vector<128xf32>
    %466 = vector.multi_reduction <maximumf>, %465, %cst_211 [0] : vector<8x128xf32> to vector<128xf32>
    %467 = vector.shape_cast %466 : vector<128xf32> to vector<1x128xf32>
    %c0_212 = arith.constant 0 : index
    %c0_213 = arith.constant 0 : index
    %468 = vector.load %arg5[%c0_212, %c0_213] : memref<8x128xf32, #tpu.memory_space<vmem>>, vector<1x128xf32>
    %469 = arith.maximumf %468, %467 : vector<1x128xf32>
    %c0_214 = arith.constant 0 : index
    %c0_215 = arith.constant 0 : index
    %470 = vector.load %arg5[%c0_214, %c0_215] : memref<8x128xf32, #tpu.memory_space<vmem>>, vector<1x128xf32>
    tpu.vector_store %arg5[%c0_214, %c0_215], %469 {strides = array<i32>} : memref<8x128xf32, #tpu.memory_space<vmem>>, vector<1x128xf32>,
    %471 = vector.extract_strided_slice %457 {offsets = [0, 1], sizes = [8, 1], strides = [1, 1]} : vector<8x8xf32> to vector<8x1xf32>
    %472 = vector.shape_cast %471 : vector<8x1xf32> to vector<8x1xf32>
    %473 = vector.broadcast %472 : vector<8x1xf32> to vector<8x128xf32>
    %474 = vector.broadcast %cst : f32 to vector<8x128xf32>
    %475 = arith.select %460, %473, %474 : vector<8x128xi1>, vector<8x128xf32>
    %cst_216 = arith.constant dense<0xFF800000> : vector<128xf32>
    %476 = vector.multi_reduction <maximumf>, %475, %cst_216 [0] : vector<8x128xf32> to vector<128xf32>
    %477 = vector.shape_cast %476 : vector<128xf32> to vector<1x128xf32>
    %c1_217 = arith.constant 1 : index
    %c0_218 = arith.constant 0 : index
    %478 = vector.load %arg5[%c1_217, %c0_218] : memref<8x128xf32, #tpu.memory_space<vmem>>, vector<1x128xf32>
    %479 = arith.maximumf %478, %477 : vector<1x128xf32>
    %c1_219 = arith.constant 1 : index
    %c0_220 = arith.constant 0 : index
    %480 = vector.load %arg5[%c1_219, %c0_220] : memref<8x128xf32, #tpu.memory_space<vmem>>, vector<1x128xf32>
    tpu.vector_store %arg5[%c1_219, %c0_220], %479 {strides = array<i32>} : memref<8x128xf32, #tpu.memory_space<vmem>>, vector<1x128xf32>,
    %481 = vector.extract_strided_slice %457 {offsets = [0, 2], sizes = [8, 1], strides = [1, 1]} : vector<8x8xf32> to vector<8x1xf32>
    %482 = vector.shape_cast %481 : vector<8x1xf32> to vector<8x1xf32>
    %483 = vector.broadcast %482 : vector<8x1xf32> to vector<8x128xf32>
    %484 = vector.broadcast %cst : f32 to vector<8x128xf32>
    %485 = arith.select %460, %483, %484 : vector<8x128xi1>, vector<8x128xf32>
    %cst_221 = arith.constant dense<0xFF800000> : vector<128xf32>
    %486 = vector.multi_reduction <maximumf>, %485, %cst_221 [0] : vector<8x128xf32> to vector<128xf32>
    %487 = vector.shape_cast %486 : vector<128xf32> to vector<1x128xf32>
    %c2_222 = arith.constant 2 : index
    %c0_223 = arith.constant 0 : index
    %488 = vector.load %arg5[%c2_222, %c0_223] : memref<8x128xf32, #tpu.memory_space<vmem>>, vector<1x128xf32>
    %489 = arith.maximumf %488, %487 : vector<1x128xf32>
    %c2_224 = arith.constant 2 : index
    %c0_225 = arith.constant 0 : index
    %490 = vector.load %arg5[%c2_224, %c0_225] : memref<8x128xf32, #tpu.memory_space<vmem>>, vector<1x128xf32>
    tpu.vector_store %arg5[%c2_224, %c0_225], %489 {strides = array<i32>} : memref<8x128xf32, #tpu.memory_space<vmem>>, vector<1x128xf32>,
    %491 = vector.extract_strided_slice %457 {offsets = [0, 3], sizes = [8, 1], strides = [1, 1]} : vector<8x8xf32> to vector<8x1xf32>
    %492 = vector.shape_cast %491 : vector<8x1xf32> to vector<8x1xf32>
    %493 = vector.broadcast %492 : vector<8x1xf32> to vector<8x128xf32>
    %494 = vector.broadcast %cst : f32 to vector<8x128xf32>
    %495 = arith.select %460, %493, %494 : vector<8x128xi1>, vector<8x128xf32>
    %cst_226 = arith.constant dense<0xFF800000> : vector<128xf32>
    %496 = vector.multi_reduction <maximumf>, %495, %cst_226 [0] : vector<8x128xf32> to vector<128xf32>
    %497 = vector.shape_cast %496 : vector<128xf32> to vector<1x128xf32>
    %c3_227 = arith.constant 3 : index
    %c0_228 = arith.constant 0 : index
    %498 = vector.load %arg5[%c3_227, %c0_228] : memref<8x128xf32, #tpu.memory_space<vmem>>, vector<1x128xf32>
    %499 = arith.maximumf %498, %497 : vector<1x128xf32>
    %c3_229 = arith.constant 3 : index
    %c0_230 = arith.constant 0 : index
    %500 = vector.load %arg5[%c3_229, %c0_230] : memref<8x128xf32, #tpu.memory_space<vmem>>, vector<1x128xf32>
    tpu.vector_store %arg5[%c3_229, %c0_230], %499 {strides = array<i32>} : memref<8x128xf32, #tpu.memory_space<vmem>>, vector<1x128xf32>,
    %501 = vector.extract_strided_slice %457 {offsets = [0, 4], sizes = [8, 1], strides = [1, 1]} : vector<8x8xf32> to vector<8x1xf32>
    %502 = vector.shape_cast %501 : vector<8x1xf32> to vector<8x1xf32>
    %503 = vector.broadcast %502 : vector<8x1xf32> to vector<8x128xf32>
    %504 = vector.broadcast %cst : f32 to vector<8x128xf32>
    %505 = arith.select %460, %503, %504 : vector<8x128xi1>, vector<8x128xf32>
    %cst_231 = arith.constant dense<0xFF800000> : vector<128xf32>
    %506 = vector.multi_reduction <maximumf>, %505, %cst_231 [0] : vector<8x128xf32> to vector<128xf32>
    %507 = vector.shape_cast %506 : vector<128xf32> to vector<1x128xf32>
    %c4_232 = arith.constant 4 : index
    %c0_233 = arith.constant 0 : index
    %508 = vector.load %arg5[%c4_232, %c0_233] : memref<8x128xf32, #tpu.memory_space<vmem>>, vector<1x128xf32>
    %509 = arith.maximumf %508, %507 : vector<1x128xf32>
    %c4_234 = arith.constant 4 : index
    %c0_235 = arith.constant 0 : index
    %510 = vector.load %arg5[%c4_234, %c0_235] : memref<8x128xf32, #tpu.memory_space<vmem>>, vector<1x128xf32>
    tpu.vector_store %arg5[%c4_234, %c0_235], %509 {strides = array<i32>} : memref<8x128xf32, #tpu.memory_space<vmem>>, vector<1x128xf32>,
    %511 = vector.extract_strided_slice %457 {offsets = [0, 5], sizes = [8, 1], strides = [1, 1]} : vector<8x8xf32> to vector<8x1xf32>
    %512 = vector.shape_cast %511 : vector<8x1xf32> to vector<8x1xf32>
    %513 = vector.broadcast %512 : vector<8x1xf32> to vector<8x128xf32>
    %514 = vector.broadcast %cst : f32 to vector<8x128xf32>
    %515 = arith.select %460, %513, %514 : vector<8x128xi1>, vector<8x128xf32>
    %cst_236 = arith.constant dense<0xFF800000> : vector<128xf32>
    %516 = vector.multi_reduction <maximumf>, %515, %cst_236 [0] : vector<8x128xf32> to vector<128xf32>
    %517 = vector.shape_cast %516 : vector<128xf32> to vector<1x128xf32>
    %c5_237 = arith.constant 5 : index
    %c0_238 = arith.constant 0 : index
    %518 = vector.load %arg5[%c5_237, %c0_238] : memref<8x128xf32, #tpu.memory_space<vmem>>, vector<1x128xf32>
    %519 = arith.maximumf %518, %517 : vector<1x128xf32>
    %c5_239 = arith.constant 5 : index
    %c0_240 = arith.constant 0 : index
    %520 = vector.load %arg5[%c5_239, %c0_240] : memref<8x128xf32, #tpu.memory_space<vmem>>, vector<1x128xf32>
    tpu.vector_store %arg5[%c5_239, %c0_240], %519 {strides = array<i32>} : memref<8x128xf32, #tpu.memory_space<vmem>>, vector<1x128xf32>,
    %521 = vector.extract_strided_slice %457 {offsets = [0, 6], sizes = [8, 1], strides = [1, 1]} : vector<8x8xf32> to vector<8x1xf32>
    %522 = vector.shape_cast %521 : vector<8x1xf32> to vector<8x1xf32>
    %523 = vector.broadcast %522 : vector<8x1xf32> to vector<8x128xf32>
    %524 = vector.broadcast %cst : f32 to vector<8x128xf32>
    %525 = arith.select %460, %523, %524 : vector<8x128xi1>, vector<8x128xf32>
    %cst_241 = arith.constant dense<0xFF800000> : vector<128xf32>
    %526 = vector.multi_reduction <maximumf>, %525, %cst_241 [0] : vector<8x128xf32> to vector<128xf32>
    %527 = vector.shape_cast %526 : vector<128xf32> to vector<1x128xf32>
    %c6_242 = arith.constant 6 : index
    %c0_243 = arith.constant 0 : index
    %528 = vector.load %arg5[%c6_242, %c0_243] : memref<8x128xf32, #tpu.memory_space<vmem>>, vector<1x128xf32>
    %529 = arith.maximumf %528, %527 : vector<1x128xf32>
    %c6_244 = arith.constant 6 : index
    %c0_245 = arith.constant 0 : index
    %530 = vector.load %arg5[%c6_244, %c0_245] : memref<8x128xf32, #tpu.memory_space<vmem>>, vector<1x128xf32>
    tpu.vector_store %arg5[%c6_244, %c0_245], %529 {strides = array<i32>} : memref<8x128xf32, #tpu.memory_space<vmem>>, vector<1x128xf32>,
    %531 = vector.extract_strided_slice %457 {offsets = [0, 7], sizes = [8, 1], strides = [1, 1]} : vector<8x8xf32> to vector<8x1xf32>
    %532 = vector.shape_cast %531 : vector<8x1xf32> to vector<8x1xf32>
    %533 = vector.broadcast %532 : vector<8x1xf32> to vector<8x128xf32>
    %534 = vector.broadcast %cst : f32 to vector<8x128xf32>
    %535 = arith.select %460, %533, %534 : vector<8x128xi1>, vector<8x128xf32>
    %cst_246 = arith.constant dense<0xFF800000> : vector<128xf32>
    %536 = vector.multi_reduction <maximumf>, %535, %cst_246 [0] : vector<8x128xf32> to vector<128xf32>
    %537 = vector.shape_cast %536 : vector<128xf32> to vector<1x128xf32>
    %c7_247 = arith.constant 7 : index
    %c0_248 = arith.constant 0 : index
    %538 = vector.load %arg5[%c7_247, %c0_248] : memref<8x128xf32, #tpu.memory_space<vmem>>, vector<1x128xf32>
    %539 = arith.maximumf %538, %537 : vector<1x128xf32>
    %c7_249 = arith.constant 7 : index
    %c0_250 = arith.constant 0 : index
    %540 = vector.load %arg5[%c7_249, %c0_250] : memref<8x128xf32, #tpu.memory_space<vmem>>, vector<1x128xf32>
    tpu.vector_store %arg5[%c7_249, %c0_250], %539 {strides = array<i32>} : memref<8x128xf32, #tpu.memory_space<vmem>>, vector<1x128xf32>,
    %c6_i32 = arith.constant 6 : i32
    %c8_i32_251 = arith.constant 8 : i32
    %541 = arith.muli %c6_i32, %c8_i32_251 : i32
    %542 = tpu.assume_multiple %541, 8 : i32
    %543 = arith.index_cast %542 : i32 to index
    %c0_252 = arith.constant 0 : index
    %544 = vector.load %arg2[%543, %c0_252] : memref<128x1xi32, #tpu.memory_space<vmem>>, vector<8x1xi32>
    %545 = arith.index_cast %542 : i32 to index
    %c0_253 = arith.constant 0 : index
    %546 = vector.load %arg3[%545, %c0_253] : memref<128x8xf32, #tpu.memory_space<vmem>>, vector<8x8xf32>
    %547 = vector.broadcast %544 : vector<8x1xi32> to vector<8x128xi32>
    %548 = vector.broadcast %6 : vector<1x128xi32> to vector<8x128xi32>
    %549 = arith.cmpi eq, %547, %548 : vector<8x128xi32>
    %550 = vector.extract_strided_slice %546 {offsets = [0, 0], sizes = [8, 1], strides = [1, 1]} : vector<8x8xf32> to vector<8x1xf32>
    %551 = vector.shape_cast %550 : vector<8x1xf32> to vector<8x1xf32>
    %552 = vector.broadcast %551 : vector<8x1xf32> to vector<8x128xf32>
    %553 = vector.broadcast %cst : f32 to vector<8x128xf32>
    %554 = arith.select %549, %552, %553 : vector<8x128xi1>, vector<8x128xf32>
    %cst_254 = arith.constant dense<0xFF800000> : vector<128xf32>
    %555 = vector.multi_reduction <maximumf>, %554, %cst_254 [0] : vector<8x128xf32> to vector<128xf32>
    %556 = vector.shape_cast %555 : vector<128xf32> to vector<1x128xf32>
    %c0_255 = arith.constant 0 : index
    %c0_256 = arith.constant 0 : index
    %557 = vector.load %arg5[%c0_255, %c0_256] : memref<8x128xf32, #tpu.memory_space<vmem>>, vector<1x128xf32>
    %558 = arith.maximumf %557, %556 : vector<1x128xf32>
    %c0_257 = arith.constant 0 : index
    %c0_258 = arith.constant 0 : index
    %559 = vector.load %arg5[%c0_257, %c0_258] : memref<8x128xf32, #tpu.memory_space<vmem>>, vector<1x128xf32>
    tpu.vector_store %arg5[%c0_257, %c0_258], %558 {strides = array<i32>} : memref<8x128xf32, #tpu.memory_space<vmem>>, vector<1x128xf32>,
    %560 = vector.extract_strided_slice %546 {offsets = [0, 1], sizes = [8, 1], strides = [1, 1]} : vector<8x8xf32> to vector<8x1xf32>
    %561 = vector.shape_cast %560 : vector<8x1xf32> to vector<8x1xf32>
    %562 = vector.broadcast %561 : vector<8x1xf32> to vector<8x128xf32>
    %563 = vector.broadcast %cst : f32 to vector<8x128xf32>
    %564 = arith.select %549, %562, %563 : vector<8x128xi1>, vector<8x128xf32>
    %cst_259 = arith.constant dense<0xFF800000> : vector<128xf32>
    %565 = vector.multi_reduction <maximumf>, %564, %cst_259 [0] : vector<8x128xf32> to vector<128xf32>
    %566 = vector.shape_cast %565 : vector<128xf32> to vector<1x128xf32>
    %c1_260 = arith.constant 1 : index
    %c0_261 = arith.constant 0 : index
    %567 = vector.load %arg5[%c1_260, %c0_261] : memref<8x128xf32, #tpu.memory_space<vmem>>, vector<1x128xf32>
    %568 = arith.maximumf %567, %566 : vector<1x128xf32>
    %c1_262 = arith.constant 1 : index
    %c0_263 = arith.constant 0 : index
    %569 = vector.load %arg5[%c1_262, %c0_263] : memref<8x128xf32, #tpu.memory_space<vmem>>, vector<1x128xf32>
    tpu.vector_store %arg5[%c1_262, %c0_263], %568 {strides = array<i32>} : memref<8x128xf32, #tpu.memory_space<vmem>>, vector<1x128xf32>,
    %570 = vector.extract_strided_slice %546 {offsets = [0, 2], sizes = [8, 1], strides = [1, 1]} : vector<8x8xf32> to vector<8x1xf32>
    %571 = vector.shape_cast %570 : vector<8x1xf32> to vector<8x1xf32>
    %572 = vector.broadcast %571 : vector<8x1xf32> to vector<8x128xf32>
    %573 = vector.broadcast %cst : f32 to vector<8x128xf32>
    %574 = arith.select %549, %572, %573 : vector<8x128xi1>, vector<8x128xf32>
    %cst_264 = arith.constant dense<0xFF800000> : vector<128xf32>
    %575 = vector.multi_reduction <maximumf>, %574, %cst_264 [0] : vector<8x128xf32> to vector<128xf32>
    %576 = vector.shape_cast %575 : vector<128xf32> to vector<1x128xf32>
    %c2_265 = arith.constant 2 : index
    %c0_266 = arith.constant 0 : index
    %577 = vector.load %arg5[%c2_265, %c0_266] : memref<8x128xf32, #tpu.memory_space<vmem>>, vector<1x128xf32>
    %578 = arith.maximumf %577, %576 : vector<1x128xf32>
    %c2_267 = arith.constant 2 : index
    %c0_268 = arith.constant 0 : index
    %579 = vector.load %arg5[%c2_267, %c0_268] : memref<8x128xf32, #tpu.memory_space<vmem>>, vector<1x128xf32>
    tpu.vector_store %arg5[%c2_267, %c0_268], %578 {strides = array<i32>} : memref<8x128xf32, #tpu.memory_space<vmem>>, vector<1x128xf32>,
    %580 = vector.extract_strided_slice %546 {offsets = [0, 3], sizes = [8, 1], strides = [1, 1]} : vector<8x8xf32> to vector<8x1xf32>
    %581 = vector.shape_cast %580 : vector<8x1xf32> to vector<8x1xf32>
    %582 = vector.broadcast %581 : vector<8x1xf32> to vector<8x128xf32>
    %583 = vector.broadcast %cst : f32 to vector<8x128xf32>
    %584 = arith.select %549, %582, %583 : vector<8x128xi1>, vector<8x128xf32>
    %cst_269 = arith.constant dense<0xFF800000> : vector<128xf32>
    %585 = vector.multi_reduction <maximumf>, %584, %cst_269 [0] : vector<8x128xf32> to vector<128xf32>
    %586 = vector.shape_cast %585 : vector<128xf32> to vector<1x128xf32>
    %c3_270 = arith.constant 3 : index
    %c0_271 = arith.constant 0 : index
    %587 = vector.load %arg5[%c3_270, %c0_271] : memref<8x128xf32, #tpu.memory_space<vmem>>, vector<1x128xf32>
    %588 = arith.maximumf %587, %586 : vector<1x128xf32>
    %c3_272 = arith.constant 3 : index
    %c0_273 = arith.constant 0 : index
    %589 = vector.load %arg5[%c3_272, %c0_273] : memref<8x128xf32, #tpu.memory_space<vmem>>, vector<1x128xf32>
    tpu.vector_store %arg5[%c3_272, %c0_273], %588 {strides = array<i32>} : memref<8x128xf32, #tpu.memory_space<vmem>>, vector<1x128xf32>,
    %590 = vector.extract_strided_slice %546 {offsets = [0, 4], sizes = [8, 1], strides = [1, 1]} : vector<8x8xf32> to vector<8x1xf32>
    %591 = vector.shape_cast %590 : vector<8x1xf32> to vector<8x1xf32>
    %592 = vector.broadcast %591 : vector<8x1xf32> to vector<8x128xf32>
    %593 = vector.broadcast %cst : f32 to vector<8x128xf32>
    %594 = arith.select %549, %592, %593 : vector<8x128xi1>, vector<8x128xf32>
    %cst_274 = arith.constant dense<0xFF800000> : vector<128xf32>
    %595 = vector.multi_reduction <maximumf>, %594, %cst_274 [0] : vector<8x128xf32> to vector<128xf32>
    %596 = vector.shape_cast %595 : vector<128xf32> to vector<1x128xf32>
    %c4_275 = arith.constant 4 : index
    %c0_276 = arith.constant 0 : index
    %597 = vector.load %arg5[%c4_275, %c0_276] : memref<8x128xf32, #tpu.memory_space<vmem>>, vector<1x128xf32>
    %598 = arith.maximumf %597, %596 : vector<1x128xf32>
    %c4_277 = arith.constant 4 : index
    %c0_278 = arith.constant 0 : index
    %599 = vector.load %arg5[%c4_277, %c0_278] : memref<8x128xf32, #tpu.memory_space<vmem>>, vector<1x128xf32>
    tpu.vector_store %arg5[%c4_277, %c0_278], %598 {strides = array<i32>} : memref<8x128xf32, #tpu.memory_space<vmem>>, vector<1x128xf32>,
    %600 = vector.extract_strided_slice %546 {offsets = [0, 5], sizes = [8, 1], strides = [1, 1]} : vector<8x8xf32> to vector<8x1xf32>
    %601 = vector.shape_cast %600 : vector<8x1xf32> to vector<8x1xf32>
    %602 = vector.broadcast %601 : vector<8x1xf32> to vector<8x128xf32>
    %603 = vector.broadcast %cst : f32 to vector<8x128xf32>
    %604 = arith.select %549, %602, %603 : vector<8x128xi1>, vector<8x128xf32>
    %cst_279 = arith.constant dense<0xFF800000> : vector<128xf32>
    %605 = vector.multi_reduction <maximumf>, %604, %cst_279 [0] : vector<8x128xf32> to vector<128xf32>
    %606 = vector.shape_cast %605 : vector<128xf32> to vector<1x128xf32>
    %c5_280 = arith.constant 5 : index
    %c0_281 = arith.constant 0 : index
    %607 = vector.load %arg5[%c5_280, %c0_281] : memref<8x128xf32, #tpu.memory_space<vmem>>, vector<1x128xf32>
    %608 = arith.maximumf %607, %606 : vector<1x128xf32>
    %c5_282 = arith.constant 5 : index
    %c0_283 = arith.constant 0 : index
    %609 = vector.load %arg5[%c5_282, %c0_283] : memref<8x128xf32, #tpu.memory_space<vmem>>, vector<1x128xf32>
    tpu.vector_store %arg5[%c5_282, %c0_283], %608 {strides = array<i32>} : memref<8x128xf32, #tpu.memory_space<vmem>>, vector<1x128xf32>,
    %610 = vector.extract_strided_slice %546 {offsets = [0, 6], sizes = [8, 1], strides = [1, 1]} : vector<8x8xf32> to vector<8x1xf32>
    %611 = vector.shape_cast %610 : vector<8x1xf32> to vector<8x1xf32>
    %612 = vector.broadcast %611 : vector<8x1xf32> to vector<8x128xf32>
    %613 = vector.broadcast %cst : f32 to vector<8x128xf32>
    %614 = arith.select %549, %612, %613 : vector<8x128xi1>, vector<8x128xf32>
    %cst_284 = arith.constant dense<0xFF800000> : vector<128xf32>
    %615 = vector.multi_reduction <maximumf>, %614, %cst_284 [0] : vector<8x128xf32> to vector<128xf32>
    %616 = vector.shape_cast %615 : vector<128xf32> to vector<1x128xf32>
    %c6_285 = arith.constant 6 : index
    %c0_286 = arith.constant 0 : index
    %617 = vector.load %arg5[%c6_285, %c0_286] : memref<8x128xf32, #tpu.memory_space<vmem>>, vector<1x128xf32>
    %618 = arith.maximumf %617, %616 : vector<1x128xf32>
    %c6_287 = arith.constant 6 : index
    %c0_288 = arith.constant 0 : index
    %619 = vector.load %arg5[%c6_287, %c0_288] : memref<8x128xf32, #tpu.memory_space<vmem>>, vector<1x128xf32>
    tpu.vector_store %arg5[%c6_287, %c0_288], %618 {strides = array<i32>} : memref<8x128xf32, #tpu.memory_space<vmem>>, vector<1x128xf32>,
    %620 = vector.extract_strided_slice %546 {offsets = [0, 7], sizes = [8, 1], strides = [1, 1]} : vector<8x8xf32> to vector<8x1xf32>
    %621 = vector.shape_cast %620 : vector<8x1xf32> to vector<8x1xf32>
    %622 = vector.broadcast %621 : vector<8x1xf32> to vector<8x128xf32>
    %623 = vector.broadcast %cst : f32 to vector<8x128xf32>
    %624 = arith.select %549, %622, %623 : vector<8x128xi1>, vector<8x128xf32>
    %cst_289 = arith.constant dense<0xFF800000> : vector<128xf32>
    %625 = vector.multi_reduction <maximumf>, %624, %cst_289 [0] : vector<8x128xf32> to vector<128xf32>
    %626 = vector.shape_cast %625 : vector<128xf32> to vector<1x128xf32>
    %c7_290 = arith.constant 7 : index
    %c0_291 = arith.constant 0 : index
    %627 = vector.load %arg5[%c7_290, %c0_291] : memref<8x128xf32, #tpu.memory_space<vmem>>, vector<1x128xf32>
    %628 = arith.maximumf %627, %626 : vector<1x128xf32>
    %c7_292 = arith.constant 7 : index
    %c0_293 = arith.constant 0 : index
    %629 = vector.load %arg5[%c7_292, %c0_293] : memref<8x128xf32, #tpu.memory_space<vmem>>, vector<1x128xf32>
    tpu.vector_store %arg5[%c7_292, %c0_293], %628 {strides = array<i32>} : memref<8x128xf32, #tpu.memory_space<vmem>>, vector<1x128xf32>,
    %c7_i32 = arith.constant 7 : i32
    %c8_i32_294 = arith.constant 8 : i32
    %630 = arith.muli %c7_i32, %c8_i32_294 : i32
    %631 = tpu.assume_multiple %630, 8 : i32
    %632 = arith.index_cast %631 : i32 to index
    %c0_295 = arith.constant 0 : index
    %633 = vector.load %arg2[%632, %c0_295] : memref<128x1xi32, #tpu.memory_space<vmem>>, vector<8x1xi32>
    %634 = arith.index_cast %631 : i32 to index
    %c0_296 = arith.constant 0 : index
    %635 = vector.load %arg3[%634, %c0_296] : memref<128x8xf32, #tpu.memory_space<vmem>>, vector<8x8xf32>
    %636 = vector.broadcast %633 : vector<8x1xi32> to vector<8x128xi32>
    %637 = vector.broadcast %6 : vector<1x128xi32> to vector<8x128xi32>
    %638 = arith.cmpi eq, %636, %637 : vector<8x128xi32>
    %639 = vector.extract_strided_slice %635 {offsets = [0, 0], sizes = [8, 1], strides = [1, 1]} : vector<8x8xf32> to vector<8x1xf32>
    %640 = vector.shape_cast %639 : vector<8x1xf32> to vector<8x1xf32>
    %641 = vector.broadcast %640 : vector<8x1xf32> to vector<8x128xf32>
    %642 = vector.broadcast %cst : f32 to vector<8x128xf32>
    %643 = arith.select %638, %641, %642 : vector<8x128xi1>, vector<8x128xf32>
    %cst_297 = arith.constant dense<0xFF800000> : vector<128xf32>
    %644 = vector.multi_reduction <maximumf>, %643, %cst_297 [0] : vector<8x128xf32> to vector<128xf32>
    %645 = vector.shape_cast %644 : vector<128xf32> to vector<1x128xf32>
    %c0_298 = arith.constant 0 : index
    %c0_299 = arith.constant 0 : index
    %646 = vector.load %arg5[%c0_298, %c0_299] : memref<8x128xf32, #tpu.memory_space<vmem>>, vector<1x128xf32>
    %647 = arith.maximumf %646, %645 : vector<1x128xf32>
    %c0_300 = arith.constant 0 : index
    %c0_301 = arith.constant 0 : index
    %648 = vector.load %arg5[%c0_300, %c0_301] : memref<8x128xf32, #tpu.memory_space<vmem>>, vector<1x128xf32>
    tpu.vector_store %arg5[%c0_300, %c0_301], %647 {strides = array<i32>} : memref<8x128xf32, #tpu.memory_space<vmem>>, vector<1x128xf32>,
    %649 = vector.extract_strided_slice %635 {offsets = [0, 1], sizes = [8, 1], strides = [1, 1]} : vector<8x8xf32> to vector<8x1xf32>
    %650 = vector.shape_cast %649 : vector<8x1xf32> to vector<8x1xf32>
    %651 = vector.broadcast %650 : vector<8x1xf32> to vector<8x128xf32>
    %652 = vector.broadcast %cst : f32 to vector<8x128xf32>
    %653 = arith.select %638, %651, %652 : vector<8x128xi1>, vector<8x128xf32>
    %cst_302 = arith.constant dense<0xFF800000> : vector<128xf32>
    %654 = vector.multi_reduction <maximumf>, %653, %cst_302 [0] : vector<8x128xf32> to vector<128xf32>
    %655 = vector.shape_cast %654 : vector<128xf32> to vector<1x128xf32>
    %c1_303 = arith.constant 1 : index
    %c0_304 = arith.constant 0 : index
    %656 = vector.load %arg5[%c1_303, %c0_304] : memref<8x128xf32, #tpu.memory_space<vmem>>, vector<1x128xf32>
    %657 = arith.maximumf %656, %655 : vector<1x128xf32>
    %c1_305 = arith.constant 1 : index
    %c0_306 = arith.constant 0 : index
    %658 = vector.load %arg5[%c1_305, %c0_306] : memref<8x128xf32, #tpu.memory_space<vmem>>, vector<1x128xf32>
    tpu.vector_store %arg5[%c1_305, %c0_306], %657 {strides = array<i32>} : memref<8x128xf32, #tpu.memory_space<vmem>>, vector<1x128xf32>,
    %659 = vector.extract_strided_slice %635 {offsets = [0, 2], sizes = [8, 1], strides = [1, 1]} : vector<8x8xf32> to vector<8x1xf32>
    %660 = vector.shape_cast %659 : vector<8x1xf32> to vector<8x1xf32>
    %661 = vector.broadcast %660 : vector<8x1xf32> to vector<8x128xf32>
    %662 = vector.broadcast %cst : f32 to vector<8x128xf32>
    %663 = arith.select %638, %661, %662 : vector<8x128xi1>, vector<8x128xf32>
    %cst_307 = arith.constant dense<0xFF800000> : vector<128xf32>
    %664 = vector.multi_reduction <maximumf>, %663, %cst_307 [0] : vector<8x128xf32> to vector<128xf32>
    %665 = vector.shape_cast %664 : vector<128xf32> to vector<1x128xf32>
    %c2_308 = arith.constant 2 : index
    %c0_309 = arith.constant 0 : index
    %666 = vector.load %arg5[%c2_308, %c0_309] : memref<8x128xf32, #tpu.memory_space<vmem>>, vector<1x128xf32>
    %667 = arith.maximumf %666, %665 : vector<1x128xf32>
    %c2_310 = arith.constant 2 : index
    %c0_311 = arith.constant 0 : index
    %668 = vector.load %arg5[%c2_310, %c0_311] : memref<8x128xf32, #tpu.memory_space<vmem>>, vector<1x128xf32>
    tpu.vector_store %arg5[%c2_310, %c0_311], %667 {strides = array<i32>} : memref<8x128xf32, #tpu.memory_space<vmem>>, vector<1x128xf32>,
    %669 = vector.extract_strided_slice %635 {offsets = [0, 3], sizes = [8, 1], strides = [1, 1]} : vector<8x8xf32> to vector<8x1xf32>
    %670 = vector.shape_cast %669 : vector<8x1xf32> to vector<8x1xf32>
    %671 = vector.broadcast %670 : vector<8x1xf32> to vector<8x128xf32>
    %672 = vector.broadcast %cst : f32 to vector<8x128xf32>
    %673 = arith.select %638, %671, %672 : vector<8x128xi1>, vector<8x128xf32>
    %cst_312 = arith.constant dense<0xFF800000> : vector<128xf32>
    %674 = vector.multi_reduction <maximumf>, %673, %cst_312 [0] : vector<8x128xf32> to vector<128xf32>
    %675 = vector.shape_cast %674 : vector<128xf32> to vector<1x128xf32>
    %c3_313 = arith.constant 3 : index
    %c0_314 = arith.constant 0 : index
    %676 = vector.load %arg5[%c3_313, %c0_314] : memref<8x128xf32, #tpu.memory_space<vmem>>, vector<1x128xf32>
    %677 = arith.maximumf %676, %675 : vector<1x128xf32>
    %c3_315 = arith.constant 3 : index
    %c0_316 = arith.constant 0 : index
    %678 = vector.load %arg5[%c3_315, %c0_316] : memref<8x128xf32, #tpu.memory_space<vmem>>, vector<1x128xf32>
    tpu.vector_store %arg5[%c3_315, %c0_316], %677 {strides = array<i32>} : memref<8x128xf32, #tpu.memory_space<vmem>>, vector<1x128xf32>,
    %679 = vector.extract_strided_slice %635 {offsets = [0, 4], sizes = [8, 1], strides = [1, 1]} : vector<8x8xf32> to vector<8x1xf32>
    %680 = vector.shape_cast %679 : vector<8x1xf32> to vector<8x1xf32>
    %681 = vector.broadcast %680 : vector<8x1xf32> to vector<8x128xf32>
    %682 = vector.broadcast %cst : f32 to vector<8x128xf32>
    %683 = arith.select %638, %681, %682 : vector<8x128xi1>, vector<8x128xf32>
    %cst_317 = arith.constant dense<0xFF800000> : vector<128xf32>
    %684 = vector.multi_reduction <maximumf>, %683, %cst_317 [0] : vector<8x128xf32> to vector<128xf32>
    %685 = vector.shape_cast %684 : vector<128xf32> to vector<1x128xf32>
    %c4_318 = arith.constant 4 : index
    %c0_319 = arith.constant 0 : index
    %686 = vector.load %arg5[%c4_318, %c0_319] : memref<8x128xf32, #tpu.memory_space<vmem>>, vector<1x128xf32>
    %687 = arith.maximumf %686, %685 : vector<1x128xf32>
    %c4_320 = arith.constant 4 : index
    %c0_321 = arith.constant 0 : index
    %688 = vector.load %arg5[%c4_320, %c0_321] : memref<8x128xf32, #tpu.memory_space<vmem>>, vector<1x128xf32>
    tpu.vector_store %arg5[%c4_320, %c0_321], %687 {strides = array<i32>} : memref<8x128xf32, #tpu.memory_space<vmem>>, vector<1x128xf32>,
    %689 = vector.extract_strided_slice %635 {offsets = [0, 5], sizes = [8, 1], strides = [1, 1]} : vector<8x8xf32> to vector<8x1xf32>
    %690 = vector.shape_cast %689 : vector<8x1xf32> to vector<8x1xf32>
    %691 = vector.broadcast %690 : vector<8x1xf32> to vector<8x128xf32>
    %692 = vector.broadcast %cst : f32 to vector<8x128xf32>
    %693 = arith.select %638, %691, %692 : vector<8x128xi1>, vector<8x128xf32>
    %cst_322 = arith.constant dense<0xFF800000> : vector<128xf32>
    %694 = vector.multi_reduction <maximumf>, %693, %cst_322 [0] : vector<8x128xf32> to vector<128xf32>
    %695 = vector.shape_cast %694 : vector<128xf32> to vector<1x128xf32>
    %c5_323 = arith.constant 5 : index
    %c0_324 = arith.constant 0 : index
    %696 = vector.load %arg5[%c5_323, %c0_324] : memref<8x128xf32, #tpu.memory_space<vmem>>, vector<1x128xf32>
    %697 = arith.maximumf %696, %695 : vector<1x128xf32>
    %c5_325 = arith.constant 5 : index
    %c0_326 = arith.constant 0 : index
    %698 = vector.load %arg5[%c5_325, %c0_326] : memref<8x128xf32, #tpu.memory_space<vmem>>, vector<1x128xf32>
    tpu.vector_store %arg5[%c5_325, %c0_326], %697 {strides = array<i32>} : memref<8x128xf32, #tpu.memory_space<vmem>>, vector<1x128xf32>,
    %699 = vector.extract_strided_slice %635 {offsets = [0, 6], sizes = [8, 1], strides = [1, 1]} : vector<8x8xf32> to vector<8x1xf32>
    %700 = vector.shape_cast %699 : vector<8x1xf32> to vector<8x1xf32>
    %701 = vector.broadcast %700 : vector<8x1xf32> to vector<8x128xf32>
    %702 = vector.broadcast %cst : f32 to vector<8x128xf32>
    %703 = arith.select %638, %701, %702 : vector<8x128xi1>, vector<8x128xf32>
    %cst_327 = arith.constant dense<0xFF800000> : vector<128xf32>
    %704 = vector.multi_reduction <maximumf>, %703, %cst_327 [0] : vector<8x128xf32> to vector<128xf32>
    %705 = vector.shape_cast %704 : vector<128xf32> to vector<1x128xf32>
    %c6_328 = arith.constant 6 : index
    %c0_329 = arith.constant 0 : index
    %706 = vector.load %arg5[%c6_328, %c0_329] : memref<8x128xf32, #tpu.memory_space<vmem>>, vector<1x128xf32>
    %707 = arith.maximumf %706, %705 : vector<1x128xf32>
    %c6_330 = arith.constant 6 : index
    %c0_331 = arith.constant 0 : index
    %708 = vector.load %arg5[%c6_330, %c0_331] : memref<8x128xf32, #tpu.memory_space<vmem>>, vector<1x128xf32>
    tpu.vector_store %arg5[%c6_330, %c0_331], %707 {strides = array<i32>} : memref<8x128xf32, #tpu.memory_space<vmem>>, vector<1x128xf32>,
    %709 = vector.extract_strided_slice %635 {offsets = [0, 7], sizes = [8, 1], strides = [1, 1]} : vector<8x8xf32> to vector<8x1xf32>
    %710 = vector.shape_cast %709 : vector<8x1xf32> to vector<8x1xf32>
    %711 = vector.broadcast %710 : vector<8x1xf32> to vector<8x128xf32>
    %712 = vector.broadcast %cst : f32 to vector<8x128xf32>
    %713 = arith.select %638, %711, %712 : vector<8x128xi1>, vector<8x128xf32>
    %cst_332 = arith.constant dense<0xFF800000> : vector<128xf32>
    %714 = vector.multi_reduction <maximumf>, %713, %cst_332 [0] : vector<8x128xf32> to vector<128xf32>
    %715 = vector.shape_cast %714 : vector<128xf32> to vector<1x128xf32>
    %c7_333 = arith.constant 7 : index
    %c0_334 = arith.constant 0 : index
    %716 = vector.load %arg5[%c7_333, %c0_334] : memref<8x128xf32, #tpu.memory_space<vmem>>, vector<1x128xf32>
    %717 = arith.maximumf %716, %715 : vector<1x128xf32>
    %c7_335 = arith.constant 7 : index
    %c0_336 = arith.constant 0 : index
    %718 = vector.load %arg5[%c7_335, %c0_336] : memref<8x128xf32, #tpu.memory_space<vmem>>, vector<1x128xf32>
    tpu.vector_store %arg5[%c7_335, %c0_336], %717 {strides = array<i32>} : memref<8x128xf32, #tpu.memory_space<vmem>>, vector<1x128xf32>,
    %c8_i32_337 = arith.constant 8 : i32
    %c8_i32_338 = arith.constant 8 : i32
    %719 = arith.muli %c8_i32_337, %c8_i32_338 : i32
    %720 = tpu.assume_multiple %719, 8 : i32
    %721 = arith.index_cast %720 : i32 to index
    %c0_339 = arith.constant 0 : index
    %722 = vector.load %arg2[%721, %c0_339] : memref<128x1xi32, #tpu.memory_space<vmem>>, vector<8x1xi32>
    %723 = arith.index_cast %720 : i32 to index
    %c0_340 = arith.constant 0 : index
    %724 = vector.load %arg3[%723, %c0_340] : memref<128x8xf32, #tpu.memory_space<vmem>>, vector<8x8xf32>
    %725 = vector.broadcast %722 : vector<8x1xi32> to vector<8x128xi32>
    %726 = vector.broadcast %6 : vector<1x128xi32> to vector<8x128xi32>
    %727 = arith.cmpi eq, %725, %726 : vector<8x128xi32>
    %728 = vector.extract_strided_slice %724 {offsets = [0, 0], sizes = [8, 1], strides = [1, 1]} : vector<8x8xf32> to vector<8x1xf32>
    %729 = vector.shape_cast %728 : vector<8x1xf32> to vector<8x1xf32>
    %730 = vector.broadcast %729 : vector<8x1xf32> to vector<8x128xf32>
    %731 = vector.broadcast %cst : f32 to vector<8x128xf32>
    %732 = arith.select %727, %730, %731 : vector<8x128xi1>, vector<8x128xf32>
    %cst_341 = arith.constant dense<0xFF800000> : vector<128xf32>
    %733 = vector.multi_reduction <maximumf>, %732, %cst_341 [0] : vector<8x128xf32> to vector<128xf32>
    %734 = vector.shape_cast %733 : vector<128xf32> to vector<1x128xf32>
    %c0_342 = arith.constant 0 : index
    %c0_343 = arith.constant 0 : index
    %735 = vector.load %arg5[%c0_342, %c0_343] : memref<8x128xf32, #tpu.memory_space<vmem>>, vector<1x128xf32>
    %736 = arith.maximumf %735, %734 : vector<1x128xf32>
    %c0_344 = arith.constant 0 : index
    %c0_345 = arith.constant 0 : index
    %737 = vector.load %arg5[%c0_344, %c0_345] : memref<8x128xf32, #tpu.memory_space<vmem>>, vector<1x128xf32>
    tpu.vector_store %arg5[%c0_344, %c0_345], %736 {strides = array<i32>} : memref<8x128xf32, #tpu.memory_space<vmem>>, vector<1x128xf32>,
    %738 = vector.extract_strided_slice %724 {offsets = [0, 1], sizes = [8, 1], strides = [1, 1]} : vector<8x8xf32> to vector<8x1xf32>
    %739 = vector.shape_cast %738 : vector<8x1xf32> to vector<8x1xf32>
    %740 = vector.broadcast %739 : vector<8x1xf32> to vector<8x128xf32>
    %741 = vector.broadcast %cst : f32 to vector<8x128xf32>
    %742 = arith.select %727, %740, %741 : vector<8x128xi1>, vector<8x128xf32>
    %cst_346 = arith.constant dense<0xFF800000> : vector<128xf32>
    %743 = vector.multi_reduction <maximumf>, %742, %cst_346 [0] : vector<8x128xf32> to vector<128xf32>
    %744 = vector.shape_cast %743 : vector<128xf32> to vector<1x128xf32>
    %c1_347 = arith.constant 1 : index
    %c0_348 = arith.constant 0 : index
    %745 = vector.load %arg5[%c1_347, %c0_348] : memref<8x128xf32, #tpu.memory_space<vmem>>, vector<1x128xf32>
    %746 = arith.maximumf %745, %744 : vector<1x128xf32>
    %c1_349 = arith.constant 1 : index
    %c0_350 = arith.constant 0 : index
    %747 = vector.load %arg5[%c1_349, %c0_350] : memref<8x128xf32, #tpu.memory_space<vmem>>, vector<1x128xf32>
    tpu.vector_store %arg5[%c1_349, %c0_350], %746 {strides = array<i32>} : memref<8x128xf32, #tpu.memory_space<vmem>>, vector<1x128xf32>,
    %748 = vector.extract_strided_slice %724 {offsets = [0, 2], sizes = [8, 1], strides = [1, 1]} : vector<8x8xf32> to vector<8x1xf32>
    %749 = vector.shape_cast %748 : vector<8x1xf32> to vector<8x1xf32>
    %750 = vector.broadcast %749 : vector<8x1xf32> to vector<8x128xf32>
    %751 = vector.broadcast %cst : f32 to vector<8x128xf32>
    %752 = arith.select %727, %750, %751 : vector<8x128xi1>, vector<8x128xf32>
    %cst_351 = arith.constant dense<0xFF800000> : vector<128xf32>
    %753 = vector.multi_reduction <maximumf>, %752, %cst_351 [0] : vector<8x128xf32> to vector<128xf32>
    %754 = vector.shape_cast %753 : vector<128xf32> to vector<1x128xf32>
    %c2_352 = arith.constant 2 : index
    %c0_353 = arith.constant 0 : index
    %755 = vector.load %arg5[%c2_352, %c0_353] : memref<8x128xf32, #tpu.memory_space<vmem>>, vector<1x128xf32>
    %756 = arith.maximumf %755, %754 : vector<1x128xf32>
    %c2_354 = arith.constant 2 : index
    %c0_355 = arith.constant 0 : index
    %757 = vector.load %arg5[%c2_354, %c0_355] : memref<8x128xf32, #tpu.memory_space<vmem>>, vector<1x128xf32>
    tpu.vector_store %arg5[%c2_354, %c0_355], %756 {strides = array<i32>} : memref<8x128xf32, #tpu.memory_space<vmem>>, vector<1x128xf32>,
    %758 = vector.extract_strided_slice %724 {offsets = [0, 3], sizes = [8, 1], strides = [1, 1]} : vector<8x8xf32> to vector<8x1xf32>
    %759 = vector.shape_cast %758 : vector<8x1xf32> to vector<8x1xf32>
    %760 = vector.broadcast %759 : vector<8x1xf32> to vector<8x128xf32>
    %761 = vector.broadcast %cst : f32 to vector<8x128xf32>
    %762 = arith.select %727, %760, %761 : vector<8x128xi1>, vector<8x128xf32>
    %cst_356 = arith.constant dense<0xFF800000> : vector<128xf32>
    %763 = vector.multi_reduction <maximumf>, %762, %cst_356 [0] : vector<8x128xf32> to vector<128xf32>
    %764 = vector.shape_cast %763 : vector<128xf32> to vector<1x128xf32>
    %c3_357 = arith.constant 3 : index
    %c0_358 = arith.constant 0 : index
    %765 = vector.load %arg5[%c3_357, %c0_358] : memref<8x128xf32, #tpu.memory_space<vmem>>, vector<1x128xf32>
    %766 = arith.maximumf %765, %764 : vector<1x128xf32>
    %c3_359 = arith.constant 3 : index
    %c0_360 = arith.constant 0 : index
    %767 = vector.load %arg5[%c3_359, %c0_360] : memref<8x128xf32, #tpu.memory_space<vmem>>, vector<1x128xf32>
    tpu.vector_store %arg5[%c3_359, %c0_360], %766 {strides = array<i32>} : memref<8x128xf32, #tpu.memory_space<vmem>>, vector<1x128xf32>,
    %768 = vector.extract_strided_slice %724 {offsets = [0, 4], sizes = [8, 1], strides = [1, 1]} : vector<8x8xf32> to vector<8x1xf32>
    %769 = vector.shape_cast %768 : vector<8x1xf32> to vector<8x1xf32>
    %770 = vector.broadcast %769 : vector<8x1xf32> to vector<8x128xf32>
    %771 = vector.broadcast %cst : f32 to vector<8x128xf32>
    %772 = arith.select %727, %770, %771 : vector<8x128xi1>, vector<8x128xf32>
    %cst_361 = arith.constant dense<0xFF800000> : vector<128xf32>
    %773 = vector.multi_reduction <maximumf>, %772, %cst_361 [0] : vector<8x128xf32> to vector<128xf32>
    %774 = vector.shape_cast %773 : vector<128xf32> to vector<1x128xf32>
    %c4_362 = arith.constant 4 : index
    %c0_363 = arith.constant 0 : index
    %775 = vector.load %arg5[%c4_362, %c0_363] : memref<8x128xf32, #tpu.memory_space<vmem>>, vector<1x128xf32>
    %776 = arith.maximumf %775, %774 : vector<1x128xf32>
    %c4_364 = arith.constant 4 : index
    %c0_365 = arith.constant 0 : index
    %777 = vector.load %arg5[%c4_364, %c0_365] : memref<8x128xf32, #tpu.memory_space<vmem>>, vector<1x128xf32>
    tpu.vector_store %arg5[%c4_364, %c0_365], %776 {strides = array<i32>} : memref<8x128xf32, #tpu.memory_space<vmem>>, vector<1x128xf32>,
    %778 = vector.extract_strided_slice %724 {offsets = [0, 5], sizes = [8, 1], strides = [1, 1]} : vector<8x8xf32> to vector<8x1xf32>
    %779 = vector.shape_cast %778 : vector<8x1xf32> to vector<8x1xf32>
    %780 = vector.broadcast %779 : vector<8x1xf32> to vector<8x128xf32>
    %781 = vector.broadcast %cst : f32 to vector<8x128xf32>
    %782 = arith.select %727, %780, %781 : vector<8x128xi1>, vector<8x128xf32>
    %cst_366 = arith.constant dense<0xFF800000> : vector<128xf32>
    %783 = vector.multi_reduction <maximumf>, %782, %cst_366 [0] : vector<8x128xf32> to vector<128xf32>
    %784 = vector.shape_cast %783 : vector<128xf32> to vector<1x128xf32>
    %c5_367 = arith.constant 5 : index
    %c0_368 = arith.constant 0 : index
    %785 = vector.load %arg5[%c5_367, %c0_368] : memref<8x128xf32, #tpu.memory_space<vmem>>, vector<1x128xf32>
    %786 = arith.maximumf %785, %784 : vector<1x128xf32>
    %c5_369 = arith.constant 5 : index
    %c0_370 = arith.constant 0 : index
    %787 = vector.load %arg5[%c5_369, %c0_370] : memref<8x128xf32, #tpu.memory_space<vmem>>, vector<1x128xf32>
    tpu.vector_store %arg5[%c5_369, %c0_370], %786 {strides = array<i32>} : memref<8x128xf32, #tpu.memory_space<vmem>>, vector<1x128xf32>,
    %788 = vector.extract_strided_slice %724 {offsets = [0, 6], sizes = [8, 1], strides = [1, 1]} : vector<8x8xf32> to vector<8x1xf32>
    %789 = vector.shape_cast %788 : vector<8x1xf32> to vector<8x1xf32>
    %790 = vector.broadcast %789 : vector<8x1xf32> to vector<8x128xf32>
    %791 = vector.broadcast %cst : f32 to vector<8x128xf32>
    %792 = arith.select %727, %790, %791 : vector<8x128xi1>, vector<8x128xf32>
    %cst_371 = arith.constant dense<0xFF800000> : vector<128xf32>
    %793 = vector.multi_reduction <maximumf>, %792, %cst_371 [0] : vector<8x128xf32> to vector<128xf32>
    %794 = vector.shape_cast %793 : vector<128xf32> to vector<1x128xf32>
    %c6_372 = arith.constant 6 : index
    %c0_373 = arith.constant 0 : index
    %795 = vector.load %arg5[%c6_372, %c0_373] : memref<8x128xf32, #tpu.memory_space<vmem>>, vector<1x128xf32>
    %796 = arith.maximumf %795, %794 : vector<1x128xf32>
    %c6_374 = arith.constant 6 : index
    %c0_375 = arith.constant 0 : index
    %797 = vector.load %arg5[%c6_374, %c0_375] : memref<8x128xf32, #tpu.memory_space<vmem>>, vector<1x128xf32>
    tpu.vector_store %arg5[%c6_374, %c0_375], %796 {strides = array<i32>} : memref<8x128xf32, #tpu.memory_space<vmem>>, vector<1x128xf32>,
    %798 = vector.extract_strided_slice %724 {offsets = [0, 7], sizes = [8, 1], strides = [1, 1]} : vector<8x8xf32> to vector<8x1xf32>
    %799 = vector.shape_cast %798 : vector<8x1xf32> to vector<8x1xf32>
    %800 = vector.broadcast %799 : vector<8x1xf32> to vector<8x128xf32>
    %801 = vector.broadcast %cst : f32 to vector<8x128xf32>
    %802 = arith.select %727, %800, %801 : vector<8x128xi1>, vector<8x128xf32>
    %cst_376 = arith.constant dense<0xFF800000> : vector<128xf32>
    %803 = vector.multi_reduction <maximumf>, %802, %cst_376 [0] : vector<8x128xf32> to vector<128xf32>
    %804 = vector.shape_cast %803 : vector<128xf32> to vector<1x128xf32>
    %c7_377 = arith.constant 7 : index
    %c0_378 = arith.constant 0 : index
    %805 = vector.load %arg5[%c7_377, %c0_378] : memref<8x128xf32, #tpu.memory_space<vmem>>, vector<1x128xf32>
    %806 = arith.maximumf %805, %804 : vector<1x128xf32>
    %c7_379 = arith.constant 7 : index
    %c0_380 = arith.constant 0 : index
    %807 = vector.load %arg5[%c7_379, %c0_380] : memref<8x128xf32, #tpu.memory_space<vmem>>, vector<1x128xf32>
    tpu.vector_store %arg5[%c7_379, %c0_380], %806 {strides = array<i32>} : memref<8x128xf32, #tpu.memory_space<vmem>>, vector<1x128xf32>,
    %c9_i32 = arith.constant 9 : i32
    %c8_i32_381 = arith.constant 8 : i32
    %808 = arith.muli %c9_i32, %c8_i32_381 : i32
    %809 = tpu.assume_multiple %808, 8 : i32
    %810 = arith.index_cast %809 : i32 to index
    %c0_382 = arith.constant 0 : index
    %811 = vector.load %arg2[%810, %c0_382] : memref<128x1xi32, #tpu.memory_space<vmem>>, vector<8x1xi32>
    %812 = arith.index_cast %809 : i32 to index
    %c0_383 = arith.constant 0 : index
    %813 = vector.load %arg3[%812, %c0_383] : memref<128x8xf32, #tpu.memory_space<vmem>>, vector<8x8xf32>
    %814 = vector.broadcast %811 : vector<8x1xi32> to vector<8x128xi32>
    %815 = vector.broadcast %6 : vector<1x128xi32> to vector<8x128xi32>
    %816 = arith.cmpi eq, %814, %815 : vector<8x128xi32>
    %817 = vector.extract_strided_slice %813 {offsets = [0, 0], sizes = [8, 1], strides = [1, 1]} : vector<8x8xf32> to vector<8x1xf32>
    %818 = vector.shape_cast %817 : vector<8x1xf32> to vector<8x1xf32>
    %819 = vector.broadcast %818 : vector<8x1xf32> to vector<8x128xf32>
    %820 = vector.broadcast %cst : f32 to vector<8x128xf32>
    %821 = arith.select %816, %819, %820 : vector<8x128xi1>, vector<8x128xf32>
    %cst_384 = arith.constant dense<0xFF800000> : vector<128xf32>
    %822 = vector.multi_reduction <maximumf>, %821, %cst_384 [0] : vector<8x128xf32> to vector<128xf32>
    %823 = vector.shape_cast %822 : vector<128xf32> to vector<1x128xf32>
    %c0_385 = arith.constant 0 : index
    %c0_386 = arith.constant 0 : index
    %824 = vector.load %arg5[%c0_385, %c0_386] : memref<8x128xf32, #tpu.memory_space<vmem>>, vector<1x128xf32>
    %825 = arith.maximumf %824, %823 : vector<1x128xf32>
    %c0_387 = arith.constant 0 : index
    %c0_388 = arith.constant 0 : index
    %826 = vector.load %arg5[%c0_387, %c0_388] : memref<8x128xf32, #tpu.memory_space<vmem>>, vector<1x128xf32>
    tpu.vector_store %arg5[%c0_387, %c0_388], %825 {strides = array<i32>} : memref<8x128xf32, #tpu.memory_space<vmem>>, vector<1x128xf32>,
    %827 = vector.extract_strided_slice %813 {offsets = [0, 1], sizes = [8, 1], strides = [1, 1]} : vector<8x8xf32> to vector<8x1xf32>
    %828 = vector.shape_cast %827 : vector<8x1xf32> to vector<8x1xf32>
    %829 = vector.broadcast %828 : vector<8x1xf32> to vector<8x128xf32>
    %830 = vector.broadcast %cst : f32 to vector<8x128xf32>
    %831 = arith.select %816, %829, %830 : vector<8x128xi1>, vector<8x128xf32>
    %cst_389 = arith.constant dense<0xFF800000> : vector<128xf32>
    %832 = vector.multi_reduction <maximumf>, %831, %cst_389 [0] : vector<8x128xf32> to vector<128xf32>
    %833 = vector.shape_cast %832 : vector<128xf32> to vector<1x128xf32>
    %c1_390 = arith.constant 1 : index
    %c0_391 = arith.constant 0 : index
    %834 = vector.load %arg5[%c1_390, %c0_391] : memref<8x128xf32, #tpu.memory_space<vmem>>, vector<1x128xf32>
    %835 = arith.maximumf %834, %833 : vector<1x128xf32>
    %c1_392 = arith.constant 1 : index
    %c0_393 = arith.constant 0 : index
    %836 = vector.load %arg5[%c1_392, %c0_393] : memref<8x128xf32, #tpu.memory_space<vmem>>, vector<1x128xf32>
    tpu.vector_store %arg5[%c1_392, %c0_393], %835 {strides = array<i32>} : memref<8x128xf32, #tpu.memory_space<vmem>>, vector<1x128xf32>,
    %837 = vector.extract_strided_slice %813 {offsets = [0, 2], sizes = [8, 1], strides = [1, 1]} : vector<8x8xf32> to vector<8x1xf32>
    %838 = vector.shape_cast %837 : vector<8x1xf32> to vector<8x1xf32>
    %839 = vector.broadcast %838 : vector<8x1xf32> to vector<8x128xf32>
    %840 = vector.broadcast %cst : f32 to vector<8x128xf32>
    %841 = arith.select %816, %839, %840 : vector<8x128xi1>, vector<8x128xf32>
    %cst_394 = arith.constant dense<0xFF800000> : vector<128xf32>
    %842 = vector.multi_reduction <maximumf>, %841, %cst_394 [0] : vector<8x128xf32> to vector<128xf32>
    %843 = vector.shape_cast %842 : vector<128xf32> to vector<1x128xf32>
    %c2_395 = arith.constant 2 : index
    %c0_396 = arith.constant 0 : index
    %844 = vector.load %arg5[%c2_395, %c0_396] : memref<8x128xf32, #tpu.memory_space<vmem>>, vector<1x128xf32>
    %845 = arith.maximumf %844, %843 : vector<1x128xf32>
    %c2_397 = arith.constant 2 : index
    %c0_398 = arith.constant 0 : index
    %846 = vector.load %arg5[%c2_397, %c0_398] : memref<8x128xf32, #tpu.memory_space<vmem>>, vector<1x128xf32>
    tpu.vector_store %arg5[%c2_397, %c0_398], %845 {strides = array<i32>} : memref<8x128xf32, #tpu.memory_space<vmem>>, vector<1x128xf32>,
    %847 = vector.extract_strided_slice %813 {offsets = [0, 3], sizes = [8, 1], strides = [1, 1]} : vector<8x8xf32> to vector<8x1xf32>
    %848 = vector.shape_cast %847 : vector<8x1xf32> to vector<8x1xf32>
    %849 = vector.broadcast %848 : vector<8x1xf32> to vector<8x128xf32>
    %850 = vector.broadcast %cst : f32 to vector<8x128xf32>
    %851 = arith.select %816, %849, %850 : vector<8x128xi1>, vector<8x128xf32>
    %cst_399 = arith.constant dense<0xFF800000> : vector<128xf32>
    %852 = vector.multi_reduction <maximumf>, %851, %cst_399 [0] : vector<8x128xf32> to vector<128xf32>
    %853 = vector.shape_cast %852 : vector<128xf32> to vector<1x128xf32>
    %c3_400 = arith.constant 3 : index
    %c0_401 = arith.constant 0 : index
    %854 = vector.load %arg5[%c3_400, %c0_401] : memref<8x128xf32, #tpu.memory_space<vmem>>, vector<1x128xf32>
    %855 = arith.maximumf %854, %853 : vector<1x128xf32>
    %c3_402 = arith.constant 3 : index
    %c0_403 = arith.constant 0 : index
    %856 = vector.load %arg5[%c3_402, %c0_403] : memref<8x128xf32, #tpu.memory_space<vmem>>, vector<1x128xf32>
    tpu.vector_store %arg5[%c3_402, %c0_403], %855 {strides = array<i32>} : memref<8x128xf32, #tpu.memory_space<vmem>>, vector<1x128xf32>,
    %857 = vector.extract_strided_slice %813 {offsets = [0, 4], sizes = [8, 1], strides = [1, 1]} : vector<8x8xf32> to vector<8x1xf32>
    %858 = vector.shape_cast %857 : vector<8x1xf32> to vector<8x1xf32>
    %859 = vector.broadcast %858 : vector<8x1xf32> to vector<8x128xf32>
    %860 = vector.broadcast %cst : f32 to vector<8x128xf32>
    %861 = arith.select %816, %859, %860 : vector<8x128xi1>, vector<8x128xf32>
    %cst_404 = arith.constant dense<0xFF800000> : vector<128xf32>
    %862 = vector.multi_reduction <maximumf>, %861, %cst_404 [0] : vector<8x128xf32> to vector<128xf32>
    %863 = vector.shape_cast %862 : vector<128xf32> to vector<1x128xf32>
    %c4_405 = arith.constant 4 : index
    %c0_406 = arith.constant 0 : index
    %864 = vector.load %arg5[%c4_405, %c0_406] : memref<8x128xf32, #tpu.memory_space<vmem>>, vector<1x128xf32>
    %865 = arith.maximumf %864, %863 : vector<1x128xf32>
    %c4_407 = arith.constant 4 : index
    %c0_408 = arith.constant 0 : index
    %866 = vector.load %arg5[%c4_407, %c0_408] : memref<8x128xf32, #tpu.memory_space<vmem>>, vector<1x128xf32>
    tpu.vector_store %arg5[%c4_407, %c0_408], %865 {strides = array<i32>} : memref<8x128xf32, #tpu.memory_space<vmem>>, vector<1x128xf32>,
    %867 = vector.extract_strided_slice %813 {offsets = [0, 5], sizes = [8, 1], strides = [1, 1]} : vector<8x8xf32> to vector<8x1xf32>
    %868 = vector.shape_cast %867 : vector<8x1xf32> to vector<8x1xf32>
    %869 = vector.broadcast %868 : vector<8x1xf32> to vector<8x128xf32>
    %870 = vector.broadcast %cst : f32 to vector<8x128xf32>
    %871 = arith.select %816, %869, %870 : vector<8x128xi1>, vector<8x128xf32>
    %cst_409 = arith.constant dense<0xFF800000> : vector<128xf32>
    %872 = vector.multi_reduction <maximumf>, %871, %cst_409 [0] : vector<8x128xf32> to vector<128xf32>
    %873 = vector.shape_cast %872 : vector<128xf32> to vector<1x128xf32>
    %c5_410 = arith.constant 5 : index
    %c0_411 = arith.constant 0 : index
    %874 = vector.load %arg5[%c5_410, %c0_411] : memref<8x128xf32, #tpu.memory_space<vmem>>, vector<1x128xf32>
    %875 = arith.maximumf %874, %873 : vector<1x128xf32>
    %c5_412 = arith.constant 5 : index
    %c0_413 = arith.constant 0 : index
    %876 = vector.load %arg5[%c5_412, %c0_413] : memref<8x128xf32, #tpu.memory_space<vmem>>, vector<1x128xf32>
    tpu.vector_store %arg5[%c5_412, %c0_413], %875 {strides = array<i32>} : memref<8x128xf32, #tpu.memory_space<vmem>>, vector<1x128xf32>,
    %877 = vector.extract_strided_slice %813 {offsets = [0, 6], sizes = [8, 1], strides = [1, 1]} : vector<8x8xf32> to vector<8x1xf32>
    %878 = vector.shape_cast %877 : vector<8x1xf32> to vector<8x1xf32>
    %879 = vector.broadcast %878 : vector<8x1xf32> to vector<8x128xf32>
    %880 = vector.broadcast %cst : f32 to vector<8x128xf32>
    %881 = arith.select %816, %879, %880 : vector<8x128xi1>, vector<8x128xf32>
    %cst_414 = arith.constant dense<0xFF800000> : vector<128xf32>
    %882 = vector.multi_reduction <maximumf>, %881, %cst_414 [0] : vector<8x128xf32> to vector<128xf32>
    %883 = vector.shape_cast %882 : vector<128xf32> to vector<1x128xf32>
    %c6_415 = arith.constant 6 : index
    %c0_416 = arith.constant 0 : index
    %884 = vector.load %arg5[%c6_415, %c0_416] : memref<8x128xf32, #tpu.memory_space<vmem>>, vector<1x128xf32>
    %885 = arith.maximumf %884, %883 : vector<1x128xf32>
    %c6_417 = arith.constant 6 : index
    %c0_418 = arith.constant 0 : index
    %886 = vector.load %arg5[%c6_417, %c0_418] : memref<8x128xf32, #tpu.memory_space<vmem>>, vector<1x128xf32>
    tpu.vector_store %arg5[%c6_417, %c0_418], %885 {strides = array<i32>} : memref<8x128xf32, #tpu.memory_space<vmem>>, vector<1x128xf32>,
    %887 = vector.extract_strided_slice %813 {offsets = [0, 7], sizes = [8, 1], strides = [1, 1]} : vector<8x8xf32> to vector<8x1xf32>
    %888 = vector.shape_cast %887 : vector<8x1xf32> to vector<8x1xf32>
    %889 = vector.broadcast %888 : vector<8x1xf32> to vector<8x128xf32>
    %890 = vector.broadcast %cst : f32 to vector<8x128xf32>
    %891 = arith.select %816, %889, %890 : vector<8x128xi1>, vector<8x128xf32>
    %cst_419 = arith.constant dense<0xFF800000> : vector<128xf32>
    %892 = vector.multi_reduction <maximumf>, %891, %cst_419 [0] : vector<8x128xf32> to vector<128xf32>
    %893 = vector.shape_cast %892 : vector<128xf32> to vector<1x128xf32>
    %c7_420 = arith.constant 7 : index
    %c0_421 = arith.constant 0 : index
    %894 = vector.load %arg5[%c7_420, %c0_421] : memref<8x128xf32, #tpu.memory_space<vmem>>, vector<1x128xf32>
    %895 = arith.maximumf %894, %893 : vector<1x128xf32>
    %c7_422 = arith.constant 7 : index
    %c0_423 = arith.constant 0 : index
    %896 = vector.load %arg5[%c7_422, %c0_423] : memref<8x128xf32, #tpu.memory_space<vmem>>, vector<1x128xf32>
    tpu.vector_store %arg5[%c7_422, %c0_423], %895 {strides = array<i32>} : memref<8x128xf32, #tpu.memory_space<vmem>>, vector<1x128xf32>,
    %c10_i32 = arith.constant 10 : i32
    %c8_i32_424 = arith.constant 8 : i32
    %897 = arith.muli %c10_i32, %c8_i32_424 : i32
    %898 = tpu.assume_multiple %897, 8 : i32
    %899 = arith.index_cast %898 : i32 to index
    %c0_425 = arith.constant 0 : index
    %900 = vector.load %arg2[%899, %c0_425] : memref<128x1xi32, #tpu.memory_space<vmem>>, vector<8x1xi32>
    %901 = arith.index_cast %898 : i32 to index
    %c0_426 = arith.constant 0 : index
    %902 = vector.load %arg3[%901, %c0_426] : memref<128x8xf32, #tpu.memory_space<vmem>>, vector<8x8xf32>
    %903 = vector.broadcast %900 : vector<8x1xi32> to vector<8x128xi32>
    %904 = vector.broadcast %6 : vector<1x128xi32> to vector<8x128xi32>
    %905 = arith.cmpi eq, %903, %904 : vector<8x128xi32>
    %906 = vector.extract_strided_slice %902 {offsets = [0, 0], sizes = [8, 1], strides = [1, 1]} : vector<8x8xf32> to vector<8x1xf32>
    %907 = vector.shape_cast %906 : vector<8x1xf32> to vector<8x1xf32>
    %908 = vector.broadcast %907 : vector<8x1xf32> to vector<8x128xf32>
    %909 = vector.broadcast %cst : f32 to vector<8x128xf32>
    %910 = arith.select %905, %908, %909 : vector<8x128xi1>, vector<8x128xf32>
    %cst_427 = arith.constant dense<0xFF800000> : vector<128xf32>
    %911 = vector.multi_reduction <maximumf>, %910, %cst_427 [0] : vector<8x128xf32> to vector<128xf32>
    %912 = vector.shape_cast %911 : vector<128xf32> to vector<1x128xf32>
    %c0_428 = arith.constant 0 : index
    %c0_429 = arith.constant 0 : index
    %913 = vector.load %arg5[%c0_428, %c0_429] : memref<8x128xf32, #tpu.memory_space<vmem>>, vector<1x128xf32>
    %914 = arith.maximumf %913, %912 : vector<1x128xf32>
    %c0_430 = arith.constant 0 : index
    %c0_431 = arith.constant 0 : index
    %915 = vector.load %arg5[%c0_430, %c0_431] : memref<8x128xf32, #tpu.memory_space<vmem>>, vector<1x128xf32>
    tpu.vector_store %arg5[%c0_430, %c0_431], %914 {strides = array<i32>} : memref<8x128xf32, #tpu.memory_space<vmem>>, vector<1x128xf32>,
    %916 = vector.extract_strided_slice %902 {offsets = [0, 1], sizes = [8, 1], strides = [1, 1]} : vector<8x8xf32> to vector<8x1xf32>
    %917 = vector.shape_cast %916 : vector<8x1xf32> to vector<8x1xf32>
    %918 = vector.broadcast %917 : vector<8x1xf32> to vector<8x128xf32>
    %919 = vector.broadcast %cst : f32 to vector<8x128xf32>
    %920 = arith.select %905, %918, %919 : vector<8x128xi1>, vector<8x128xf32>
    %cst_432 = arith.constant dense<0xFF800000> : vector<128xf32>
    %921 = vector.multi_reduction <maximumf>, %920, %cst_432 [0] : vector<8x128xf32> to vector<128xf32>
    %922 = vector.shape_cast %921 : vector<128xf32> to vector<1x128xf32>
    %c1_433 = arith.constant 1 : index
    %c0_434 = arith.constant 0 : index
    %923 = vector.load %arg5[%c1_433, %c0_434] : memref<8x128xf32, #tpu.memory_space<vmem>>, vector<1x128xf32>
    %924 = arith.maximumf %923, %922 : vector<1x128xf32>
    %c1_435 = arith.constant 1 : index
    %c0_436 = arith.constant 0 : index
    %925 = vector.load %arg5[%c1_435, %c0_436] : memref<8x128xf32, #tpu.memory_space<vmem>>, vector<1x128xf32>
    tpu.vector_store %arg5[%c1_435, %c0_436], %924 {strides = array<i32>} : memref<8x128xf32, #tpu.memory_space<vmem>>, vector<1x128xf32>,
    %926 = vector.extract_strided_slice %902 {offsets = [0, 2], sizes = [8, 1], strides = [1, 1]} : vector<8x8xf32> to vector<8x1xf32>
    %927 = vector.shape_cast %926 : vector<8x1xf32> to vector<8x1xf32>
    %928 = vector.broadcast %927 : vector<8x1xf32> to vector<8x128xf32>
    %929 = vector.broadcast %cst : f32 to vector<8x128xf32>
    %930 = arith.select %905, %928, %929 : vector<8x128xi1>, vector<8x128xf32>
    %cst_437 = arith.constant dense<0xFF800000> : vector<128xf32>
    %931 = vector.multi_reduction <maximumf>, %930, %cst_437 [0] : vector<8x128xf32> to vector<128xf32>
    %932 = vector.shape_cast %931 : vector<128xf32> to vector<1x128xf32>
    %c2_438 = arith.constant 2 : index
    %c0_439 = arith.constant 0 : index
    %933 = vector.load %arg5[%c2_438, %c0_439] : memref<8x128xf32, #tpu.memory_space<vmem>>, vector<1x128xf32>
    %934 = arith.maximumf %933, %932 : vector<1x128xf32>
    %c2_440 = arith.constant 2 : index
    %c0_441 = arith.constant 0 : index
    %935 = vector.load %arg5[%c2_440, %c0_441] : memref<8x128xf32, #tpu.memory_space<vmem>>, vector<1x128xf32>
    tpu.vector_store %arg5[%c2_440, %c0_441], %934 {strides = array<i32>} : memref<8x128xf32, #tpu.memory_space<vmem>>, vector<1x128xf32>,
    %936 = vector.extract_strided_slice %902 {offsets = [0, 3], sizes = [8, 1], strides = [1, 1]} : vector<8x8xf32> to vector<8x1xf32>
    %937 = vector.shape_cast %936 : vector<8x1xf32> to vector<8x1xf32>
    %938 = vector.broadcast %937 : vector<8x1xf32> to vector<8x128xf32>
    %939 = vector.broadcast %cst : f32 to vector<8x128xf32>
    %940 = arith.select %905, %938, %939 : vector<8x128xi1>, vector<8x128xf32>
    %cst_442 = arith.constant dense<0xFF800000> : vector<128xf32>
    %941 = vector.multi_reduction <maximumf>, %940, %cst_442 [0] : vector<8x128xf32> to vector<128xf32>
    %942 = vector.shape_cast %941 : vector<128xf32> to vector<1x128xf32>
    %c3_443 = arith.constant 3 : index
    %c0_444 = arith.constant 0 : index
    %943 = vector.load %arg5[%c3_443, %c0_444] : memref<8x128xf32, #tpu.memory_space<vmem>>, vector<1x128xf32>
    %944 = arith.maximumf %943, %942 : vector<1x128xf32>
    %c3_445 = arith.constant 3 : index
    %c0_446 = arith.constant 0 : index
    %945 = vector.load %arg5[%c3_445, %c0_446] : memref<8x128xf32, #tpu.memory_space<vmem>>, vector<1x128xf32>
    tpu.vector_store %arg5[%c3_445, %c0_446], %944 {strides = array<i32>} : memref<8x128xf32, #tpu.memory_space<vmem>>, vector<1x128xf32>,
    %946 = vector.extract_strided_slice %902 {offsets = [0, 4], sizes = [8, 1], strides = [1, 1]} : vector<8x8xf32> to vector<8x1xf32>
    %947 = vector.shape_cast %946 : vector<8x1xf32> to vector<8x1xf32>
    %948 = vector.broadcast %947 : vector<8x1xf32> to vector<8x128xf32>
    %949 = vector.broadcast %cst : f32 to vector<8x128xf32>
    %950 = arith.select %905, %948, %949 : vector<8x128xi1>, vector<8x128xf32>
    %cst_447 = arith.constant dense<0xFF800000> : vector<128xf32>
    %951 = vector.multi_reduction <maximumf>, %950, %cst_447 [0] : vector<8x128xf32> to vector<128xf32>
    %952 = vector.shape_cast %951 : vector<128xf32> to vector<1x128xf32>
    %c4_448 = arith.constant 4 : index
    %c0_449 = arith.constant 0 : index
    %953 = vector.load %arg5[%c4_448, %c0_449] : memref<8x128xf32, #tpu.memory_space<vmem>>, vector<1x128xf32>
    %954 = arith.maximumf %953, %952 : vector<1x128xf32>
    %c4_450 = arith.constant 4 : index
    %c0_451 = arith.constant 0 : index
    %955 = vector.load %arg5[%c4_450, %c0_451] : memref<8x128xf32, #tpu.memory_space<vmem>>, vector<1x128xf32>
    tpu.vector_store %arg5[%c4_450, %c0_451], %954 {strides = array<i32>} : memref<8x128xf32, #tpu.memory_space<vmem>>, vector<1x128xf32>,
    %956 = vector.extract_strided_slice %902 {offsets = [0, 5], sizes = [8, 1], strides = [1, 1]} : vector<8x8xf32> to vector<8x1xf32>
    %957 = vector.shape_cast %956 : vector<8x1xf32> to vector<8x1xf32>
    %958 = vector.broadcast %957 : vector<8x1xf32> to vector<8x128xf32>
    %959 = vector.broadcast %cst : f32 to vector<8x128xf32>
    %960 = arith.select %905, %958, %959 : vector<8x128xi1>, vector<8x128xf32>
    %cst_452 = arith.constant dense<0xFF800000> : vector<128xf32>
    %961 = vector.multi_reduction <maximumf>, %960, %cst_452 [0] : vector<8x128xf32> to vector<128xf32>
    %962 = vector.shape_cast %961 : vector<128xf32> to vector<1x128xf32>
    %c5_453 = arith.constant 5 : index
    %c0_454 = arith.constant 0 : index
    %963 = vector.load %arg5[%c5_453, %c0_454] : memref<8x128xf32, #tpu.memory_space<vmem>>, vector<1x128xf32>
    %964 = arith.maximumf %963, %962 : vector<1x128xf32>
    %c5_455 = arith.constant 5 : index
    %c0_456 = arith.constant 0 : index
    %965 = vector.load %arg5[%c5_455, %c0_456] : memref<8x128xf32, #tpu.memory_space<vmem>>, vector<1x128xf32>
    tpu.vector_store %arg5[%c5_455, %c0_456], %964 {strides = array<i32>} : memref<8x128xf32, #tpu.memory_space<vmem>>, vector<1x128xf32>,
    %966 = vector.extract_strided_slice %902 {offsets = [0, 6], sizes = [8, 1], strides = [1, 1]} : vector<8x8xf32> to vector<8x1xf32>
    %967 = vector.shape_cast %966 : vector<8x1xf32> to vector<8x1xf32>
    %968 = vector.broadcast %967 : vector<8x1xf32> to vector<8x128xf32>
    %969 = vector.broadcast %cst : f32 to vector<8x128xf32>
    %970 = arith.select %905, %968, %969 : vector<8x128xi1>, vector<8x128xf32>
    %cst_457 = arith.constant dense<0xFF800000> : vector<128xf32>
    %971 = vector.multi_reduction <maximumf>, %970, %cst_457 [0] : vector<8x128xf32> to vector<128xf32>
    %972 = vector.shape_cast %971 : vector<128xf32> to vector<1x128xf32>
    %c6_458 = arith.constant 6 : index
    %c0_459 = arith.constant 0 : index
    %973 = vector.load %arg5[%c6_458, %c0_459] : memref<8x128xf32, #tpu.memory_space<vmem>>, vector<1x128xf32>
    %974 = arith.maximumf %973, %972 : vector<1x128xf32>
    %c6_460 = arith.constant 6 : index
    %c0_461 = arith.constant 0 : index
    %975 = vector.load %arg5[%c6_460, %c0_461] : memref<8x128xf32, #tpu.memory_space<vmem>>, vector<1x128xf32>
    tpu.vector_store %arg5[%c6_460, %c0_461], %974 {strides = array<i32>} : memref<8x128xf32, #tpu.memory_space<vmem>>, vector<1x128xf32>,
    %976 = vector.extract_strided_slice %902 {offsets = [0, 7], sizes = [8, 1], strides = [1, 1]} : vector<8x8xf32> to vector<8x1xf32>
    %977 = vector.shape_cast %976 : vector<8x1xf32> to vector<8x1xf32>
    %978 = vector.broadcast %977 : vector<8x1xf32> to vector<8x128xf32>
    %979 = vector.broadcast %cst : f32 to vector<8x128xf32>
    %980 = arith.select %905, %978, %979 : vector<8x128xi1>, vector<8x128xf32>
    %cst_462 = arith.constant dense<0xFF800000> : vector<128xf32>
    %981 = vector.multi_reduction <maximumf>, %980, %cst_462 [0] : vector<8x128xf32> to vector<128xf32>
    %982 = vector.shape_cast %981 : vector<128xf32> to vector<1x128xf32>
    %c7_463 = arith.constant 7 : index
    %c0_464 = arith.constant 0 : index
    %983 = vector.load %arg5[%c7_463, %c0_464] : memref<8x128xf32, #tpu.memory_space<vmem>>, vector<1x128xf32>
    %984 = arith.maximumf %983, %982 : vector<1x128xf32>
    %c7_465 = arith.constant 7 : index
    %c0_466 = arith.constant 0 : index
    %985 = vector.load %arg5[%c7_465, %c0_466] : memref<8x128xf32, #tpu.memory_space<vmem>>, vector<1x128xf32>
    tpu.vector_store %arg5[%c7_465, %c0_466], %984 {strides = array<i32>} : memref<8x128xf32, #tpu.memory_space<vmem>>, vector<1x128xf32>,
    %c11_i32 = arith.constant 11 : i32
    %c8_i32_467 = arith.constant 8 : i32
    %986 = arith.muli %c11_i32, %c8_i32_467 : i32
    %987 = tpu.assume_multiple %986, 8 : i32
    %988 = arith.index_cast %987 : i32 to index
    %c0_468 = arith.constant 0 : index
    %989 = vector.load %arg2[%988, %c0_468] : memref<128x1xi32, #tpu.memory_space<vmem>>, vector<8x1xi32>
    %990 = arith.index_cast %987 : i32 to index
    %c0_469 = arith.constant 0 : index
    %991 = vector.load %arg3[%990, %c0_469] : memref<128x8xf32, #tpu.memory_space<vmem>>, vector<8x8xf32>
    %992 = vector.broadcast %989 : vector<8x1xi32> to vector<8x128xi32>
    %993 = vector.broadcast %6 : vector<1x128xi32> to vector<8x128xi32>
    %994 = arith.cmpi eq, %992, %993 : vector<8x128xi32>
    %995 = vector.extract_strided_slice %991 {offsets = [0, 0], sizes = [8, 1], strides = [1, 1]} : vector<8x8xf32> to vector<8x1xf32>
    %996 = vector.shape_cast %995 : vector<8x1xf32> to vector<8x1xf32>
    %997 = vector.broadcast %996 : vector<8x1xf32> to vector<8x128xf32>
    %998 = vector.broadcast %cst : f32 to vector<8x128xf32>
    %999 = arith.select %994, %997, %998 : vector<8x128xi1>, vector<8x128xf32>
    %cst_470 = arith.constant dense<0xFF800000> : vector<128xf32>
    %1000 = vector.multi_reduction <maximumf>, %999, %cst_470 [0] : vector<8x128xf32> to vector<128xf32>
    %1001 = vector.shape_cast %1000 : vector<128xf32> to vector<1x128xf32>
    %c0_471 = arith.constant 0 : index
    %c0_472 = arith.constant 0 : index
    %1002 = vector.load %arg5[%c0_471, %c0_472] : memref<8x128xf32, #tpu.memory_space<vmem>>, vector<1x128xf32>
    %1003 = arith.maximumf %1002, %1001 : vector<1x128xf32>
    %c0_473 = arith.constant 0 : index
    %c0_474 = arith.constant 0 : index
    %1004 = vector.load %arg5[%c0_473, %c0_474] : memref<8x128xf32, #tpu.memory_space<vmem>>, vector<1x128xf32>
    tpu.vector_store %arg5[%c0_473, %c0_474], %1003 {strides = array<i32>} : memref<8x128xf32, #tpu.memory_space<vmem>>, vector<1x128xf32>,
    %1005 = vector.extract_strided_slice %991 {offsets = [0, 1], sizes = [8, 1], strides = [1, 1]} : vector<8x8xf32> to vector<8x1xf32>
    %1006 = vector.shape_cast %1005 : vector<8x1xf32> to vector<8x1xf32>
    %1007 = vector.broadcast %1006 : vector<8x1xf32> to vector<8x128xf32>
    %1008 = vector.broadcast %cst : f32 to vector<8x128xf32>
    %1009 = arith.select %994, %1007, %1008 : vector<8x128xi1>, vector<8x128xf32>
    %cst_475 = arith.constant dense<0xFF800000> : vector<128xf32>
    %1010 = vector.multi_reduction <maximumf>, %1009, %cst_475 [0] : vector<8x128xf32> to vector<128xf32>
    %1011 = vector.shape_cast %1010 : vector<128xf32> to vector<1x128xf32>
    %c1_476 = arith.constant 1 : index
    %c0_477 = arith.constant 0 : index
    %1012 = vector.load %arg5[%c1_476, %c0_477] : memref<8x128xf32, #tpu.memory_space<vmem>>, vector<1x128xf32>
    %1013 = arith.maximumf %1012, %1011 : vector<1x128xf32>
    %c1_478 = arith.constant 1 : index
    %c0_479 = arith.constant 0 : index
    %1014 = vector.load %arg5[%c1_478, %c0_479] : memref<8x128xf32, #tpu.memory_space<vmem>>, vector<1x128xf32>
    tpu.vector_store %arg5[%c1_478, %c0_479], %1013 {strides = array<i32>} : memref<8x128xf32, #tpu.memory_space<vmem>>, vector<1x128xf32>,
    %1015 = vector.extract_strided_slice %991 {offsets = [0, 2], sizes = [8, 1], strides = [1, 1]} : vector<8x8xf32> to vector<8x1xf32>
    %1016 = vector.shape_cast %1015 : vector<8x1xf32> to vector<8x1xf32>
    %1017 = vector.broadcast %1016 : vector<8x1xf32> to vector<8x128xf32>
    %1018 = vector.broadcast %cst : f32 to vector<8x128xf32>
    %1019 = arith.select %994, %1017, %1018 : vector<8x128xi1>, vector<8x128xf32>
    %cst_480 = arith.constant dense<0xFF800000> : vector<128xf32>
    %1020 = vector.multi_reduction <maximumf>, %1019, %cst_480 [0] : vector<8x128xf32> to vector<128xf32>
    %1021 = vector.shape_cast %1020 : vector<128xf32> to vector<1x128xf32>
    %c2_481 = arith.constant 2 : index
    %c0_482 = arith.constant 0 : index
    %1022 = vector.load %arg5[%c2_481, %c0_482] : memref<8x128xf32, #tpu.memory_space<vmem>>, vector<1x128xf32>
    %1023 = arith.maximumf %1022, %1021 : vector<1x128xf32>
    %c2_483 = arith.constant 2 : index
    %c0_484 = arith.constant 0 : index
    %1024 = vector.load %arg5[%c2_483, %c0_484] : memref<8x128xf32, #tpu.memory_space<vmem>>, vector<1x128xf32>
    tpu.vector_store %arg5[%c2_483, %c0_484], %1023 {strides = array<i32>} : memref<8x128xf32, #tpu.memory_space<vmem>>, vector<1x128xf32>,
    %1025 = vector.extract_strided_slice %991 {offsets = [0, 3], sizes = [8, 1], strides = [1, 1]} : vector<8x8xf32> to vector<8x1xf32>
    %1026 = vector.shape_cast %1025 : vector<8x1xf32> to vector<8x1xf32>
    %1027 = vector.broadcast %1026 : vector<8x1xf32> to vector<8x128xf32>
    %1028 = vector.broadcast %cst : f32 to vector<8x128xf32>
    %1029 = arith.select %994, %1027, %1028 : vector<8x128xi1>, vector<8x128xf32>
    %cst_485 = arith.constant dense<0xFF800000> : vector<128xf32>
    %1030 = vector.multi_reduction <maximumf>, %1029, %cst_485 [0] : vector<8x128xf32> to vector<128xf32>
    %1031 = vector.shape_cast %1030 : vector<128xf32> to vector<1x128xf32>
    %c3_486 = arith.constant 3 : index
    %c0_487 = arith.constant 0 : index
    %1032 = vector.load %arg5[%c3_486, %c0_487] : memref<8x128xf32, #tpu.memory_space<vmem>>, vector<1x128xf32>
    %1033 = arith.maximumf %1032, %1031 : vector<1x128xf32>
    %c3_488 = arith.constant 3 : index
    %c0_489 = arith.constant 0 : index
    %1034 = vector.load %arg5[%c3_488, %c0_489] : memref<8x128xf32, #tpu.memory_space<vmem>>, vector<1x128xf32>
    tpu.vector_store %arg5[%c3_488, %c0_489], %1033 {strides = array<i32>} : memref<8x128xf32, #tpu.memory_space<vmem>>, vector<1x128xf32>,
    %1035 = vector.extract_strided_slice %991 {offsets = [0, 4], sizes = [8, 1], strides = [1, 1]} : vector<8x8xf32> to vector<8x1xf32>
    %1036 = vector.shape_cast %1035 : vector<8x1xf32> to vector<8x1xf32>
    %1037 = vector.broadcast %1036 : vector<8x1xf32> to vector<8x128xf32>
    %1038 = vector.broadcast %cst : f32 to vector<8x128xf32>
    %1039 = arith.select %994, %1037, %1038 : vector<8x128xi1>, vector<8x128xf32>
    %cst_490 = arith.constant dense<0xFF800000> : vector<128xf32>
    %1040 = vector.multi_reduction <maximumf>, %1039, %cst_490 [0] : vector<8x128xf32> to vector<128xf32>
    %1041 = vector.shape_cast %1040 : vector<128xf32> to vector<1x128xf32>
    %c4_491 = arith.constant 4 : index
    %c0_492 = arith.constant 0 : index
    %1042 = vector.load %arg5[%c4_491, %c0_492] : memref<8x128xf32, #tpu.memory_space<vmem>>, vector<1x128xf32>
    %1043 = arith.maximumf %1042, %1041 : vector<1x128xf32>
    %c4_493 = arith.constant 4 : index
    %c0_494 = arith.constant 0 : index
    %1044 = vector.load %arg5[%c4_493, %c0_494] : memref<8x128xf32, #tpu.memory_space<vmem>>, vector<1x128xf32>
    tpu.vector_store %arg5[%c4_493, %c0_494], %1043 {strides = array<i32>} : memref<8x128xf32, #tpu.memory_space<vmem>>, vector<1x128xf32>,
    %1045 = vector.extract_strided_slice %991 {offsets = [0, 5], sizes = [8, 1], strides = [1, 1]} : vector<8x8xf32> to vector<8x1xf32>
    %1046 = vector.shape_cast %1045 : vector<8x1xf32> to vector<8x1xf32>
    %1047 = vector.broadcast %1046 : vector<8x1xf32> to vector<8x128xf32>
    %1048 = vector.broadcast %cst : f32 to vector<8x128xf32>
    %1049 = arith.select %994, %1047, %1048 : vector<8x128xi1>, vector<8x128xf32>
    %cst_495 = arith.constant dense<0xFF800000> : vector<128xf32>
    %1050 = vector.multi_reduction <maximumf>, %1049, %cst_495 [0] : vector<8x128xf32> to vector<128xf32>
    %1051 = vector.shape_cast %1050 : vector<128xf32> to vector<1x128xf32>
    %c5_496 = arith.constant 5 : index
    %c0_497 = arith.constant 0 : index
    %1052 = vector.load %arg5[%c5_496, %c0_497] : memref<8x128xf32, #tpu.memory_space<vmem>>, vector<1x128xf32>
    %1053 = arith.maximumf %1052, %1051 : vector<1x128xf32>
    %c5_498 = arith.constant 5 : index
    %c0_499 = arith.constant 0 : index
    %1054 = vector.load %arg5[%c5_498, %c0_499] : memref<8x128xf32, #tpu.memory_space<vmem>>, vector<1x128xf32>
    tpu.vector_store %arg5[%c5_498, %c0_499], %1053 {strides = array<i32>} : memref<8x128xf32, #tpu.memory_space<vmem>>, vector<1x128xf32>,
    %1055 = vector.extract_strided_slice %991 {offsets = [0, 6], sizes = [8, 1], strides = [1, 1]} : vector<8x8xf32> to vector<8x1xf32>
    %1056 = vector.shape_cast %1055 : vector<8x1xf32> to vector<8x1xf32>
    %1057 = vector.broadcast %1056 : vector<8x1xf32> to vector<8x128xf32>
    %1058 = vector.broadcast %cst : f32 to vector<8x128xf32>
    %1059 = arith.select %994, %1057, %1058 : vector<8x128xi1>, vector<8x128xf32>
    %cst_500 = arith.constant dense<0xFF800000> : vector<128xf32>
    %1060 = vector.multi_reduction <maximumf>, %1059, %cst_500 [0] : vector<8x128xf32> to vector<128xf32>
    %1061 = vector.shape_cast %1060 : vector<128xf32> to vector<1x128xf32>
    %c6_501 = arith.constant 6 : index
    %c0_502 = arith.constant 0 : index
    %1062 = vector.load %arg5[%c6_501, %c0_502] : memref<8x128xf32, #tpu.memory_space<vmem>>, vector<1x128xf32>
    %1063 = arith.maximumf %1062, %1061 : vector<1x128xf32>
    %c6_503 = arith.constant 6 : index
    %c0_504 = arith.constant 0 : index
    %1064 = vector.load %arg5[%c6_503, %c0_504] : memref<8x128xf32, #tpu.memory_space<vmem>>, vector<1x128xf32>
    tpu.vector_store %arg5[%c6_503, %c0_504], %1063 {strides = array<i32>} : memref<8x128xf32, #tpu.memory_space<vmem>>, vector<1x128xf32>,
    %1065 = vector.extract_strided_slice %991 {offsets = [0, 7], sizes = [8, 1], strides = [1, 1]} : vector<8x8xf32> to vector<8x1xf32>
    %1066 = vector.shape_cast %1065 : vector<8x1xf32> to vector<8x1xf32>
    %1067 = vector.broadcast %1066 : vector<8x1xf32> to vector<8x128xf32>
    %1068 = vector.broadcast %cst : f32 to vector<8x128xf32>
    %1069 = arith.select %994, %1067, %1068 : vector<8x128xi1>, vector<8x128xf32>
    %cst_505 = arith.constant dense<0xFF800000> : vector<128xf32>
    %1070 = vector.multi_reduction <maximumf>, %1069, %cst_505 [0] : vector<8x128xf32> to vector<128xf32>
    %1071 = vector.shape_cast %1070 : vector<128xf32> to vector<1x128xf32>
    %c7_506 = arith.constant 7 : index
    %c0_507 = arith.constant 0 : index
    %1072 = vector.load %arg5[%c7_506, %c0_507] : memref<8x128xf32, #tpu.memory_space<vmem>>, vector<1x128xf32>
    %1073 = arith.maximumf %1072, %1071 : vector<1x128xf32>
    %c7_508 = arith.constant 7 : index
    %c0_509 = arith.constant 0 : index
    %1074 = vector.load %arg5[%c7_508, %c0_509] : memref<8x128xf32, #tpu.memory_space<vmem>>, vector<1x128xf32>
    tpu.vector_store %arg5[%c7_508, %c0_509], %1073 {strides = array<i32>} : memref<8x128xf32, #tpu.memory_space<vmem>>, vector<1x128xf32>,
    %c12_i32 = arith.constant 12 : i32
    %c8_i32_510 = arith.constant 8 : i32
    %1075 = arith.muli %c12_i32, %c8_i32_510 : i32
    %1076 = tpu.assume_multiple %1075, 8 : i32
    %1077 = arith.index_cast %1076 : i32 to index
    %c0_511 = arith.constant 0 : index
    %1078 = vector.load %arg2[%1077, %c0_511] : memref<128x1xi32, #tpu.memory_space<vmem>>, vector<8x1xi32>
    %1079 = arith.index_cast %1076 : i32 to index
    %c0_512 = arith.constant 0 : index
    %1080 = vector.load %arg3[%1079, %c0_512] : memref<128x8xf32, #tpu.memory_space<vmem>>, vector<8x8xf32>
    %1081 = vector.broadcast %1078 : vector<8x1xi32> to vector<8x128xi32>
    %1082 = vector.broadcast %6 : vector<1x128xi32> to vector<8x128xi32>
    %1083 = arith.cmpi eq, %1081, %1082 : vector<8x128xi32>
    %1084 = vector.extract_strided_slice %1080 {offsets = [0, 0], sizes = [8, 1], strides = [1, 1]} : vector<8x8xf32> to vector<8x1xf32>
    %1085 = vector.shape_cast %1084 : vector<8x1xf32> to vector<8x1xf32>
    %1086 = vector.broadcast %1085 : vector<8x1xf32> to vector<8x128xf32>
    %1087 = vector.broadcast %cst : f32 to vector<8x128xf32>
    %1088 = arith.select %1083, %1086, %1087 : vector<8x128xi1>, vector<8x128xf32>
    %cst_513 = arith.constant dense<0xFF800000> : vector<128xf32>
    %1089 = vector.multi_reduction <maximumf>, %1088, %cst_513 [0] : vector<8x128xf32> to vector<128xf32>
    %1090 = vector.shape_cast %1089 : vector<128xf32> to vector<1x128xf32>
    %c0_514 = arith.constant 0 : index
    %c0_515 = arith.constant 0 : index
    %1091 = vector.load %arg5[%c0_514, %c0_515] : memref<8x128xf32, #tpu.memory_space<vmem>>, vector<1x128xf32>
    %1092 = arith.maximumf %1091, %1090 : vector<1x128xf32>
    %c0_516 = arith.constant 0 : index
    %c0_517 = arith.constant 0 : index
    %1093 = vector.load %arg5[%c0_516, %c0_517] : memref<8x128xf32, #tpu.memory_space<vmem>>, vector<1x128xf32>
    tpu.vector_store %arg5[%c0_516, %c0_517], %1092 {strides = array<i32>} : memref<8x128xf32, #tpu.memory_space<vmem>>, vector<1x128xf32>,
    %1094 = vector.extract_strided_slice %1080 {offsets = [0, 1], sizes = [8, 1], strides = [1, 1]} : vector<8x8xf32> to vector<8x1xf32>
    %1095 = vector.shape_cast %1094 : vector<8x1xf32> to vector<8x1xf32>
    %1096 = vector.broadcast %1095 : vector<8x1xf32> to vector<8x128xf32>
    %1097 = vector.broadcast %cst : f32 to vector<8x128xf32>
    %1098 = arith.select %1083, %1096, %1097 : vector<8x128xi1>, vector<8x128xf32>
    %cst_518 = arith.constant dense<0xFF800000> : vector<128xf32>
    %1099 = vector.multi_reduction <maximumf>, %1098, %cst_518 [0] : vector<8x128xf32> to vector<128xf32>
    %1100 = vector.shape_cast %1099 : vector<128xf32> to vector<1x128xf32>
    %c1_519 = arith.constant 1 : index
    %c0_520 = arith.constant 0 : index
    %1101 = vector.load %arg5[%c1_519, %c0_520] : memref<8x128xf32, #tpu.memory_space<vmem>>, vector<1x128xf32>
    %1102 = arith.maximumf %1101, %1100 : vector<1x128xf32>
    %c1_521 = arith.constant 1 : index
    %c0_522 = arith.constant 0 : index
    %1103 = vector.load %arg5[%c1_521, %c0_522] : memref<8x128xf32, #tpu.memory_space<vmem>>, vector<1x128xf32>
    tpu.vector_store %arg5[%c1_521, %c0_522], %1102 {strides = array<i32>} : memref<8x128xf32, #tpu.memory_space<vmem>>, vector<1x128xf32>,
    %1104 = vector.extract_strided_slice %1080 {offsets = [0, 2], sizes = [8, 1], strides = [1, 1]} : vector<8x8xf32> to vector<8x1xf32>
    %1105 = vector.shape_cast %1104 : vector<8x1xf32> to vector<8x1xf32>
    %1106 = vector.broadcast %1105 : vector<8x1xf32> to vector<8x128xf32>
    %1107 = vector.broadcast %cst : f32 to vector<8x128xf32>
    %1108 = arith.select %1083, %1106, %1107 : vector<8x128xi1>, vector<8x128xf32>
    %cst_523 = arith.constant dense<0xFF800000> : vector<128xf32>
    %1109 = vector.multi_reduction <maximumf>, %1108, %cst_523 [0] : vector<8x128xf32> to vector<128xf32>
    %1110 = vector.shape_cast %1109 : vector<128xf32> to vector<1x128xf32>
    %c2_524 = arith.constant 2 : index
    %c0_525 = arith.constant 0 : index
    %1111 = vector.load %arg5[%c2_524, %c0_525] : memref<8x128xf32, #tpu.memory_space<vmem>>, vector<1x128xf32>
    %1112 = arith.maximumf %1111, %1110 : vector<1x128xf32>
    %c2_526 = arith.constant 2 : index
    %c0_527 = arith.constant 0 : index
    %1113 = vector.load %arg5[%c2_526, %c0_527] : memref<8x128xf32, #tpu.memory_space<vmem>>, vector<1x128xf32>
    tpu.vector_store %arg5[%c2_526, %c0_527], %1112 {strides = array<i32>} : memref<8x128xf32, #tpu.memory_space<vmem>>, vector<1x128xf32>,
    %1114 = vector.extract_strided_slice %1080 {offsets = [0, 3], sizes = [8, 1], strides = [1, 1]} : vector<8x8xf32> to vector<8x1xf32>
    %1115 = vector.shape_cast %1114 : vector<8x1xf32> to vector<8x1xf32>
    %1116 = vector.broadcast %1115 : vector<8x1xf32> to vector<8x128xf32>
    %1117 = vector.broadcast %cst : f32 to vector<8x128xf32>
    %1118 = arith.select %1083, %1116, %1117 : vector<8x128xi1>, vector<8x128xf32>
    %cst_528 = arith.constant dense<0xFF800000> : vector<128xf32>
    %1119 = vector.multi_reduction <maximumf>, %1118, %cst_528 [0] : vector<8x128xf32> to vector<128xf32>
    %1120 = vector.shape_cast %1119 : vector<128xf32> to vector<1x128xf32>
    %c3_529 = arith.constant 3 : index
    %c0_530 = arith.constant 0 : index
    %1121 = vector.load %arg5[%c3_529, %c0_530] : memref<8x128xf32, #tpu.memory_space<vmem>>, vector<1x128xf32>
    %1122 = arith.maximumf %1121, %1120 : vector<1x128xf32>
    %c3_531 = arith.constant 3 : index
    %c0_532 = arith.constant 0 : index
    %1123 = vector.load %arg5[%c3_531, %c0_532] : memref<8x128xf32, #tpu.memory_space<vmem>>, vector<1x128xf32>
    tpu.vector_store %arg5[%c3_531, %c0_532], %1122 {strides = array<i32>} : memref<8x128xf32, #tpu.memory_space<vmem>>, vector<1x128xf32>,
    %1124 = vector.extract_strided_slice %1080 {offsets = [0, 4], sizes = [8, 1], strides = [1, 1]} : vector<8x8xf32> to vector<8x1xf32>
    %1125 = vector.shape_cast %1124 : vector<8x1xf32> to vector<8x1xf32>
    %1126 = vector.broadcast %1125 : vector<8x1xf32> to vector<8x128xf32>
    %1127 = vector.broadcast %cst : f32 to vector<8x128xf32>
    %1128 = arith.select %1083, %1126, %1127 : vector<8x128xi1>, vector<8x128xf32>
    %cst_533 = arith.constant dense<0xFF800000> : vector<128xf32>
    %1129 = vector.multi_reduction <maximumf>, %1128, %cst_533 [0] : vector<8x128xf32> to vector<128xf32>
    %1130 = vector.shape_cast %1129 : vector<128xf32> to vector<1x128xf32>
    %c4_534 = arith.constant 4 : index
    %c0_535 = arith.constant 0 : index
    %1131 = vector.load %arg5[%c4_534, %c0_535] : memref<8x128xf32, #tpu.memory_space<vmem>>, vector<1x128xf32>
    %1132 = arith.maximumf %1131, %1130 : vector<1x128xf32>
    %c4_536 = arith.constant 4 : index
    %c0_537 = arith.constant 0 : index
    %1133 = vector.load %arg5[%c4_536, %c0_537] : memref<8x128xf32, #tpu.memory_space<vmem>>, vector<1x128xf32>
    tpu.vector_store %arg5[%c4_536, %c0_537], %1132 {strides = array<i32>} : memref<8x128xf32, #tpu.memory_space<vmem>>, vector<1x128xf32>,
    %1134 = vector.extract_strided_slice %1080 {offsets = [0, 5], sizes = [8, 1], strides = [1, 1]} : vector<8x8xf32> to vector<8x1xf32>
    %1135 = vector.shape_cast %1134 : vector<8x1xf32> to vector<8x1xf32>
    %1136 = vector.broadcast %1135 : vector<8x1xf32> to vector<8x128xf32>
    %1137 = vector.broadcast %cst : f32 to vector<8x128xf32>
    %1138 = arith.select %1083, %1136, %1137 : vector<8x128xi1>, vector<8x128xf32>
    %cst_538 = arith.constant dense<0xFF800000> : vector<128xf32>
    %1139 = vector.multi_reduction <maximumf>, %1138, %cst_538 [0] : vector<8x128xf32> to vector<128xf32>
    %1140 = vector.shape_cast %1139 : vector<128xf32> to vector<1x128xf32>
    %c5_539 = arith.constant 5 : index
    %c0_540 = arith.constant 0 : index
    %1141 = vector.load %arg5[%c5_539, %c0_540] : memref<8x128xf32, #tpu.memory_space<vmem>>, vector<1x128xf32>
    %1142 = arith.maximumf %1141, %1140 : vector<1x128xf32>
    %c5_541 = arith.constant 5 : index
    %c0_542 = arith.constant 0 : index
    %1143 = vector.load %arg5[%c5_541, %c0_542] : memref<8x128xf32, #tpu.memory_space<vmem>>, vector<1x128xf32>
    tpu.vector_store %arg5[%c5_541, %c0_542], %1142 {strides = array<i32>} : memref<8x128xf32, #tpu.memory_space<vmem>>, vector<1x128xf32>,
    %1144 = vector.extract_strided_slice %1080 {offsets = [0, 6], sizes = [8, 1], strides = [1, 1]} : vector<8x8xf32> to vector<8x1xf32>
    %1145 = vector.shape_cast %1144 : vector<8x1xf32> to vector<8x1xf32>
    %1146 = vector.broadcast %1145 : vector<8x1xf32> to vector<8x128xf32>
    %1147 = vector.broadcast %cst : f32 to vector<8x128xf32>
    %1148 = arith.select %1083, %1146, %1147 : vector<8x128xi1>, vector<8x128xf32>
    %cst_543 = arith.constant dense<0xFF800000> : vector<128xf32>
    %1149 = vector.multi_reduction <maximumf>, %1148, %cst_543 [0] : vector<8x128xf32> to vector<128xf32>
    %1150 = vector.shape_cast %1149 : vector<128xf32> to vector<1x128xf32>
    %c6_544 = arith.constant 6 : index
    %c0_545 = arith.constant 0 : index
    %1151 = vector.load %arg5[%c6_544, %c0_545] : memref<8x128xf32, #tpu.memory_space<vmem>>, vector<1x128xf32>
    %1152 = arith.maximumf %1151, %1150 : vector<1x128xf32>
    %c6_546 = arith.constant 6 : index
    %c0_547 = arith.constant 0 : index
    %1153 = vector.load %arg5[%c6_546, %c0_547] : memref<8x128xf32, #tpu.memory_space<vmem>>, vector<1x128xf32>
    tpu.vector_store %arg5[%c6_546, %c0_547], %1152 {strides = array<i32>} : memref<8x128xf32, #tpu.memory_space<vmem>>, vector<1x128xf32>,
    %1154 = vector.extract_strided_slice %1080 {offsets = [0, 7], sizes = [8, 1], strides = [1, 1]} : vector<8x8xf32> to vector<8x1xf32>
    %1155 = vector.shape_cast %1154 : vector<8x1xf32> to vector<8x1xf32>
    %1156 = vector.broadcast %1155 : vector<8x1xf32> to vector<8x128xf32>
    %1157 = vector.broadcast %cst : f32 to vector<8x128xf32>
    %1158 = arith.select %1083, %1156, %1157 : vector<8x128xi1>, vector<8x128xf32>
    %cst_548 = arith.constant dense<0xFF800000> : vector<128xf32>
    %1159 = vector.multi_reduction <maximumf>, %1158, %cst_548 [0] : vector<8x128xf32> to vector<128xf32>
    %1160 = vector.shape_cast %1159 : vector<128xf32> to vector<1x128xf32>
    %c7_549 = arith.constant 7 : index
    %c0_550 = arith.constant 0 : index
    %1161 = vector.load %arg5[%c7_549, %c0_550] : memref<8x128xf32, #tpu.memory_space<vmem>>, vector<1x128xf32>
    %1162 = arith.maximumf %1161, %1160 : vector<1x128xf32>
    %c7_551 = arith.constant 7 : index
    %c0_552 = arith.constant 0 : index
    %1163 = vector.load %arg5[%c7_551, %c0_552] : memref<8x128xf32, #tpu.memory_space<vmem>>, vector<1x128xf32>
    tpu.vector_store %arg5[%c7_551, %c0_552], %1162 {strides = array<i32>} : memref<8x128xf32, #tpu.memory_space<vmem>>, vector<1x128xf32>,
    %c13_i32 = arith.constant 13 : i32
    %c8_i32_553 = arith.constant 8 : i32
    %1164 = arith.muli %c13_i32, %c8_i32_553 : i32
    %1165 = tpu.assume_multiple %1164, 8 : i32
    %1166 = arith.index_cast %1165 : i32 to index
    %c0_554 = arith.constant 0 : index
    %1167 = vector.load %arg2[%1166, %c0_554] : memref<128x1xi32, #tpu.memory_space<vmem>>, vector<8x1xi32>
    %1168 = arith.index_cast %1165 : i32 to index
    %c0_555 = arith.constant 0 : index
    %1169 = vector.load %arg3[%1168, %c0_555] : memref<128x8xf32, #tpu.memory_space<vmem>>, vector<8x8xf32>
    %1170 = vector.broadcast %1167 : vector<8x1xi32> to vector<8x128xi32>
    %1171 = vector.broadcast %6 : vector<1x128xi32> to vector<8x128xi32>
    %1172 = arith.cmpi eq, %1170, %1171 : vector<8x128xi32>
    %1173 = vector.extract_strided_slice %1169 {offsets = [0, 0], sizes = [8, 1], strides = [1, 1]} : vector<8x8xf32> to vector<8x1xf32>
    %1174 = vector.shape_cast %1173 : vector<8x1xf32> to vector<8x1xf32>
    %1175 = vector.broadcast %1174 : vector<8x1xf32> to vector<8x128xf32>
    %1176 = vector.broadcast %cst : f32 to vector<8x128xf32>
    %1177 = arith.select %1172, %1175, %1176 : vector<8x128xi1>, vector<8x128xf32>
    %cst_556 = arith.constant dense<0xFF800000> : vector<128xf32>
    %1178 = vector.multi_reduction <maximumf>, %1177, %cst_556 [0] : vector<8x128xf32> to vector<128xf32>
    %1179 = vector.shape_cast %1178 : vector<128xf32> to vector<1x128xf32>
    %c0_557 = arith.constant 0 : index
    %c0_558 = arith.constant 0 : index
    %1180 = vector.load %arg5[%c0_557, %c0_558] : memref<8x128xf32, #tpu.memory_space<vmem>>, vector<1x128xf32>
    %1181 = arith.maximumf %1180, %1179 : vector<1x128xf32>
    %c0_559 = arith.constant 0 : index
    %c0_560 = arith.constant 0 : index
    %1182 = vector.load %arg5[%c0_559, %c0_560] : memref<8x128xf32, #tpu.memory_space<vmem>>, vector<1x128xf32>
    tpu.vector_store %arg5[%c0_559, %c0_560], %1181 {strides = array<i32>} : memref<8x128xf32, #tpu.memory_space<vmem>>, vector<1x128xf32>,
    %1183 = vector.extract_strided_slice %1169 {offsets = [0, 1], sizes = [8, 1], strides = [1, 1]} : vector<8x8xf32> to vector<8x1xf32>
    %1184 = vector.shape_cast %1183 : vector<8x1xf32> to vector<8x1xf32>
    %1185 = vector.broadcast %1184 : vector<8x1xf32> to vector<8x128xf32>
    %1186 = vector.broadcast %cst : f32 to vector<8x128xf32>
    %1187 = arith.select %1172, %1185, %1186 : vector<8x128xi1>, vector<8x128xf32>
    %cst_561 = arith.constant dense<0xFF800000> : vector<128xf32>
    %1188 = vector.multi_reduction <maximumf>, %1187, %cst_561 [0] : vector<8x128xf32> to vector<128xf32>
    %1189 = vector.shape_cast %1188 : vector<128xf32> to vector<1x128xf32>
    %c1_562 = arith.constant 1 : index
    %c0_563 = arith.constant 0 : index
    %1190 = vector.load %arg5[%c1_562, %c0_563] : memref<8x128xf32, #tpu.memory_space<vmem>>, vector<1x128xf32>
    %1191 = arith.maximumf %1190, %1189 : vector<1x128xf32>
    %c1_564 = arith.constant 1 : index
    %c0_565 = arith.constant 0 : index
    %1192 = vector.load %arg5[%c1_564, %c0_565] : memref<8x128xf32, #tpu.memory_space<vmem>>, vector<1x128xf32>
    tpu.vector_store %arg5[%c1_564, %c0_565], %1191 {strides = array<i32>} : memref<8x128xf32, #tpu.memory_space<vmem>>, vector<1x128xf32>,
    %1193 = vector.extract_strided_slice %1169 {offsets = [0, 2], sizes = [8, 1], strides = [1, 1]} : vector<8x8xf32> to vector<8x1xf32>
    %1194 = vector.shape_cast %1193 : vector<8x1xf32> to vector<8x1xf32>
    %1195 = vector.broadcast %1194 : vector<8x1xf32> to vector<8x128xf32>
    %1196 = vector.broadcast %cst : f32 to vector<8x128xf32>
    %1197 = arith.select %1172, %1195, %1196 : vector<8x128xi1>, vector<8x128xf32>
    %cst_566 = arith.constant dense<0xFF800000> : vector<128xf32>
    %1198 = vector.multi_reduction <maximumf>, %1197, %cst_566 [0] : vector<8x128xf32> to vector<128xf32>
    %1199 = vector.shape_cast %1198 : vector<128xf32> to vector<1x128xf32>
    %c2_567 = arith.constant 2 : index
    %c0_568 = arith.constant 0 : index
    %1200 = vector.load %arg5[%c2_567, %c0_568] : memref<8x128xf32, #tpu.memory_space<vmem>>, vector<1x128xf32>
    %1201 = arith.maximumf %1200, %1199 : vector<1x128xf32>
    %c2_569 = arith.constant 2 : index
    %c0_570 = arith.constant 0 : index
    %1202 = vector.load %arg5[%c2_569, %c0_570] : memref<8x128xf32, #tpu.memory_space<vmem>>, vector<1x128xf32>
    tpu.vector_store %arg5[%c2_569, %c0_570], %1201 {strides = array<i32>} : memref<8x128xf32, #tpu.memory_space<vmem>>, vector<1x128xf32>,
    %1203 = vector.extract_strided_slice %1169 {offsets = [0, 3], sizes = [8, 1], strides = [1, 1]} : vector<8x8xf32> to vector<8x1xf32>
    %1204 = vector.shape_cast %1203 : vector<8x1xf32> to vector<8x1xf32>
    %1205 = vector.broadcast %1204 : vector<8x1xf32> to vector<8x128xf32>
    %1206 = vector.broadcast %cst : f32 to vector<8x128xf32>
    %1207 = arith.select %1172, %1205, %1206 : vector<8x128xi1>, vector<8x128xf32>
    %cst_571 = arith.constant dense<0xFF800000> : vector<128xf32>
    %1208 = vector.multi_reduction <maximumf>, %1207, %cst_571 [0] : vector<8x128xf32> to vector<128xf32>
    %1209 = vector.shape_cast %1208 : vector<128xf32> to vector<1x128xf32>
    %c3_572 = arith.constant 3 : index
    %c0_573 = arith.constant 0 : index
    %1210 = vector.load %arg5[%c3_572, %c0_573] : memref<8x128xf32, #tpu.memory_space<vmem>>, vector<1x128xf32>
    %1211 = arith.maximumf %1210, %1209 : vector<1x128xf32>
    %c3_574 = arith.constant 3 : index
    %c0_575 = arith.constant 0 : index
    %1212 = vector.load %arg5[%c3_574, %c0_575] : memref<8x128xf32, #tpu.memory_space<vmem>>, vector<1x128xf32>
    tpu.vector_store %arg5[%c3_574, %c0_575], %1211 {strides = array<i32>} : memref<8x128xf32, #tpu.memory_space<vmem>>, vector<1x128xf32>,
    %1213 = vector.extract_strided_slice %1169 {offsets = [0, 4], sizes = [8, 1], strides = [1, 1]} : vector<8x8xf32> to vector<8x1xf32>
    %1214 = vector.shape_cast %1213 : vector<8x1xf32> to vector<8x1xf32>
    %1215 = vector.broadcast %1214 : vector<8x1xf32> to vector<8x128xf32>
    %1216 = vector.broadcast %cst : f32 to vector<8x128xf32>
    %1217 = arith.select %1172, %1215, %1216 : vector<8x128xi1>, vector<8x128xf32>
    %cst_576 = arith.constant dense<0xFF800000> : vector<128xf32>
    %1218 = vector.multi_reduction <maximumf>, %1217, %cst_576 [0] : vector<8x128xf32> to vector<128xf32>
    %1219 = vector.shape_cast %1218 : vector<128xf32> to vector<1x128xf32>
    %c4_577 = arith.constant 4 : index
    %c0_578 = arith.constant 0 : index
    %1220 = vector.load %arg5[%c4_577, %c0_578] : memref<8x128xf32, #tpu.memory_space<vmem>>, vector<1x128xf32>
    %1221 = arith.maximumf %1220, %1219 : vector<1x128xf32>
    %c4_579 = arith.constant 4 : index
    %c0_580 = arith.constant 0 : index
    %1222 = vector.load %arg5[%c4_579, %c0_580] : memref<8x128xf32, #tpu.memory_space<vmem>>, vector<1x128xf32>
    tpu.vector_store %arg5[%c4_579, %c0_580], %1221 {strides = array<i32>} : memref<8x128xf32, #tpu.memory_space<vmem>>, vector<1x128xf32>,
    %1223 = vector.extract_strided_slice %1169 {offsets = [0, 5], sizes = [8, 1], strides = [1, 1]} : vector<8x8xf32> to vector<8x1xf32>
    %1224 = vector.shape_cast %1223 : vector<8x1xf32> to vector<8x1xf32>
    %1225 = vector.broadcast %1224 : vector<8x1xf32> to vector<8x128xf32>
    %1226 = vector.broadcast %cst : f32 to vector<8x128xf32>
    %1227 = arith.select %1172, %1225, %1226 : vector<8x128xi1>, vector<8x128xf32>
    %cst_581 = arith.constant dense<0xFF800000> : vector<128xf32>
    %1228 = vector.multi_reduction <maximumf>, %1227, %cst_581 [0] : vector<8x128xf32> to vector<128xf32>
    %1229 = vector.shape_cast %1228 : vector<128xf32> to vector<1x128xf32>
    %c5_582 = arith.constant 5 : index
    %c0_583 = arith.constant 0 : index
    %1230 = vector.load %arg5[%c5_582, %c0_583] : memref<8x128xf32, #tpu.memory_space<vmem>>, vector<1x128xf32>
    %1231 = arith.maximumf %1230, %1229 : vector<1x128xf32>
    %c5_584 = arith.constant 5 : index
    %c0_585 = arith.constant 0 : index
    %1232 = vector.load %arg5[%c5_584, %c0_585] : memref<8x128xf32, #tpu.memory_space<vmem>>, vector<1x128xf32>
    tpu.vector_store %arg5[%c5_584, %c0_585], %1231 {strides = array<i32>} : memref<8x128xf32, #tpu.memory_space<vmem>>, vector<1x128xf32>,
    %1233 = vector.extract_strided_slice %1169 {offsets = [0, 6], sizes = [8, 1], strides = [1, 1]} : vector<8x8xf32> to vector<8x1xf32>
    %1234 = vector.shape_cast %1233 : vector<8x1xf32> to vector<8x1xf32>
    %1235 = vector.broadcast %1234 : vector<8x1xf32> to vector<8x128xf32>
    %1236 = vector.broadcast %cst : f32 to vector<8x128xf32>
    %1237 = arith.select %1172, %1235, %1236 : vector<8x128xi1>, vector<8x128xf32>
    %cst_586 = arith.constant dense<0xFF800000> : vector<128xf32>
    %1238 = vector.multi_reduction <maximumf>, %1237, %cst_586 [0] : vector<8x128xf32> to vector<128xf32>
    %1239 = vector.shape_cast %1238 : vector<128xf32> to vector<1x128xf32>
    %c6_587 = arith.constant 6 : index
    %c0_588 = arith.constant 0 : index
    %1240 = vector.load %arg5[%c6_587, %c0_588] : memref<8x128xf32, #tpu.memory_space<vmem>>, vector<1x128xf32>
    %1241 = arith.maximumf %1240, %1239 : vector<1x128xf32>
    %c6_589 = arith.constant 6 : index
    %c0_590 = arith.constant 0 : index
    %1242 = vector.load %arg5[%c6_589, %c0_590] : memref<8x128xf32, #tpu.memory_space<vmem>>, vector<1x128xf32>
    tpu.vector_store %arg5[%c6_589, %c0_590], %1241 {strides = array<i32>} : memref<8x128xf32, #tpu.memory_space<vmem>>, vector<1x128xf32>,
    %1243 = vector.extract_strided_slice %1169 {offsets = [0, 7], sizes = [8, 1], strides = [1, 1]} : vector<8x8xf32> to vector<8x1xf32>
    %1244 = vector.shape_cast %1243 : vector<8x1xf32> to vector<8x1xf32>
    %1245 = vector.broadcast %1244 : vector<8x1xf32> to vector<8x128xf32>
    %1246 = vector.broadcast %cst : f32 to vector<8x128xf32>
    %1247 = arith.select %1172, %1245, %1246 : vector<8x128xi1>, vector<8x128xf32>
    %cst_591 = arith.constant dense<0xFF800000> : vector<128xf32>
    %1248 = vector.multi_reduction <maximumf>, %1247, %cst_591 [0] : vector<8x128xf32> to vector<128xf32>
    %1249 = vector.shape_cast %1248 : vector<128xf32> to vector<1x128xf32>
    %c7_592 = arith.constant 7 : index
    %c0_593 = arith.constant 0 : index
    %1250 = vector.load %arg5[%c7_592, %c0_593] : memref<8x128xf32, #tpu.memory_space<vmem>>, vector<1x128xf32>
    %1251 = arith.maximumf %1250, %1249 : vector<1x128xf32>
    %c7_594 = arith.constant 7 : index
    %c0_595 = arith.constant 0 : index
    %1252 = vector.load %arg5[%c7_594, %c0_595] : memref<8x128xf32, #tpu.memory_space<vmem>>, vector<1x128xf32>
    tpu.vector_store %arg5[%c7_594, %c0_595], %1251 {strides = array<i32>} : memref<8x128xf32, #tpu.memory_space<vmem>>, vector<1x128xf32>,
    %c14_i32 = arith.constant 14 : i32
    %c8_i32_596 = arith.constant 8 : i32
    %1253 = arith.muli %c14_i32, %c8_i32_596 : i32
    %1254 = tpu.assume_multiple %1253, 8 : i32
    %1255 = arith.index_cast %1254 : i32 to index
    %c0_597 = arith.constant 0 : index
    %1256 = vector.load %arg2[%1255, %c0_597] : memref<128x1xi32, #tpu.memory_space<vmem>>, vector<8x1xi32>
    %1257 = arith.index_cast %1254 : i32 to index
    %c0_598 = arith.constant 0 : index
    %1258 = vector.load %arg3[%1257, %c0_598] : memref<128x8xf32, #tpu.memory_space<vmem>>, vector<8x8xf32>
    %1259 = vector.broadcast %1256 : vector<8x1xi32> to vector<8x128xi32>
    %1260 = vector.broadcast %6 : vector<1x128xi32> to vector<8x128xi32>
    %1261 = arith.cmpi eq, %1259, %1260 : vector<8x128xi32>
    %1262 = vector.extract_strided_slice %1258 {offsets = [0, 0], sizes = [8, 1], strides = [1, 1]} : vector<8x8xf32> to vector<8x1xf32>
    %1263 = vector.shape_cast %1262 : vector<8x1xf32> to vector<8x1xf32>
    %1264 = vector.broadcast %1263 : vector<8x1xf32> to vector<8x128xf32>
    %1265 = vector.broadcast %cst : f32 to vector<8x128xf32>
    %1266 = arith.select %1261, %1264, %1265 : vector<8x128xi1>, vector<8x128xf32>
    %cst_599 = arith.constant dense<0xFF800000> : vector<128xf32>
    %1267 = vector.multi_reduction <maximumf>, %1266, %cst_599 [0] : vector<8x128xf32> to vector<128xf32>
    %1268 = vector.shape_cast %1267 : vector<128xf32> to vector<1x128xf32>
    %c0_600 = arith.constant 0 : index
    %c0_601 = arith.constant 0 : index
    %1269 = vector.load %arg5[%c0_600, %c0_601] : memref<8x128xf32, #tpu.memory_space<vmem>>, vector<1x128xf32>
    %1270 = arith.maximumf %1269, %1268 : vector<1x128xf32>
    %c0_602 = arith.constant 0 : index
    %c0_603 = arith.constant 0 : index
    %1271 = vector.load %arg5[%c0_602, %c0_603] : memref<8x128xf32, #tpu.memory_space<vmem>>, vector<1x128xf32>
    tpu.vector_store %arg5[%c0_602, %c0_603], %1270 {strides = array<i32>} : memref<8x128xf32, #tpu.memory_space<vmem>>, vector<1x128xf32>,
    %1272 = vector.extract_strided_slice %1258 {offsets = [0, 1], sizes = [8, 1], strides = [1, 1]} : vector<8x8xf32> to vector<8x1xf32>
    %1273 = vector.shape_cast %1272 : vector<8x1xf32> to vector<8x1xf32>
    %1274 = vector.broadcast %1273 : vector<8x1xf32> to vector<8x128xf32>
    %1275 = vector.broadcast %cst : f32 to vector<8x128xf32>
    %1276 = arith.select %1261, %1274, %1275 : vector<8x128xi1>, vector<8x128xf32>
    %cst_604 = arith.constant dense<0xFF800000> : vector<128xf32>
    %1277 = vector.multi_reduction <maximumf>, %1276, %cst_604 [0] : vector<8x128xf32> to vector<128xf32>
    %1278 = vector.shape_cast %1277 : vector<128xf32> to vector<1x128xf32>
    %c1_605 = arith.constant 1 : index
    %c0_606 = arith.constant 0 : index
    %1279 = vector.load %arg5[%c1_605, %c0_606] : memref<8x128xf32, #tpu.memory_space<vmem>>, vector<1x128xf32>
    %1280 = arith.maximumf %1279, %1278 : vector<1x128xf32>
    %c1_607 = arith.constant 1 : index
    %c0_608 = arith.constant 0 : index
    %1281 = vector.load %arg5[%c1_607, %c0_608] : memref<8x128xf32, #tpu.memory_space<vmem>>, vector<1x128xf32>
    tpu.vector_store %arg5[%c1_607, %c0_608], %1280 {strides = array<i32>} : memref<8x128xf32, #tpu.memory_space<vmem>>, vector<1x128xf32>,
    %1282 = vector.extract_strided_slice %1258 {offsets = [0, 2], sizes = [8, 1], strides = [1, 1]} : vector<8x8xf32> to vector<8x1xf32>
    %1283 = vector.shape_cast %1282 : vector<8x1xf32> to vector<8x1xf32>
    %1284 = vector.broadcast %1283 : vector<8x1xf32> to vector<8x128xf32>
    %1285 = vector.broadcast %cst : f32 to vector<8x128xf32>
    %1286 = arith.select %1261, %1284, %1285 : vector<8x128xi1>, vector<8x128xf32>
    %cst_609 = arith.constant dense<0xFF800000> : vector<128xf32>
    %1287 = vector.multi_reduction <maximumf>, %1286, %cst_609 [0] : vector<8x128xf32> to vector<128xf32>
    %1288 = vector.shape_cast %1287 : vector<128xf32> to vector<1x128xf32>
    %c2_610 = arith.constant 2 : index
    %c0_611 = arith.constant 0 : index
    %1289 = vector.load %arg5[%c2_610, %c0_611] : memref<8x128xf32, #tpu.memory_space<vmem>>, vector<1x128xf32>
    %1290 = arith.maximumf %1289, %1288 : vector<1x128xf32>
    %c2_612 = arith.constant 2 : index
    %c0_613 = arith.constant 0 : index
    %1291 = vector.load %arg5[%c2_612, %c0_613] : memref<8x128xf32, #tpu.memory_space<vmem>>, vector<1x128xf32>
    tpu.vector_store %arg5[%c2_612, %c0_613], %1290 {strides = array<i32>} : memref<8x128xf32, #tpu.memory_space<vmem>>, vector<1x128xf32>,
    %1292 = vector.extract_strided_slice %1258 {offsets = [0, 3], sizes = [8, 1], strides = [1, 1]} : vector<8x8xf32> to vector<8x1xf32>
    %1293 = vector.shape_cast %1292 : vector<8x1xf32> to vector<8x1xf32>
    %1294 = vector.broadcast %1293 : vector<8x1xf32> to vector<8x128xf32>
    %1295 = vector.broadcast %cst : f32 to vector<8x128xf32>
    %1296 = arith.select %1261, %1294, %1295 : vector<8x128xi1>, vector<8x128xf32>
    %cst_614 = arith.constant dense<0xFF800000> : vector<128xf32>
    %1297 = vector.multi_reduction <maximumf>, %1296, %cst_614 [0] : vector<8x128xf32> to vector<128xf32>
    %1298 = vector.shape_cast %1297 : vector<128xf32> to vector<1x128xf32>
    %c3_615 = arith.constant 3 : index
    %c0_616 = arith.constant 0 : index
    %1299 = vector.load %arg5[%c3_615, %c0_616] : memref<8x128xf32, #tpu.memory_space<vmem>>, vector<1x128xf32>
    %1300 = arith.maximumf %1299, %1298 : vector<1x128xf32>
    %c3_617 = arith.constant 3 : index
    %c0_618 = arith.constant 0 : index
    %1301 = vector.load %arg5[%c3_617, %c0_618] : memref<8x128xf32, #tpu.memory_space<vmem>>, vector<1x128xf32>
    tpu.vector_store %arg5[%c3_617, %c0_618], %1300 {strides = array<i32>} : memref<8x128xf32, #tpu.memory_space<vmem>>, vector<1x128xf32>,
    %1302 = vector.extract_strided_slice %1258 {offsets = [0, 4], sizes = [8, 1], strides = [1, 1]} : vector<8x8xf32> to vector<8x1xf32>
    %1303 = vector.shape_cast %1302 : vector<8x1xf32> to vector<8x1xf32>
    %1304 = vector.broadcast %1303 : vector<8x1xf32> to vector<8x128xf32>
    %1305 = vector.broadcast %cst : f32 to vector<8x128xf32>
    %1306 = arith.select %1261, %1304, %1305 : vector<8x128xi1>, vector<8x128xf32>
    %cst_619 = arith.constant dense<0xFF800000> : vector<128xf32>
    %1307 = vector.multi_reduction <maximumf>, %1306, %cst_619 [0] : vector<8x128xf32> to vector<128xf32>
    %1308 = vector.shape_cast %1307 : vector<128xf32> to vector<1x128xf32>
    %c4_620 = arith.constant 4 : index
    %c0_621 = arith.constant 0 : index
    %1309 = vector.load %arg5[%c4_620, %c0_621] : memref<8x128xf32, #tpu.memory_space<vmem>>, vector<1x128xf32>
    %1310 = arith.maximumf %1309, %1308 : vector<1x128xf32>
    %c4_622 = arith.constant 4 : index
    %c0_623 = arith.constant 0 : index
    %1311 = vector.load %arg5[%c4_622, %c0_623] : memref<8x128xf32, #tpu.memory_space<vmem>>, vector<1x128xf32>
    tpu.vector_store %arg5[%c4_622, %c0_623], %1310 {strides = array<i32>} : memref<8x128xf32, #tpu.memory_space<vmem>>, vector<1x128xf32>,
    %1312 = vector.extract_strided_slice %1258 {offsets = [0, 5], sizes = [8, 1], strides = [1, 1]} : vector<8x8xf32> to vector<8x1xf32>
    %1313 = vector.shape_cast %1312 : vector<8x1xf32> to vector<8x1xf32>
    %1314 = vector.broadcast %1313 : vector<8x1xf32> to vector<8x128xf32>
    %1315 = vector.broadcast %cst : f32 to vector<8x128xf32>
    %1316 = arith.select %1261, %1314, %1315 : vector<8x128xi1>, vector<8x128xf32>
    %cst_624 = arith.constant dense<0xFF800000> : vector<128xf32>
    %1317 = vector.multi_reduction <maximumf>, %1316, %cst_624 [0] : vector<8x128xf32> to vector<128xf32>
    %1318 = vector.shape_cast %1317 : vector<128xf32> to vector<1x128xf32>
    %c5_625 = arith.constant 5 : index
    %c0_626 = arith.constant 0 : index
    %1319 = vector.load %arg5[%c5_625, %c0_626] : memref<8x128xf32, #tpu.memory_space<vmem>>, vector<1x128xf32>
    %1320 = arith.maximumf %1319, %1318 : vector<1x128xf32>
    %c5_627 = arith.constant 5 : index
    %c0_628 = arith.constant 0 : index
    %1321 = vector.load %arg5[%c5_627, %c0_628] : memref<8x128xf32, #tpu.memory_space<vmem>>, vector<1x128xf32>
    tpu.vector_store %arg5[%c5_627, %c0_628], %1320 {strides = array<i32>} : memref<8x128xf32, #tpu.memory_space<vmem>>, vector<1x128xf32>,
    %1322 = vector.extract_strided_slice %1258 {offsets = [0, 6], sizes = [8, 1], strides = [1, 1]} : vector<8x8xf32> to vector<8x1xf32>
    %1323 = vector.shape_cast %1322 : vector<8x1xf32> to vector<8x1xf32>
    %1324 = vector.broadcast %1323 : vector<8x1xf32> to vector<8x128xf32>
    %1325 = vector.broadcast %cst : f32 to vector<8x128xf32>
    %1326 = arith.select %1261, %1324, %1325 : vector<8x128xi1>, vector<8x128xf32>
    %cst_629 = arith.constant dense<0xFF800000> : vector<128xf32>
    %1327 = vector.multi_reduction <maximumf>, %1326, %cst_629 [0] : vector<8x128xf32> to vector<128xf32>
    %1328 = vector.shape_cast %1327 : vector<128xf32> to vector<1x128xf32>
    %c6_630 = arith.constant 6 : index
    %c0_631 = arith.constant 0 : index
    %1329 = vector.load %arg5[%c6_630, %c0_631] : memref<8x128xf32, #tpu.memory_space<vmem>>, vector<1x128xf32>
    %1330 = arith.maximumf %1329, %1328 : vector<1x128xf32>
    %c6_632 = arith.constant 6 : index
    %c0_633 = arith.constant 0 : index
    %1331 = vector.load %arg5[%c6_632, %c0_633] : memref<8x128xf32, #tpu.memory_space<vmem>>, vector<1x128xf32>
    tpu.vector_store %arg5[%c6_632, %c0_633], %1330 {strides = array<i32>} : memref<8x128xf32, #tpu.memory_space<vmem>>, vector<1x128xf32>,
    %1332 = vector.extract_strided_slice %1258 {offsets = [0, 7], sizes = [8, 1], strides = [1, 1]} : vector<8x8xf32> to vector<8x1xf32>
    %1333 = vector.shape_cast %1332 : vector<8x1xf32> to vector<8x1xf32>
    %1334 = vector.broadcast %1333 : vector<8x1xf32> to vector<8x128xf32>
    %1335 = vector.broadcast %cst : f32 to vector<8x128xf32>
    %1336 = arith.select %1261, %1334, %1335 : vector<8x128xi1>, vector<8x128xf32>
    %cst_634 = arith.constant dense<0xFF800000> : vector<128xf32>
    %1337 = vector.multi_reduction <maximumf>, %1336, %cst_634 [0] : vector<8x128xf32> to vector<128xf32>
    %1338 = vector.shape_cast %1337 : vector<128xf32> to vector<1x128xf32>
    %c7_635 = arith.constant 7 : index
    %c0_636 = arith.constant 0 : index
    %1339 = vector.load %arg5[%c7_635, %c0_636] : memref<8x128xf32, #tpu.memory_space<vmem>>, vector<1x128xf32>
    %1340 = arith.maximumf %1339, %1338 : vector<1x128xf32>
    %c7_637 = arith.constant 7 : index
    %c0_638 = arith.constant 0 : index
    %1341 = vector.load %arg5[%c7_637, %c0_638] : memref<8x128xf32, #tpu.memory_space<vmem>>, vector<1x128xf32>
    tpu.vector_store %arg5[%c7_637, %c0_638], %1340 {strides = array<i32>} : memref<8x128xf32, #tpu.memory_space<vmem>>, vector<1x128xf32>,
    %c15_i32 = arith.constant 15 : i32
    %c8_i32_639 = arith.constant 8 : i32
    %1342 = arith.muli %c15_i32, %c8_i32_639 : i32
    %1343 = tpu.assume_multiple %1342, 8 : i32
    %1344 = arith.index_cast %1343 : i32 to index
    %c0_640 = arith.constant 0 : index
    %1345 = vector.load %arg2[%1344, %c0_640] : memref<128x1xi32, #tpu.memory_space<vmem>>, vector<8x1xi32>
    %1346 = arith.index_cast %1343 : i32 to index
    %c0_641 = arith.constant 0 : index
    %1347 = vector.load %arg3[%1346, %c0_641] : memref<128x8xf32, #tpu.memory_space<vmem>>, vector<8x8xf32>
    %1348 = vector.broadcast %1345 : vector<8x1xi32> to vector<8x128xi32>
    %1349 = vector.broadcast %6 : vector<1x128xi32> to vector<8x128xi32>
    %1350 = arith.cmpi eq, %1348, %1349 : vector<8x128xi32>
    %1351 = vector.extract_strided_slice %1347 {offsets = [0, 0], sizes = [8, 1], strides = [1, 1]} : vector<8x8xf32> to vector<8x1xf32>
    %1352 = vector.shape_cast %1351 : vector<8x1xf32> to vector<8x1xf32>
    %1353 = vector.broadcast %1352 : vector<8x1xf32> to vector<8x128xf32>
    %1354 = vector.broadcast %cst : f32 to vector<8x128xf32>
    %1355 = arith.select %1350, %1353, %1354 : vector<8x128xi1>, vector<8x128xf32>
    %cst_642 = arith.constant dense<0xFF800000> : vector<128xf32>
    %1356 = vector.multi_reduction <maximumf>, %1355, %cst_642 [0] : vector<8x128xf32> to vector<128xf32>
    %1357 = vector.shape_cast %1356 : vector<128xf32> to vector<1x128xf32>
    %c0_643 = arith.constant 0 : index
    %c0_644 = arith.constant 0 : index
    %1358 = vector.load %arg5[%c0_643, %c0_644] : memref<8x128xf32, #tpu.memory_space<vmem>>, vector<1x128xf32>
    %1359 = arith.maximumf %1358, %1357 : vector<1x128xf32>
    %c0_645 = arith.constant 0 : index
    %c0_646 = arith.constant 0 : index
    %1360 = vector.load %arg5[%c0_645, %c0_646] : memref<8x128xf32, #tpu.memory_space<vmem>>, vector<1x128xf32>
    tpu.vector_store %arg5[%c0_645, %c0_646], %1359 {strides = array<i32>} : memref<8x128xf32, #tpu.memory_space<vmem>>, vector<1x128xf32>,
    %1361 = vector.extract_strided_slice %1347 {offsets = [0, 1], sizes = [8, 1], strides = [1, 1]} : vector<8x8xf32> to vector<8x1xf32>
    %1362 = vector.shape_cast %1361 : vector<8x1xf32> to vector<8x1xf32>
    %1363 = vector.broadcast %1362 : vector<8x1xf32> to vector<8x128xf32>
    %1364 = vector.broadcast %cst : f32 to vector<8x128xf32>
    %1365 = arith.select %1350, %1363, %1364 : vector<8x128xi1>, vector<8x128xf32>
    %cst_647 = arith.constant dense<0xFF800000> : vector<128xf32>
    %1366 = vector.multi_reduction <maximumf>, %1365, %cst_647 [0] : vector<8x128xf32> to vector<128xf32>
    %1367 = vector.shape_cast %1366 : vector<128xf32> to vector<1x128xf32>
    %c1_648 = arith.constant 1 : index
    %c0_649 = arith.constant 0 : index
    %1368 = vector.load %arg5[%c1_648, %c0_649] : memref<8x128xf32, #tpu.memory_space<vmem>>, vector<1x128xf32>
    %1369 = arith.maximumf %1368, %1367 : vector<1x128xf32>
    %c1_650 = arith.constant 1 : index
    %c0_651 = arith.constant 0 : index
    %1370 = vector.load %arg5[%c1_650, %c0_651] : memref<8x128xf32, #tpu.memory_space<vmem>>, vector<1x128xf32>
    tpu.vector_store %arg5[%c1_650, %c0_651], %1369 {strides = array<i32>} : memref<8x128xf32, #tpu.memory_space<vmem>>, vector<1x128xf32>,
    %1371 = vector.extract_strided_slice %1347 {offsets = [0, 2], sizes = [8, 1], strides = [1, 1]} : vector<8x8xf32> to vector<8x1xf32>
    %1372 = vector.shape_cast %1371 : vector<8x1xf32> to vector<8x1xf32>
    %1373 = vector.broadcast %1372 : vector<8x1xf32> to vector<8x128xf32>
    %1374 = vector.broadcast %cst : f32 to vector<8x128xf32>
    %1375 = arith.select %1350, %1373, %1374 : vector<8x128xi1>, vector<8x128xf32>
    %cst_652 = arith.constant dense<0xFF800000> : vector<128xf32>
    %1376 = vector.multi_reduction <maximumf>, %1375, %cst_652 [0] : vector<8x128xf32> to vector<128xf32>
    %1377 = vector.shape_cast %1376 : vector<128xf32> to vector<1x128xf32>
    %c2_653 = arith.constant 2 : index
    %c0_654 = arith.constant 0 : index
    %1378 = vector.load %arg5[%c2_653, %c0_654] : memref<8x128xf32, #tpu.memory_space<vmem>>, vector<1x128xf32>
    %1379 = arith.maximumf %1378, %1377 : vector<1x128xf32>
    %c2_655 = arith.constant 2 : index
    %c0_656 = arith.constant 0 : index
    %1380 = vector.load %arg5[%c2_655, %c0_656] : memref<8x128xf32, #tpu.memory_space<vmem>>, vector<1x128xf32>
    tpu.vector_store %arg5[%c2_655, %c0_656], %1379 {strides = array<i32>} : memref<8x128xf32, #tpu.memory_space<vmem>>, vector<1x128xf32>,
    %1381 = vector.extract_strided_slice %1347 {offsets = [0, 3], sizes = [8, 1], strides = [1, 1]} : vector<8x8xf32> to vector<8x1xf32>
    %1382 = vector.shape_cast %1381 : vector<8x1xf32> to vector<8x1xf32>
    %1383 = vector.broadcast %1382 : vector<8x1xf32> to vector<8x128xf32>
    %1384 = vector.broadcast %cst : f32 to vector<8x128xf32>
    %1385 = arith.select %1350, %1383, %1384 : vector<8x128xi1>, vector<8x128xf32>
    %cst_657 = arith.constant dense<0xFF800000> : vector<128xf32>
    %1386 = vector.multi_reduction <maximumf>, %1385, %cst_657 [0] : vector<8x128xf32> to vector<128xf32>
    %1387 = vector.shape_cast %1386 : vector<128xf32> to vector<1x128xf32>
    %c3_658 = arith.constant 3 : index
    %c0_659 = arith.constant 0 : index
    %1388 = vector.load %arg5[%c3_658, %c0_659] : memref<8x128xf32, #tpu.memory_space<vmem>>, vector<1x128xf32>
    %1389 = arith.maximumf %1388, %1387 : vector<1x128xf32>
    %c3_660 = arith.constant 3 : index
    %c0_661 = arith.constant 0 : index
    %1390 = vector.load %arg5[%c3_660, %c0_661] : memref<8x128xf32, #tpu.memory_space<vmem>>, vector<1x128xf32>
    tpu.vector_store %arg5[%c3_660, %c0_661], %1389 {strides = array<i32>} : memref<8x128xf32, #tpu.memory_space<vmem>>, vector<1x128xf32>,
    %1391 = vector.extract_strided_slice %1347 {offsets = [0, 4], sizes = [8, 1], strides = [1, 1]} : vector<8x8xf32> to vector<8x1xf32>
    %1392 = vector.shape_cast %1391 : vector<8x1xf32> to vector<8x1xf32>
    %1393 = vector.broadcast %1392 : vector<8x1xf32> to vector<8x128xf32>
    %1394 = vector.broadcast %cst : f32 to vector<8x128xf32>
    %1395 = arith.select %1350, %1393, %1394 : vector<8x128xi1>, vector<8x128xf32>
    %cst_662 = arith.constant dense<0xFF800000> : vector<128xf32>
    %1396 = vector.multi_reduction <maximumf>, %1395, %cst_662 [0] : vector<8x128xf32> to vector<128xf32>
    %1397 = vector.shape_cast %1396 : vector<128xf32> to vector<1x128xf32>
    %c4_663 = arith.constant 4 : index
    %c0_664 = arith.constant 0 : index
    %1398 = vector.load %arg5[%c4_663, %c0_664] : memref<8x128xf32, #tpu.memory_space<vmem>>, vector<1x128xf32>
    %1399 = arith.maximumf %1398, %1397 : vector<1x128xf32>
    %c4_665 = arith.constant 4 : index
    %c0_666 = arith.constant 0 : index
    %1400 = vector.load %arg5[%c4_665, %c0_666] : memref<8x128xf32, #tpu.memory_space<vmem>>, vector<1x128xf32>
    tpu.vector_store %arg5[%c4_665, %c0_666], %1399 {strides = array<i32>} : memref<8x128xf32, #tpu.memory_space<vmem>>, vector<1x128xf32>,
    %1401 = vector.extract_strided_slice %1347 {offsets = [0, 5], sizes = [8, 1], strides = [1, 1]} : vector<8x8xf32> to vector<8x1xf32>
    %1402 = vector.shape_cast %1401 : vector<8x1xf32> to vector<8x1xf32>
    %1403 = vector.broadcast %1402 : vector<8x1xf32> to vector<8x128xf32>
    %1404 = vector.broadcast %cst : f32 to vector<8x128xf32>
    %1405 = arith.select %1350, %1403, %1404 : vector<8x128xi1>, vector<8x128xf32>
    %cst_667 = arith.constant dense<0xFF800000> : vector<128xf32>
    %1406 = vector.multi_reduction <maximumf>, %1405, %cst_667 [0] : vector<8x128xf32> to vector<128xf32>
    %1407 = vector.shape_cast %1406 : vector<128xf32> to vector<1x128xf32>
    %c5_668 = arith.constant 5 : index
    %c0_669 = arith.constant 0 : index
    %1408 = vector.load %arg5[%c5_668, %c0_669] : memref<8x128xf32, #tpu.memory_space<vmem>>, vector<1x128xf32>
    %1409 = arith.maximumf %1408, %1407 : vector<1x128xf32>
    %c5_670 = arith.constant 5 : index
    %c0_671 = arith.constant 0 : index
    %1410 = vector.load %arg5[%c5_670, %c0_671] : memref<8x128xf32, #tpu.memory_space<vmem>>, vector<1x128xf32>
    tpu.vector_store %arg5[%c5_670, %c0_671], %1409 {strides = array<i32>} : memref<8x128xf32, #tpu.memory_space<vmem>>, vector<1x128xf32>,
    %1411 = vector.extract_strided_slice %1347 {offsets = [0, 6], sizes = [8, 1], strides = [1, 1]} : vector<8x8xf32> to vector<8x1xf32>
    %1412 = vector.shape_cast %1411 : vector<8x1xf32> to vector<8x1xf32>
    %1413 = vector.broadcast %1412 : vector<8x1xf32> to vector<8x128xf32>
    %1414 = vector.broadcast %cst : f32 to vector<8x128xf32>
    %1415 = arith.select %1350, %1413, %1414 : vector<8x128xi1>, vector<8x128xf32>
    %cst_672 = arith.constant dense<0xFF800000> : vector<128xf32>
    %1416 = vector.multi_reduction <maximumf>, %1415, %cst_672 [0] : vector<8x128xf32> to vector<128xf32>
    %1417 = vector.shape_cast %1416 : vector<128xf32> to vector<1x128xf32>
    %c6_673 = arith.constant 6 : index
    %c0_674 = arith.constant 0 : index
    %1418 = vector.load %arg5[%c6_673, %c0_674] : memref<8x128xf32, #tpu.memory_space<vmem>>, vector<1x128xf32>
    %1419 = arith.maximumf %1418, %1417 : vector<1x128xf32>
    %c6_675 = arith.constant 6 : index
    %c0_676 = arith.constant 0 : index
    %1420 = vector.load %arg5[%c6_675, %c0_676] : memref<8x128xf32, #tpu.memory_space<vmem>>, vector<1x128xf32>
    tpu.vector_store %arg5[%c6_675, %c0_676], %1419 {strides = array<i32>} : memref<8x128xf32, #tpu.memory_space<vmem>>, vector<1x128xf32>,
    %1421 = vector.extract_strided_slice %1347 {offsets = [0, 7], sizes = [8, 1], strides = [1, 1]} : vector<8x8xf32> to vector<8x1xf32>
    %1422 = vector.shape_cast %1421 : vector<8x1xf32> to vector<8x1xf32>
    %1423 = vector.broadcast %1422 : vector<8x1xf32> to vector<8x128xf32>
    %1424 = vector.broadcast %cst : f32 to vector<8x128xf32>
    %1425 = arith.select %1350, %1423, %1424 : vector<8x128xi1>, vector<8x128xf32>
    %cst_677 = arith.constant dense<0xFF800000> : vector<128xf32>
    %1426 = vector.multi_reduction <maximumf>, %1425, %cst_677 [0] : vector<8x128xf32> to vector<128xf32>
    %1427 = vector.shape_cast %1426 : vector<128xf32> to vector<1x128xf32>
    %c7_678 = arith.constant 7 : index
    %c0_679 = arith.constant 0 : index
    %1428 = vector.load %arg5[%c7_678, %c0_679] : memref<8x128xf32, #tpu.memory_space<vmem>>, vector<1x128xf32>
    %1429 = arith.maximumf %1428, %1427 : vector<1x128xf32>
    %c7_680 = arith.constant 7 : index
    %c0_681 = arith.constant 0 : index
    %1430 = vector.load %arg5[%c7_680, %c0_681] : memref<8x128xf32, #tpu.memory_space<vmem>>, vector<1x128xf32>
    tpu.vector_store %arg5[%c7_680, %c0_681], %1429 {strides = array<i32>} : memref<8x128xf32, #tpu.memory_space<vmem>>, vector<1x128xf32>,
    %c16_i32 = arith.constant 16 : i32
    %c0_i32_682 = arith.constant 0 : i32
    %1431 = arith.cmpi eq, %arg1, %c0_i32_682 : i32
    %1432 = arith.extui %1431 : i1 to i32
    %c0_i32_683 = arith.constant 0 : i32
    %1433 = arith.cmpi ne, %1432, %c0_i32_683 : i32
    scf.if %1433 {
      %c0_684 = arith.constant 0 : index
      %c0_685 = arith.constant 0 : index
      %1434 = vector.load %arg5[%c0_684, %c0_685] : memref<8x128xf32, #tpu.memory_space<vmem>>, vector<8x128xf32>
      %c0_686 = arith.constant 0 : index
      %c0_687 = arith.constant 0 : index
      %1435 = vector.load %arg4[%c0_686, %c0_687] : memref<8x128xf32, #tpu.memory_space<vmem>>, vector<8x128xf32>
      tpu.vector_store %arg4[%c0_686, %c0_687], %1434 {strides = array<i32>} : memref<8x128xf32, #tpu.memory_space<vmem>>, vector<8x128xf32>,
    } else {
    }
    return
  }
  func.func @transform_0(%arg0: i32, %arg1: i32) -> (i32, i32) {
    %c0_i32 = arith.constant 0 : i32
    %c0_i32_0 = arith.constant 0 : i32
    return %arg1, %c0_i32 : i32, i32
  }
  func.func @transform_1(%arg0: i32, %arg1: i32) -> (i32, i32) {
    %c0_i32 = arith.constant 0 : i32
    %c0_i32_0 = arith.constant 0 : i32
    return %arg1, %c0_i32 : i32, i32
  }
  func.func @transform_2(%arg0: i32, %arg1: i32) -> (i32, i32) {
    %c0_i32 = arith.constant 0 : i32
    %c0_i32_0 = arith.constant 0 : i32
    return %c0_i32, %arg0 : i32, i32
  }
}

</mosaic_0001>

<llo_original>
// kernel: tpu_custom_call.1
$region0: #{tpu_custom_call.1}
  #allocation0 [shape = 'u32[]', space=smem, size = 0x4, offset = 0x4, fixed_abs, tag = 'smem constant byte address 0x4 - core index']
  #allocation1 [shape = 'u32[144,128]{1,0:T(1,128)}', space=vmem, size = 0x12000, scoped, tag = 'internal scratch']
  #allocation2 [shape = 'f32[8,128]{1,0:T(8,128)}', space=vmem, size = 0x1000, scoped, tag = 'scratch operand']
  %s0 = inlined_call_operand.vmem [shape: s32[128,1], index: 0, kind: input, shape index: {}]
  %s1 = inlined_call_operand.vmem [shape: f32[128,8], index: 1, kind: input, shape index: {}]
  %s2 = inlined_call_operand.hbm [shape: f32[8,128], index: 2, kind: output, shape index: {}]
  %s3 = sld [smem:[#allocation0]]
  $region26: #{tpu_custom_call.1} parent=0
    _
  %s5 = ssub.s32 1, %s3
  %s6 = scalar_select 0, %s5, %s3
  $region1: #{tpu_custom_call.1} parent=0
    #allocation3 [shape = 'u8[4096]{0}', space=vmem, size = 0x1000, scoped, tag = 'output window, operand 0, single buffered']
    #allocation4 [shape = 's32[1]{0}', space=sflag, size = 0x4, scoped, tag = 'scoped memory for tpu_custom_call.1']
    %7 = vsyncpa [#allocation4], 0
    // Predicated region
    $region2: #{tpu_custom_call.1} parent=1 // pred_check
      _
    $region3: #{tpu_custom_call.1} parent=1 // pred_check_branch
      %9 = sbr.rel (0) target = $region5
    $region4: #{tpu_custom_call.1} parent=1 // pred_region
      _
    $region5: #{tpu_custom_call.1} parent=1 // pred_fallthru
      _
    // Predicated region
    $region6: #{tpu_custom_call.1} parent=1 // pred_check
      _
    $region7: #{tpu_custom_call.1} parent=1 // pred_check_branch
      %11 = sbr.rel (0) target = $region9
    $region8: #{tpu_custom_call.1} parent=1 // pred_region
      _
    $region9: #{tpu_custom_call.1} parent=1 // pred_fallthru
      _
    %p12 = scmp.eq.s32.totalorder 0, 0
    // Predicated region
    $region10: #{tpu_custom_call.1} parent=1 // pred_check
      %p13 = pneg %p12
    $region11: #{tpu_custom_call.1} parent=1 // pred_check_branch
      %15 = sbr.rel (%p13) target = $region13
    $region12: #{tpu_custom_call.1} parent=1 // pred_region
      %16 = vst [vmem:[#allocation2] sm:$0xff] 0.0
    $region13: #{tpu_custom_call.1} parent=1 // pred_fallthru
      _
    %s17 = smul.u32 0, 128
    %v18 = vlaneseq
    %v19 = vand.u32 %v18, 127
    %v20 = vstv %s17
    %v21 = vadd.s32 %v20, %v19
    %v22 = vld [vmem:[%s0] sm:$0xff]
    %v23 = vld [vmem:[%s1] sm:$0xff]
    %24 = vset.pattern.permute.xlu0 0
    %25 = vperm.xlu0 %24, %v22
    %v26 = vpop.permute.xlu0 %25
    %vm27 = vcmp.eq.s32.totalorder %v26, %v21
    %29 = vset.pattern.permute.xlu0 0
    %30 = vperm.xlu0 %29, %v23
    %v31 = vpop.permute.xlu0 %30
    %v33 = vsel %vm27, %v31, -inf
    %v34 = vrot.slane %v33, 4
    %v35 = vmax.f32 %v33, %v34
    %v36 = vrot.slane %v35, 2
    %v37 = vmax.f32 %v35, %v36
    %v38 = vrot.slane %v37, 1
    %v39 = vmax.f32 %v37, %v38
    %v40 = vld [vmem:[#allocation2] sm:$0x1]
    %v41 = vmax.f32 %v40, %v39
    %42 = vst [vmem:[#allocation2] sm:$0x1] %v41
    %43 = vset.pattern.permute.xlu0 1
    %44 = vperm.xlu0 %43, %v23
    %v45 = vpop.permute.xlu0 %44
    %v47 = vsel %vm27, %v45, -inf
    %v48 = vrot.slane %v47, 4
    %v49 = vmax.f32 %v47, %v48
    %v50 = vrot.slane %v49, 2
    %v51 = vmax.f32 %v49, %v50
    %v52 = vrot.slane %v51, 1
    %v53 = vmax.f32 %v51, %v52
    %v54 = vld [vmem:[#allocation2 + $0x1] sm:$0x1]
    %v55 = vmax.f32 %v54, %v53
    %56 = vst [vmem:[#allocation2 + $0x1] sm:$0x1] %v55
    %57 = vset.pattern.permute.xlu0 2
    %58 = vperm.xlu0 %57, %v23
    %v59 = vpop.permute.xlu0 %58
    %v61 = vsel %vm27, %v59, -inf
    %v62 = vrot.slane %v61, 4
    %v63 = vmax.f32 %v61, %v62
    %v64 = vrot.slane %v63, 2
    %v65 = vmax.f32 %v63, %v64
    %v66 = vrot.slane %v65, 1
    %v67 = vmax.f32 %v65, %v66
    %v68 = vld [vmem:[#allocation2 + $0x2] sm:$0x1]
    %v69 = vmax.f32 %v68, %v67
    %70 = vst [vmem:[#allocation2 + $0x2] sm:$0x1] %v69
    %71 = vset.pattern.permute.xlu0 3
    %72 = vperm.xlu0 %71, %v23
    %v73 = vpop.permute.xlu0 %72
    %v75 = vsel %vm27, %v73, -inf
    %v76 = vrot.slane %v75, 4
    %v77 = vmax.f32 %v75, %v76
    %v78 = vrot.slane %v77, 2
    %v79 = vmax.f32 %v77, %v78
    %v80 = vrot.slane %v79, 1
    %v81 = vmax.f32 %v79, %v80
    %v82 = vld [vmem:[#allocation2 + $0x3] sm:$0x1]
    %v83 = vmax.f32 %v82, %v81
    %84 = vst [vmem:[#allocation2 + $0x3] sm:$0x1] %v83
    %85 = vset.pattern.permute.xlu0 4
    %86 = vperm.xlu0 %85, %v23
    %v87 = vpop.permute.xlu0 %86
    %v89 = vsel %vm27, %v87, -inf
    %v90 = vrot.slane %v89, 4
    %v91 = vmax.f32 %v89, %v90
    %v92 = vrot.slane %v91, 2
    %v93 = vmax.f32 %v91, %v92
    %v94 = vrot.slane %v93, 1
    %v95 = vmax.f32 %v93, %v94
    %v96 = vld [vmem:[#allocation2 + $0x4] sm:$0x1]
    %v97 = vmax.f32 %v96, %v95
    %98 = vst [vmem:[#allocation2 + $0x4] sm:$0x1] %v97
    %99 = vset.pattern.permute.xlu0 5
    %100 = vperm.xlu0 %99, %v23
    %v101 = vpop.permute.xlu0 %100
    %v103 = vsel %vm27, %v101, -inf
    %v104 = vrot.slane %v103, 4
    %v105 = vmax.f32 %v103, %v104
    %v106 = vrot.slane %v105, 2
    %v107 = vmax.f32 %v105, %v106
    %v108 = vrot.slane %v107, 1
    %v109 = vmax.f32 %v107, %v108
    %v110 = vld [vmem:[#allocation2 + $0x5] sm:$0x1]
    %v111 = vmax.f32 %v110, %v109
    %112 = vst [vmem:[#allocation2 + $0x5] sm:$0x1] %v111
    %113 = vset.pattern.permute.xlu0 6
    %114 = vperm.xlu0 %113, %v23
    %v115 = vpop.permute.xlu0 %114
    %v117 = vsel %vm27, %v115, -inf
    %v118 = vrot.slane %v117, 4
    %v119 = vmax.f32 %v117, %v118
    %v120 = vrot.slane %v119, 2
    %v121 = vmax.f32 %v119, %v120
    %v122 = vrot.slane %v121, 1
    %v123 = vmax.f32 %v121, %v122
    %v124 = vld [vmem:[#allocation2 + $0x6] sm:$0x1]
    %v125 = vmax.f32 %v124, %v123
    %126 = vst [vmem:[#allocation2 + $0x6] sm:$0x1] %v125
    %127 = vset.pattern.permute.xlu0 7
    %128 = vperm.xlu0 %127, %v23
    %v129 = vpop.permute.xlu0 %128
    %v131 = vsel %vm27, %v129, -inf
    %v132 = vrot.slane %v131, 4
    %v133 = vmax.f32 %v131, %v132
    %v134 = vrot.slane %v133, 2
    %v135 = vmax.f32 %v133, %v134
    %v136 = vrot.slane %v135, 1
    %v137 = vmax.f32 %v135, %v136
    %v138 = vld [vmem:[#allocation2 + $0x7] sm:$0x1]
    %v139 = vmax.f32 %v138, %v137
    %140 = vst [vmem:[#allocation2 + $0x7] sm:$0x1] %v139
    %s141 = scalar_lea.vmem %s0, 8
    %v142 = vld [vmem:[%s141] sm:$0xff]
    %s143 = scalar_lea.vmem %s1, 8
    %v144 = vld [vmem:[%s143] sm:$0xff]
    %145 = vset.pattern.permute.xlu0 0
    %146 = vperm.xlu0 %145, %v142
    %v147 = vpop.permute.xlu0 %146
    %vm148 = vcmp.eq.s32.totalorder %v147, %v21
    %150 = vset.pattern.permute.xlu0 0
    %151 = vperm.xlu0 %150, %v144
    %v152 = vpop.permute.xlu0 %151
    %v154 = vsel %vm148, %v152, -inf
    %v155 = vrot.slane %v154, 4
    %v156 = vmax.f32 %v154, %v155
    %v157 = vrot.slane %v156, 2
    %v158 = vmax.f32 %v156, %v157
    %v159 = vrot.slane %v158, 1
    %v160 = vmax.f32 %v158, %v159
    %v161 = vld [vmem:[#allocation2] sm:$0x1]
    %v162 = vmax.f32 %v161, %v160
    %163 = vst [vmem:[#allocation2] sm:$0x1] %v162
    %164 = vset.pattern.permute.xlu0 1
    %165 = vperm.xlu0 %164, %v144
    %v166 = vpop.permute.xlu0 %165
    %v168 = vsel %vm148, %v166, -inf
    %v169 = vrot.slane %v168, 4
    %v170 = vmax.f32 %v168, %v169
    %v171 = vrot.slane %v170, 2
    %v172 = vmax.f32 %v170, %v171
    %v173 = vrot.slane %v172, 1
    %v174 = vmax.f32 %v172, %v173
    %v175 = vld [vmem:[#allocation2 + $0x1] sm:$0x1]
    %v176 = vmax.f32 %v175, %v174
    %177 = vst [vmem:[#allocation2 + $0x1] sm:$0x1] %v176
    %178 = vset.pattern.permute.xlu0 2
    %179 = vperm.xlu0 %178, %v144
    %v180 = vpop.permute.xlu0 %179
    %v182 = vsel %vm148, %v180, -inf
    %v183 = vrot.slane %v182, 4
    %v184 = vmax.f32 %v182, %v183
    %v185 = vrot.slane %v184, 2
    %v186 = vmax.f32 %v184, %v185
    %v187 = vrot.slane %v186, 1
    %v188 = vmax.f32 %v186, %v187
    %v189 = vld [vmem:[#allocation2 + $0x2] sm:$0x1]
    %v190 = vmax.f32 %v189, %v188
    %191 = vst [vmem:[#allocation2 + $0x2] sm:$0x1] %v190
    %192 = vset.pattern.permute.xlu0 3
    %193 = vperm.xlu0 %192, %v144
    %v194 = vpop.permute.xlu0 %193
    %v196 = vsel %vm148, %v194, -inf
    %v197 = vrot.slane %v196, 4
    %v198 = vmax.f32 %v196, %v197
    %v199 = vrot.slane %v198, 2
    %v200 = vmax.f32 %v198, %v199
    %v201 = vrot.slane %v200, 1
    %v202 = vmax.f32 %v200, %v201
    %v203 = vld [vmem:[#allocation2 + $0x3] sm:$0x1]
    %v204 = vmax.f32 %v203, %v202
    %205 = vst [vmem:[#allocation2 + $0x3] sm:$0x1] %v204
    %206 = vset.pattern.permute.xlu0 4
    %207 = vperm.xlu0 %206, %v144
    %v208 = vpop.permute.xlu0 %207
    %v210 = vsel %vm148, %v208, -inf
    %v211 = vrot.slane %v210, 4
    %v212 = vmax.f32 %v210, %v211
    %v213 = vrot.slane %v212, 2
    %v214 = vmax.f32 %v212, %v213
    %v215 = vrot.slane %v214, 1
    %v216 = vmax.f32 %v214, %v215
    %v217 = vld [vmem:[#allocation2 + $0x4] sm:$0x1]
    %v218 = vmax.f32 %v217, %v216
    %219 = vst [vmem:[#allocation2 + $0x4] sm:$0x1] %v218
    %220 = vset.pattern.permute.xlu0 5
    %221 = vperm.xlu0 %220, %v144
    %v222 = vpop.permute.xlu0 %221
    %v224 = vsel %vm148, %v222, -inf
    %v225 = vrot.slane %v224, 4
    %v226 = vmax.f32 %v224, %v225
    %v227 = vrot.slane %v226, 2
    %v228 = vmax.f32 %v226, %v227
    %v229 = vrot.slane %v228, 1
    %v230 = vmax.f32 %v228, %v229
    %v231 = vld [vmem:[#allocation2 + $0x5] sm:$0x1]
    %v232 = vmax.f32 %v231, %v230
    %233 = vst [vmem:[#allocation2 + $0x5] sm:$0x1] %v232
    %234 = vset.pattern.permute.xlu0 6
    %235 = vperm.xlu0 %234, %v144
    %v236 = vpop.permute.xlu0 %235
    %v238 = vsel %vm148, %v236, -inf
    %v239 = vrot.slane %v238, 4
    %v240 = vmax.f32 %v238, %v239
    %v241 = vrot.slane %v240, 2
    %v242 = vmax.f32 %v240, %v241
    %v243 = vrot.slane %v242, 1
    %v244 = vmax.f32 %v242, %v243
    %v245 = vld [vmem:[#allocation2 + $0x6] sm:$0x1]
    %v246 = vmax.f32 %v245, %v244
    %247 = vst [vmem:[#allocation2 + $0x6] sm:$0x1] %v246
    %248 = vset.pattern.permute.xlu0 7
    %249 = vperm.xlu0 %248, %v144
    %v250 = vpop.permute.xlu0 %249
    %v252 = vsel %vm148, %v250, -inf
    %v253 = vrot.slane %v252, 4
    %v254 = vmax.f32 %v252, %v253
    %v255 = vrot.slane %v254, 2
    %v256 = vmax.f32 %v254, %v255
    %v257 = vrot.slane %v256, 1
    %v258 = vmax.f32 %v256, %v257
    %v259 = vld [vmem:[#allocation2 + $0x7] sm:$0x1]
    %v260 = vmax.f32 %v259, %v258
    %261 = vst [vmem:[#allocation2 + $0x7] sm:$0x1] %v260
    %s262 = scalar_lea.vmem %s0, 16
    %v263 = vld [vmem:[%s262] sm:$0xff]
    %s264 = scalar_lea.vmem %s1, 16
    %v265 = vld [vmem:[%s264] sm:$0xff]
    %266 = vset.pattern.permute.xlu0 0
    %267 = vperm.xlu0 %266, %v263
    %v268 = vpop.permute.xlu0 %267
    %vm269 = vcmp.eq.s32.totalorder %v268, %v21
    %271 = vset.pattern.permute.xlu0 0
    %272 = vperm.xlu0 %271, %v265
    %v273 = vpop.permute.xlu0 %272
    %v275 = vsel %vm269, %v273, -inf
    %v276 = vrot.slane %v275, 4
    %v277 = vmax.f32 %v275, %v276
    %v278 = vrot.slane %v277, 2
    %v279 = vmax.f32 %v277, %v278
    %v280 = vrot.slane %v279, 1
    %v281 = vmax.f32 %v279, %v280
    %v282 = vld [vmem:[#allocation2] sm:$0x1]
    %v283 = vmax.f32 %v282, %v281
    %284 = vst [vmem:[#allocation2] sm:$0x1] %v283
    %285 = vset.pattern.permute.xlu0 1
    %286 = vperm.xlu0 %285, %v265
    %v287 = vpop.permute.xlu0 %286
    %v289 = vsel %vm269, %v287, -inf
    %v290 = vrot.slane %v289, 4
    %v291 = vmax.f32 %v289, %v290
    %v292 = vrot.slane %v291, 2
    %v293 = vmax.f32 %v291, %v292
    %v294 = vrot.slane %v293, 1
    %v295 = vmax.f32 %v293, %v294
    %v296 = vld [vmem:[#allocation2 + $0x1] sm:$0x1]
    %v297 = vmax.f32 %v296, %v295
    %298 = vst [vmem:[#allocation2 + $0x1] sm:$0x1] %v297
    %299 = vset.pattern.permute.xlu0 2
    %300 = vperm.xlu0 %299, %v265
    %v301 = vpop.permute.xlu0 %300
    %v303 = vsel %vm269, %v301, -inf
    %v304 = vrot.slane %v303, 4
    %v305 = vmax.f32 %v303, %v304
    %v306 = vrot.slane %v305, 2
    %v307 = vmax.f32 %v305, %v306
    %v308 = vrot.slane %v307, 1
    %v309 = vmax.f32 %v307, %v308
    %v310 = vld [vmem:[#allocation2 + $0x2] sm:$0x1]
    %v311 = vmax.f32 %v310, %v309
    %312 = vst [vmem:[#allocation2 + $0x2] sm:$0x1] %v311
    %313 = vset.pattern.permute.xlu0 3
    %314 = vperm.xlu0 %313, %v265
    %v315 = vpop.permute.xlu0 %314
    %v317 = vsel %vm269, %v315, -inf
    %v318 = vrot.slane %v317, 4
    %v319 = vmax.f32 %v317, %v318
    %v320 = vrot.slane %v319, 2
    %v321 = vmax.f32 %v319, %v320
    %v322 = vrot.slane %v321, 1
    %v323 = vmax.f32 %v321, %v322
    %v324 = vld [vmem:[#allocation2 + $0x3] sm:$0x1]
    %v325 = vmax.f32 %v324, %v323
    %326 = vst [vmem:[#allocation2 + $0x3] sm:$0x1] %v325
    %327 = vset.pattern.permute.xlu0 4
    %328 = vperm.xlu0 %327, %v265
    %v329 = vpop.permute.xlu0 %328
    %v331 = vsel %vm269, %v329, -inf
    %v332 = vrot.slane %v331, 4
    %v333 = vmax.f32 %v331, %v332
    %v334 = vrot.slane %v333, 2
    %v335 = vmax.f32 %v333, %v334
    %v336 = vrot.slane %v335, 1
    %v337 = vmax.f32 %v335, %v336
    %v338 = vld [vmem:[#allocation2 + $0x4] sm:$0x1]
    %v339 = vmax.f32 %v338, %v337
    %340 = vst [vmem:[#allocation2 + $0x4] sm:$0x1] %v339
    %341 = vset.pattern.permute.xlu0 5
    %342 = vperm.xlu0 %341, %v265
    %v343 = vpop.permute.xlu0 %342
    %v345 = vsel %vm269, %v343, -inf
    %v346 = vrot.slane %v345, 4
    %v347 = vmax.f32 %v345, %v346
    %v348 = vrot.slane %v347, 2
    %v349 = vmax.f32 %v347, %v348
    %v350 = vrot.slane %v349, 1
    %v351 = vmax.f32 %v349, %v350
    %v352 = vld [vmem:[#allocation2 + $0x5] sm:$0x1]
    %v353 = vmax.f32 %v352, %v351
    %354 = vst [vmem:[#allocation2 + $0x5] sm:$0x1] %v353
    %355 = vset.pattern.permute.xlu0 6
    %356 = vperm.xlu0 %355, %v265
    %v357 = vpop.permute.xlu0 %356
    %v359 = vsel %vm269, %v357, -inf
    %v360 = vrot.slane %v359, 4
    %v361 = vmax.f32 %v359, %v360
    %v362 = vrot.slane %v361, 2
    %v363 = vmax.f32 %v361, %v362
    %v364 = vrot.slane %v363, 1
    %v365 = vmax.f32 %v363, %v364
    %v366 = vld [vmem:[#allocation2 + $0x6] sm:$0x1]
    %v367 = vmax.f32 %v366, %v365
    %368 = vst [vmem:[#allocation2 + $0x6] sm:$0x1] %v367
    %369 = vset.pattern.permute.xlu0 7
    %370 = vperm.xlu0 %369, %v265
    %v371 = vpop.permute.xlu0 %370
    %v373 = vsel %vm269, %v371, -inf
    %v374 = vrot.slane %v373, 4
    %v375 = vmax.f32 %v373, %v374
    %v376 = vrot.slane %v375, 2
    %v377 = vmax.f32 %v375, %v376
    %v378 = vrot.slane %v377, 1
    %v379 = vmax.f32 %v377, %v378
    %v380 = vld [vmem:[#allocation2 + $0x7] sm:$0x1]
    %v381 = vmax.f32 %v380, %v379
    %382 = vst [vmem:[#allocation2 + $0x7] sm:$0x1] %v381
    %s383 = scalar_lea.vmem %s0, 24
    %v384 = vld [vmem:[%s383] sm:$0xff]
    %s385 = scalar_lea.vmem %s1, 24
    %v386 = vld [vmem:[%s385] sm:$0xff]
    %387 = vset.pattern.permute.xlu0 0
    %388 = vperm.xlu0 %387, %v384
    %v389 = vpop.permute.xlu0 %388
    %vm390 = vcmp.eq.s32.totalorder %v389, %v21
    %392 = vset.pattern.permute.xlu0 0
    %393 = vperm.xlu0 %392, %v386
    %v394 = vpop.permute.xlu0 %393
    %v396 = vsel %vm390, %v394, -inf
    %v397 = vrot.slane %v396, 4
    %v398 = vmax.f32 %v396, %v397
    %v399 = vrot.slane %v398, 2
    %v400 = vmax.f32 %v398, %v399
    %v401 = vrot.slane %v400, 1
    %v402 = vmax.f32 %v400, %v401
    %v403 = vld [vmem:[#allocation2] sm:$0x1]
    %v404 = vmax.f32 %v403, %v402
    %405 = vst [vmem:[#allocation2] sm:$0x1] %v404
    %406 = vset.pattern.permute.xlu0 1
    %407 = vperm.xlu0 %406, %v386
    %v408 = vpop.permute.xlu0 %407
    %v410 = vsel %vm390, %v408, -inf
    %v411 = vrot.slane %v410, 4
    %v412 = vmax.f32 %v410, %v411
    %v413 = vrot.slane %v412, 2
    %v414 = vmax.f32 %v412, %v413
    %v415 = vrot.slane %v414, 1
    %v416 = vmax.f32 %v414, %v415
    %v417 = vld [vmem:[#allocation2 + $0x1] sm:$0x1]
    %v418 = vmax.f32 %v417, %v416
    %419 = vst [vmem:[#allocation2 + $0x1] sm:$0x1] %v418
    %420 = vset.pattern.permute.xlu0 2
    %421 = vperm.xlu0 %420, %v386
    %v422 = vpop.permute.xlu0 %421
    %v424 = vsel %vm390, %v422, -inf
    %v425 = vrot.slane %v424, 4
    %v426 = vmax.f32 %v424, %v425
    %v427 = vrot.slane %v426, 2
    %v428 = vmax.f32 %v426, %v427
    %v429 = vrot.slane %v428, 1
    %v430 = vmax.f32 %v428, %v429
    %v431 = vld [vmem:[#allocation2 + $0x2] sm:$0x1]
    %v432 = vmax.f32 %v431, %v430
    %433 = vst [vmem:[#allocation2 + $0x2] sm:$0x1] %v432
    %434 = vset.pattern.permute.xlu0 3
    %435 = vperm.xlu0 %434, %v386
    %v436 = vpop.permute.xlu0 %435
    %v438 = vsel %vm390, %v436, -inf
    %v439 = vrot.slane %v438, 4
    %v440 = vmax.f32 %v438, %v439
    %v441 = vrot.slane %v440, 2
    %v442 = vmax.f32 %v440, %v441
    %v443 = vrot.slane %v442, 1
    %v444 = vmax.f32 %v442, %v443
    %v445 = vld [vmem:[#allocation2 + $0x3] sm:$0x1]
    %v446 = vmax.f32 %v445, %v444
    %447 = vst [vmem:[#allocation2 + $0x3] sm:$0x1] %v446
    %448 = vset.pattern.permute.xlu0 4
    %449 = vperm.xlu0 %448, %v386
    %v450 = vpop.permute.xlu0 %449
    %v452 = vsel %vm390, %v450, -inf
    %v453 = vrot.slane %v452, 4
    %v454 = vmax.f32 %v452, %v453
    %v455 = vrot.slane %v454, 2
    %v456 = vmax.f32 %v454, %v455
    %v457 = vrot.slane %v456, 1
    %v458 = vmax.f32 %v456, %v457
    %v459 = vld [vmem:[#allocation2 + $0x4] sm:$0x1]
    %v460 = vmax.f32 %v459, %v458
    %461 = vst [vmem:[#allocation2 + $0x4] sm:$0x1] %v460
    %462 = vset.pattern.permute.xlu0 5
    %463 = vperm.xlu0 %462, %v386
    %v464 = vpop.permute.xlu0 %463
    %v466 = vsel %vm390, %v464, -inf
    %v467 = vrot.slane %v466, 4
    %v468 = vmax.f32 %v466, %v467
    %v469 = vrot.slane %v468, 2
    %v470 = vmax.f32 %v468, %v469
    %v471 = vrot.slane %v470, 1
    %v472 = vmax.f32 %v470, %v471
    %v473 = vld [vmem:[#allocation2 + $0x5] sm:$0x1]
    %v474 = vmax.f32 %v473, %v472
    %475 = vst [vmem:[#allocation2 + $0x5] sm:$0x1] %v474
    %476 = vset.pattern.permute.xlu0 6
    %477 = vperm.xlu0 %476, %v386
    %v478 = vpop.permute.xlu0 %477
    %v480 = vsel %vm390, %v478, -inf
    %v481 = vrot.slane %v480, 4
    %v482 = vmax.f32 %v480, %v481
    %v483 = vrot.slane %v482, 2
    %v484 = vmax.f32 %v482, %v483
    %v485 = vrot.slane %v484, 1
    %v486 = vmax.f32 %v484, %v485
    %v487 = vld [vmem:[#allocation2 + $0x6] sm:$0x1]
    %v488 = vmax.f32 %v487, %v486
    %489 = vst [vmem:[#allocation2 + $0x6] sm:$0x1] %v488
    %490 = vset.pattern.permute.xlu0 7
    %491 = vperm.xlu0 %490, %v386
    %v492 = vpop.permute.xlu0 %491
    %v494 = vsel %vm390, %v492, -inf
    %v495 = vrot.slane %v494, 4
    %v496 = vmax.f32 %v494, %v495
    %v497 = vrot.slane %v496, 2
    %v498 = vmax.f32 %v496, %v497
    %v499 = vrot.slane %v498, 1
    %v500 = vmax.f32 %v498, %v499
    %v501 = vld [vmem:[#allocation2 + $0x7] sm:$0x1]
    %v502 = vmax.f32 %v501, %v500
    %503 = vst [vmem:[#allocation2 + $0x7] sm:$0x1] %v502
    %s504 = scalar_lea.vmem %s0, 32
    %v505 = vld [vmem:[%s504] sm:$0xff]
    %s506 = scalar_lea.vmem %s1, 32
    %v507 = vld [vmem:[%s506] sm:$0xff]
    %508 = vset.pattern.permute.xlu0 0
    %509 = vperm.xlu0 %508, %v505
    %v510 = vpop.permute.xlu0 %509
    %vm511 = vcmp.eq.s32.totalorder %v510, %v21
    %513 = vset.pattern.permute.xlu0 0
    %514 = vperm.xlu0 %513, %v507
    %v515 = vpop.permute.xlu0 %514
    %v517 = vsel %vm511, %v515, -inf
    %v518 = vrot.slane %v517, 4
    %v519 = vmax.f32 %v517, %v518
    %v520 = vrot.slane %v519, 2
    %v521 = vmax.f32 %v519, %v520
    %v522 = vrot.slane %v521, 1
    %v523 = vmax.f32 %v521, %v522
    %v524 = vld [vmem:[#allocation2] sm:$0x1]
    %v525 = vmax.f32 %v524, %v523
    %526 = vst [vmem:[#allocation2] sm:$0x1] %v525
    %527 = vset.pattern.permute.xlu0 1
    %528 = vperm.xlu0 %527, %v507
    %v529 = vpop.permute.xlu0 %528
    %v531 = vsel %vm511, %v529, -inf
    %v532 = vrot.slane %v531, 4
    %v533 = vmax.f32 %v531, %v532
    %v534 = vrot.slane %v533, 2
    %v535 = vmax.f32 %v533, %v534
    %v536 = vrot.slane %v535, 1
    %v537 = vmax.f32 %v535, %v536
    %v538 = vld [vmem:[#allocation2 + $0x1] sm:$0x1]
    %v539 = vmax.f32 %v538, %v537
    %540 = vst [vmem:[#allocation2 + $0x1] sm:$0x1] %v539
    %541 = vset.pattern.permute.xlu0 2
    %542 = vperm.xlu0 %541, %v507
    %v543 = vpop.permute.xlu0 %542
    %v545 = vsel %vm511, %v543, -inf
    %v546 = vrot.slane %v545, 4
    %v547 = vmax.f32 %v545, %v546
    %v548 = vrot.slane %v547, 2
    %v549 = vmax.f32 %v547, %v548
    %v550 = vrot.slane %v549, 1
    %v551 = vmax.f32 %v549, %v550
    %v552 = vld [vmem:[#allocation2 + $0x2] sm:$0x1]
    %v553 = vmax.f32 %v552, %v551
    %554 = vst [vmem:[#allocation2 + $0x2] sm:$0x1] %v553
    %555 = vset.pattern.permute.xlu0 3
    %556 = vperm.xlu0 %555, %v507
    %v557 = vpop.permute.xlu0 %556
    %v559 = vsel %vm511, %v557, -inf
    %v560 = vrot.slane %v559, 4
    %v561 = vmax.f32 %v559, %v560
    %v562 = vrot.slane %v561, 2
    %v563 = vmax.f32 %v561, %v562
    %v564 = vrot.slane %v563, 1
    %v565 = vmax.f32 %v563, %v564
    %v566 = vld [vmem:[#allocation2 + $0x3] sm:$0x1]
    %v567 = vmax.f32 %v566, %v565
    %568 = vst [vmem:[#allocation2 + $0x3] sm:$0x1] %v567
    %569 = vset.pattern.permute.xlu0 4
    %570 = vperm.xlu0 %569, %v507
    %v571 = vpop.permute.xlu0 %570
    %v573 = vsel %vm511, %v571, -inf
    %v574 = vrot.slane %v573, 4
    %v575 = vmax.f32 %v573, %v574
    %v576 = vrot.slane %v575, 2
    %v577 = vmax.f32 %v575, %v576
    %v578 = vrot.slane %v577, 1
    %v579 = vmax.f32 %v577, %v578
    %v580 = vld [vmem:[#allocation2 + $0x4] sm:$0x1]
    %v581 = vmax.f32 %v580, %v579
    %582 = vst [vmem:[#allocation2 + $0x4] sm:$0x1] %v581
    %583 = vset.pattern.permute.xlu0 5
    %584 = vperm.xlu0 %583, %v507
    %v585 = vpop.permute.xlu0 %584
    %v587 = vsel %vm511, %v585, -inf
    %v588 = vrot.slane %v587, 4
    %v589 = vmax.f32 %v587, %v588
    %v590 = vrot.slane %v589, 2
    %v591 = vmax.f32 %v589, %v590
    %v592 = vrot.slane %v591, 1
    %v593 = vmax.f32 %v591, %v592
    %v594 = vld [vmem:[#allocation2 + $0x5] sm:$0x1]
    %v595 = vmax.f32 %v594, %v593
    %596 = vst [vmem:[#allocation2 + $0x5] sm:$0x1] %v595
    %597 = vset.pattern.permute.xlu0 6
    %598 = vperm.xlu0 %597, %v507
    %v599 = vpop.permute.xlu0 %598
    %v601 = vsel %vm511, %v599, -inf
    %v602 = vrot.slane %v601, 4
    %v603 = vmax.f32 %v601, %v602
    %v604 = vrot.slane %v603, 2
    %v605 = vmax.f32 %v603, %v604
    %v606 = vrot.slane %v605, 1
    %v607 = vmax.f32 %v605, %v606
    %v608 = vld [vmem:[#allocation2 + $0x6] sm:$0x1]
    %v609 = vmax.f32 %v608, %v607
    %610 = vst [vmem:[#allocation2 + $0x6] sm:$0x1] %v609
    %611 = vset.pattern.permute.xlu0 7
    %612 = vperm.xlu0 %611, %v507
    %v613 = vpop.permute.xlu0 %612
    %v615 = vsel %vm511, %v613, -inf
    %v616 = vrot.slane %v615, 4
    %v617 = vmax.f32 %v615, %v616
    %v618 = vrot.slane %v617, 2
    %v619 = vmax.f32 %v617, %v618
    %v620 = vrot.slane %v619, 1
    %v621 = vmax.f32 %v619, %v620
    %v622 = vld [vmem:[#allocation2 + $0x7] sm:$0x1]
    %v623 = vmax.f32 %v622, %v621
    %624 = vst [vmem:[#allocation2 + $0x7] sm:$0x1] %v623
    %s625 = scalar_lea.vmem %s0, 40
    %v626 = vld [vmem:[%s625] sm:$0xff]
    %s627 = scalar_lea.vmem %s1, 40
    %v628 = vld [vmem:[%s627] sm:$0xff]
    %629 = vset.pattern.permute.xlu0 0
    %630 = vperm.xlu0 %629, %v626
    %v631 = vpop.permute.xlu0 %630
    %vm632 = vcmp.eq.s32.totalorder %v631, %v21
    %634 = vset.pattern.permute.xlu0 0
    %635 = vperm.xlu0 %634, %v628
    %v636 = vpop.permute.xlu0 %635
    %v638 = vsel %vm632, %v636, -inf
    %v639 = vrot.slane %v638, 4
    %v640 = vmax.f32 %v638, %v639
    %v641 = vrot.slane %v640, 2
    %v642 = vmax.f32 %v640, %v641
    %v643 = vrot.slane %v642, 1
    %v644 = vmax.f32 %v642, %v643
    %v645 = vld [vmem:[#allocation2] sm:$0x1]
    %v646 = vmax.f32 %v645, %v644
    %647 = vst [vmem:[#allocation2] sm:$0x1] %v646
    %648 = vset.pattern.permute.xlu0 1
    %649 = vperm.xlu0 %648, %v628
    %v650 = vpop.permute.xlu0 %649
    %v652 = vsel %vm632, %v650, -inf
    %v653 = vrot.slane %v652, 4
    %v654 = vmax.f32 %v652, %v653
    %v655 = vrot.slane %v654, 2
    %v656 = vmax.f32 %v654, %v655
    %v657 = vrot.slane %v656, 1
    %v658 = vmax.f32 %v656, %v657
    %v659 = vld [vmem:[#allocation2 + $0x1] sm:$0x1]
    %v660 = vmax.f32 %v659, %v658
    %661 = vst [vmem:[#allocation2 + $0x1] sm:$0x1] %v660
    %662 = vset.pattern.permute.xlu0 2
    %663 = vperm.xlu0 %662, %v628
    %v664 = vpop.permute.xlu0 %663
    %v666 = vsel %vm632, %v664, -inf
    %v667 = vrot.slane %v666, 4
    %v668 = vmax.f32 %v666, %v667
    %v669 = vrot.slane %v668, 2
    %v670 = vmax.f32 %v668, %v669
    %v671 = vrot.slane %v670, 1
    %v672 = vmax.f32 %v670, %v671
    %v673 = vld [vmem:[#allocation2 + $0x2] sm:$0x1]
    %v674 = vmax.f32 %v673, %v672
    %675 = vst [vmem:[#allocation2 + $0x2] sm:$0x1] %v674
    %676 = vset.pattern.permute.xlu0 3
    %677 = vperm.xlu0 %676, %v628
    %v678 = vpop.permute.xlu0 %677
    %v680 = vsel %vm632, %v678, -inf
    %v681 = vrot.slane %v680, 4
    %v682 = vmax.f32 %v680, %v681
    %v683 = vrot.slane %v682, 2
    %v684 = vmax.f32 %v682, %v683
    %v685 = vrot.slane %v684, 1
    %v686 = vmax.f32 %v684, %v685
    %v687 = vld [vmem:[#allocation2 + $0x3] sm:$0x1]
    %v688 = vmax.f32 %v687, %v686
    %689 = vst [vmem:[#allocation2 + $0x3] sm:$0x1] %v688
    %690 = vset.pattern.permute.xlu0 4
    %691 = vperm.xlu0 %690, %v628
    %v692 = vpop.permute.xlu0 %691
    %v694 = vsel %vm632, %v692, -inf
    %v695 = vrot.slane %v694, 4
    %v696 = vmax.f32 %v694, %v695
    %v697 = vrot.slane %v696, 2
    %v698 = vmax.f32 %v696, %v697
    %v699 = vrot.slane %v698, 1
    %v700 = vmax.f32 %v698, %v699
    %v701 = vld [vmem:[#allocation2 + $0x4] sm:$0x1]
    %v702 = vmax.f32 %v701, %v700
    %703 = vst [vmem:[#allocation2 + $0x4] sm:$0x1] %v702
    %704 = vset.pattern.permute.xlu0 5
    %705 = vperm.xlu0 %704, %v628
    %v706 = vpop.permute.xlu0 %705
    %v708 = vsel %vm632, %v706, -inf
    %v709 = vrot.slane %v708, 4
    %v710 = vmax.f32 %v708, %v709
    %v711 = vrot.slane %v710, 2
    %v712 = vmax.f32 %v710, %v711
    %v713 = vrot.slane %v712, 1
    %v714 = vmax.f32 %v712, %v713
    %v715 = vld [vmem:[#allocation2 + $0x5] sm:$0x1]
    %v716 = vmax.f32 %v715, %v714
    %717 = vst [vmem:[#allocation2 + $0x5] sm:$0x1] %v716
    %718 = vset.pattern.permute.xlu0 6
    %719 = vperm.xlu0 %718, %v628
    %v720 = vpop.permute.xlu0 %719
    %v722 = vsel %vm632, %v720, -inf
    %v723 = vrot.slane %v722, 4
    %v724 = vmax.f32 %v722, %v723
    %v725 = vrot.slane %v724, 2
    %v726 = vmax.f32 %v724, %v725
    %v727 = vrot.slane %v726, 1
    %v728 = vmax.f32 %v726, %v727
    %v729 = vld [vmem:[#allocation2 + $0x6] sm:$0x1]
    %v730 = vmax.f32 %v729, %v728
    %731 = vst [vmem:[#allocation2 + $0x6] sm:$0x1] %v730
    %732 = vset.pattern.permute.xlu0 7
    %733 = vperm.xlu0 %732, %v628
    %v734 = vpop.permute.xlu0 %733
    %v736 = vsel %vm632, %v734, -inf
    %v737 = vrot.slane %v736, 4
    %v738 = vmax.f32 %v736, %v737
    %v739 = vrot.slane %v738, 2
    %v740 = vmax.f32 %v738, %v739
    %v741 = vrot.slane %v740, 1
    %v742 = vmax.f32 %v740, %v741
    %v743 = vld [vmem:[#allocation2 + $0x7] sm:$0x1]
    %v744 = vmax.f32 %v743, %v742
    %745 = vst [vmem:[#allocation2 + $0x7] sm:$0x1] %v744
    %s746 = scalar_lea.vmem %s0, 48
    %v747 = vld [vmem:[%s746] sm:$0xff]
    %s748 = scalar_lea.vmem %s1, 48
    %v749 = vld [vmem:[%s748] sm:$0xff]
    %750 = vset.pattern.permute.xlu0 0
    %751 = vperm.xlu0 %750, %v747
    %v752 = vpop.permute.xlu0 %751
    %vm753 = vcmp.eq.s32.totalorder %v752, %v21
    %755 = vset.pattern.permute.xlu0 0
    %756 = vperm.xlu0 %755, %v749
    %v757 = vpop.permute.xlu0 %756
    %v759 = vsel %vm753, %v757, -inf
    %v760 = vrot.slane %v759, 4
    %v761 = vmax.f32 %v759, %v760
    %v762 = vrot.slane %v761, 2
    %v763 = vmax.f32 %v761, %v762
    %v764 = vrot.slane %v763, 1
    %v765 = vmax.f32 %v763, %v764
    %v766 = vld [vmem:[#allocation2] sm:$0x1]
    %v767 = vmax.f32 %v766, %v765
    %768 = vst [vmem:[#allocation2] sm:$0x1] %v767
    %769 = vset.pattern.permute.xlu0 1
    %770 = vperm.xlu0 %769, %v749
    %v771 = vpop.permute.xlu0 %770
    %v773 = vsel %vm753, %v771, -inf
    %v774 = vrot.slane %v773, 4
    %v775 = vmax.f32 %v773, %v774
    %v776 = vrot.slane %v775, 2
    %v777 = vmax.f32 %v775, %v776
    %v778 = vrot.slane %v777, 1
    %v779 = vmax.f32 %v777, %v778
    %v780 = vld [vmem:[#allocation2 + $0x1] sm:$0x1]
    %v781 = vmax.f32 %v780, %v779
    %782 = vst [vmem:[#allocation2 + $0x1] sm:$0x1] %v781
    %783 = vset.pattern.permute.xlu0 2
    %784 = vperm.xlu0 %783, %v749
    %v785 = vpop.permute.xlu0 %784
    %v787 = vsel %vm753, %v785, -inf
    %v788 = vrot.slane %v787, 4
    %v789 = vmax.f32 %v787, %v788
    %v790 = vrot.slane %v789, 2
    %v791 = vmax.f32 %v789, %v790
    %v792 = vrot.slane %v791, 1
    %v793 = vmax.f32 %v791, %v792
    %v794 = vld [vmem:[#allocation2 + $0x2] sm:$0x1]
    %v795 = vmax.f32 %v794, %v793
    %796 = vst [vmem:[#allocation2 + $0x2] sm:$0x1] %v795
    %797 = vset.pattern.permute.xlu0 3
    %798 = vperm.xlu0 %797, %v749
    %v799 = vpop.permute.xlu0 %798
    %v801 = vsel %vm753, %v799, -inf
    %v802 = vrot.slane %v801, 4
    %v803 = vmax.f32 %v801, %v802
    %v804 = vrot.slane %v803, 2
    %v805 = vmax.f32 %v803, %v804
    %v806 = vrot.slane %v805, 1
    %v807 = vmax.f32 %v805, %v806
    %v808 = vld [vmem:[#allocation2 + $0x3] sm:$0x1]
    %v809 = vmax.f32 %v808, %v807
    %810 = vst [vmem:[#allocation2 + $0x3] sm:$0x1] %v809
    %811 = vset.pattern.permute.xlu0 4
    %812 = vperm.xlu0 %811, %v749
    %v813 = vpop.permute.xlu0 %812
    %v815 = vsel %vm753, %v813, -inf
    %v816 = vrot.slane %v815, 4
    %v817 = vmax.f32 %v815, %v816
    %v818 = vrot.slane %v817, 2
    %v819 = vmax.f32 %v817, %v818
    %v820 = vrot.slane %v819, 1
    %v821 = vmax.f32 %v819, %v820
    %v822 = vld [vmem:[#allocation2 + $0x4] sm:$0x1]
    %v823 = vmax.f32 %v822, %v821
    %824 = vst [vmem:[#allocation2 + $0x4] sm:$0x1] %v823
    %825 = vset.pattern.permute.xlu0 5
    %826 = vperm.xlu0 %825, %v749
    %v827 = vpop.permute.xlu0 %826
    %v829 = vsel %vm753, %v827, -inf
    %v830 = vrot.slane %v829, 4
    %v831 = vmax.f32 %v829, %v830
    %v832 = vrot.slane %v831, 2
    %v833 = vmax.f32 %v831, %v832
    %v834 = vrot.slane %v833, 1
    %v835 = vmax.f32 %v833, %v834
    %v836 = vld [vmem:[#allocation2 + $0x5] sm:$0x1]
    %v837 = vmax.f32 %v836, %v835
    %838 = vst [vmem:[#allocation2 + $0x5] sm:$0x1] %v837
    %839 = vset.pattern.permute.xlu0 6
    %840 = vperm.xlu0 %839, %v749
    %v841 = vpop.permute.xlu0 %840
    %v843 = vsel %vm753, %v841, -inf
    %v844 = vrot.slane %v843, 4
    %v845 = vmax.f32 %v843, %v844
    %v846 = vrot.slane %v845, 2
    %v847 = vmax.f32 %v845, %v846
    %v848 = vrot.slane %v847, 1
    %v849 = vmax.f32 %v847, %v848
    %v850 = vld [vmem:[#allocation2 + $0x6] sm:$0x1]
    %v851 = vmax.f32 %v850, %v849
    %852 = vst [vmem:[#allocation2 + $0x6] sm:$0x1] %v851
    %853 = vset.pattern.permute.xlu0 7
    %854 = vperm.xlu0 %853, %v749
    %v855 = vpop.permute.xlu0 %854
    %v857 = vsel %vm753, %v855, -inf
    %v858 = vrot.slane %v857, 4
    %v859 = vmax.f32 %v857, %v858
    %v860 = vrot.slane %v859, 2
    %v861 = vmax.f32 %v859, %v860
    %v862 = vrot.slane %v861, 1
    %v863 = vmax.f32 %v861, %v862
    %v864 = vld [vmem:[#allocation2 + $0x7] sm:$0x1]
    %v865 = vmax.f32 %v864, %v863
    %866 = vst [vmem:[#allocation2 + $0x7] sm:$0x1] %v865
    %s867 = scalar_lea.vmem %s0, 56
    %v868 = vld [vmem:[%s867] sm:$0xff]
    %s869 = scalar_lea.vmem %s1, 56
    %v870 = vld [vmem:[%s869] sm:$0xff]
    %871 = vset.pattern.permute.xlu0 0
    %872 = vperm.xlu0 %871, %v868
    %v873 = vpop.permute.xlu0 %872
    %vm874 = vcmp.eq.s32.totalorder %v873, %v21
    %876 = vset.pattern.permute.xlu0 0
    %877 = vperm.xlu0 %876, %v870
    %v878 = vpop.permute.xlu0 %877
    %v880 = vsel %vm874, %v878, -inf
    %v881 = vrot.slane %v880, 4
    %v882 = vmax.f32 %v880, %v881
    %v883 = vrot.slane %v882, 2
    %v884 = vmax.f32 %v882, %v883
    %v885 = vrot.slane %v884, 1
    %v886 = vmax.f32 %v884, %v885
    %v887 = vld [vmem:[#allocation2] sm:$0x1]
    %v888 = vmax.f32 %v887, %v886
    %889 = vst [vmem:[#allocation2] sm:$0x1] %v888
    %890 = vset.pattern.permute.xlu0 1
    %891 = vperm.xlu0 %890, %v870
    %v892 = vpop.permute.xlu0 %891
    %v894 = vsel %vm874, %v892, -inf
    %v895 = vrot.slane %v894, 4
    %v896 = vmax.f32 %v894, %v895
    %v897 = vrot.slane %v896, 2
    %v898 = vmax.f32 %v896, %v897
    %v899 = vrot.slane %v898, 1
    %v900 = vmax.f32 %v898, %v899
    %v901 = vld [vmem:[#allocation2 + $0x1] sm:$0x1]
    %v902 = vmax.f32 %v901, %v900
    %903 = vst [vmem:[#allocation2 + $0x1] sm:$0x1] %v902
    %904 = vset.pattern.permute.xlu0 2
    %905 = vperm.xlu0 %904, %v870
    %v906 = vpop.permute.xlu0 %905
    %v908 = vsel %vm874, %v906, -inf
    %v909 = vrot.slane %v908, 4
    %v910 = vmax.f32 %v908, %v909
    %v911 = vrot.slane %v910, 2
    %v912 = vmax.f32 %v910, %v911
    %v913 = vrot.slane %v912, 1
    %v914 = vmax.f32 %v912, %v913
    %v915 = vld [vmem:[#allocation2 + $0x2] sm:$0x1]
    %v916 = vmax.f32 %v915, %v914
    %917 = vst [vmem:[#allocation2 + $0x2] sm:$0x1] %v916
    %918 = vset.pattern.permute.xlu0 3
    %919 = vperm.xlu0 %918, %v870
    %v920 = vpop.permute.xlu0 %919
    %v922 = vsel %vm874, %v920, -inf
    %v923 = vrot.slane %v922, 4
    %v924 = vmax.f32 %v922, %v923
    %v925 = vrot.slane %v924, 2
    %v926 = vmax.f32 %v924, %v925
    %v927 = vrot.slane %v926, 1
    %v928 = vmax.f32 %v926, %v927
    %v929 = vld [vmem:[#allocation2 + $0x3] sm:$0x1]
    %v930 = vmax.f32 %v929, %v928
    %931 = vst [vmem:[#allocation2 + $0x3] sm:$0x1] %v930
    %932 = vset.pattern.permute.xlu0 4
    %933 = vperm.xlu0 %932, %v870
    %v934 = vpop.permute.xlu0 %933
    %v936 = vsel %vm874, %v934, -inf
    %v937 = vrot.slane %v936, 4
    %v938 = vmax.f32 %v936, %v937
    %v939 = vrot.slane %v938, 2
    %v940 = vmax.f32 %v938, %v939
    %v941 = vrot.slane %v940, 1
    %v942 = vmax.f32 %v940, %v941
    %v943 = vld [vmem:[#allocation2 + $0x4] sm:$0x1]
    %v944 = vmax.f32 %v943, %v942
    %945 = vst [vmem:[#allocation2 + $0x4] sm:$0x1] %v944
    %946 = vset.pattern.permute.xlu0 5
    %947 = vperm.xlu0 %946, %v870
    %v948 = vpop.permute.xlu0 %947
    %v950 = vsel %vm874, %v948, -inf
    %v951 = vrot.slane %v950, 4
    %v952 = vmax.f32 %v950, %v951
    %v953 = vrot.slane %v952, 2
    %v954 = vmax.f32 %v952, %v953
    %v955 = vrot.slane %v954, 1
    %v956 = vmax.f32 %v954, %v955
    %v957 = vld [vmem:[#allocation2 + $0x5] sm:$0x1]
    %v958 = vmax.f32 %v957, %v956
    %959 = vst [vmem:[#allocation2 + $0x5] sm:$0x1] %v958
    %960 = vset.pattern.permute.xlu0 6
    %961 = vperm.xlu0 %960, %v870
    %v962 = vpop.permute.xlu0 %961
    %v964 = vsel %vm874, %v962, -inf
    %v965 = vrot.slane %v964, 4
    %v966 = vmax.f32 %v964, %v965
    %v967 = vrot.slane %v966, 2
    %v968 = vmax.f32 %v966, %v967
    %v969 = vrot.slane %v968, 1
    %v970 = vmax.f32 %v968, %v969
    %v971 = vld [vmem:[#allocation2 + $0x6] sm:$0x1]
    %v972 = vmax.f32 %v971, %v970
    %973 = vst [vmem:[#allocation2 + $0x6] sm:$0x1] %v972
    %974 = vset.pattern.permute.xlu0 7
    %975 = vperm.xlu0 %974, %v870
    %v976 = vpop.permute.xlu0 %975
    %v978 = vsel %vm874, %v976, -inf
    %v979 = vrot.slane %v978, 4
    %v980 = vmax.f32 %v978, %v979
    %v981 = vrot.slane %v980, 2
    %v982 = vmax.f32 %v980, %v981
    %v983 = vrot.slane %v982, 1
    %v984 = vmax.f32 %v982, %v983
    %v985 = vld [vmem:[#allocation2 + $0x7] sm:$0x1]
    %v986 = vmax.f32 %v985, %v984
    %987 = vst [vmem:[#allocation2 + $0x7] sm:$0x1] %v986
    %s988 = scalar_lea.vmem %s0, 64
    %v989 = vld [vmem:[%s988] sm:$0xff]
    %s990 = scalar_lea.vmem %s1, 64
    %v991 = vld [vmem:[%s990] sm:$0xff]
    %992 = vset.pattern.permute.xlu0 0
    %993 = vperm.xlu0 %992, %v989
    %v994 = vpop.permute.xlu0 %993
    %vm995 = vcmp.eq.s32.totalorder %v994, %v21
    %997 = vset.pattern.permute.xlu0 0
    %998 = vperm.xlu0 %997, %v991
    %v999 = vpop.permute.xlu0 %998
    %v1001 = vsel %vm995, %v999, -inf
    %v1002 = vrot.slane %v1001, 4
    %v1003 = vmax.f32 %v1001, %v1002
    %v1004 = vrot.slane %v1003, 2
    %v1005 = vmax.f32 %v1003, %v1004
    %v1006 = vrot.slane %v1005, 1
    %v1007 = vmax.f32 %v1005, %v1006
    %v1008 = vld [vmem:[#allocation2] sm:$0x1]
    %v1009 = vmax.f32 %v1008, %v1007
    %1010 = vst [vmem:[#allocation2] sm:$0x1] %v1009
    %1011 = vset.pattern.permute.xlu0 1
    %1012 = vperm.xlu0 %1011, %v991
    %v1013 = vpop.permute.xlu0 %1012
    %v1015 = vsel %vm995, %v1013, -inf
    %v1016 = vrot.slane %v1015, 4
    %v1017 = vmax.f32 %v1015, %v1016
    %v1018 = vrot.slane %v1017, 2
    %v1019 = vmax.f32 %v1017, %v1018
    %v1020 = vrot.slane %v1019, 1
    %v1021 = vmax.f32 %v1019, %v1020
    %v1022 = vld [vmem:[#allocation2 + $0x1] sm:$0x1]
    %v1023 = vmax.f32 %v1022, %v1021
    %1024 = vst [vmem:[#allocation2 + $0x1] sm:$0x1] %v1023
    %1025 = vset.pattern.permute.xlu0 2
    %1026 = vperm.xlu0 %1025, %v991
    %v1027 = vpop.permute.xlu0 %1026
    %v1029 = vsel %vm995, %v1027, -inf
    %v1030 = vrot.slane %v1029, 4
    %v1031 = vmax.f32 %v1029, %v1030
    %v1032 = vrot.slane %v1031, 2
    %v1033 = vmax.f32 %v1031, %v1032
    %v1034 = vrot.slane %v1033, 1
    %v1035 = vmax.f32 %v1033, %v1034
    %v1036 = vld [vmem:[#allocation2 + $0x2] sm:$0x1]
    %v1037 = vmax.f32 %v1036, %v1035
    %1038 = vst [vmem:[#allocation2 + $0x2] sm:$0x1] %v1037
    %1039 = vset.pattern.permute.xlu0 3
    %1040 = vperm.xlu0 %1039, %v991
    %v1041 = vpop.permute.xlu0 %1040
    %v1043 = vsel %vm995, %v1041, -inf
    %v1044 = vrot.slane %v1043, 4
    %v1045 = vmax.f32 %v1043, %v1044
    %v1046 = vrot.slane %v1045, 2
    %v1047 = vmax.f32 %v1045, %v1046
    %v1048 = vrot.slane %v1047, 1
    %v1049 = vmax.f32 %v1047, %v1048
    %v1050 = vld [vmem:[#allocation2 + $0x3] sm:$0x1]
    %v1051 = vmax.f32 %v1050, %v1049
    %1052 = vst [vmem:[#allocation2 + $0x3] sm:$0x1] %v1051
    %1053 = vset.pattern.permute.xlu0 4
    %1054 = vperm.xlu0 %1053, %v991
    %v1055 = vpop.permute.xlu0 %1054
    %v1057 = vsel %vm995, %v1055, -inf
    %v1058 = vrot.slane %v1057, 4
    %v1059 = vmax.f32 %v1057, %v1058
    %v1060 = vrot.slane %v1059, 2
    %v1061 = vmax.f32 %v1059, %v1060
    %v1062 = vrot.slane %v1061, 1
    %v1063 = vmax.f32 %v1061, %v1062
    %v1064 = vld [vmem:[#allocation2 + $0x4] sm:$0x1]
    %v1065 = vmax.f32 %v1064, %v1063
    %1066 = vst [vmem:[#allocation2 + $0x4] sm:$0x1] %v1065
    %1067 = vset.pattern.permute.xlu0 5
    %1068 = vperm.xlu0 %1067, %v991
    %v1069 = vpop.permute.xlu0 %1068
    %v1071 = vsel %vm995, %v1069, -inf
    %v1072 = vrot.slane %v1071, 4
    %v1073 = vmax.f32 %v1071, %v1072
    %v1074 = vrot.slane %v1073, 2
    %v1075 = vmax.f32 %v1073, %v1074
    %v1076 = vrot.slane %v1075, 1
    %v1077 = vmax.f32 %v1075, %v1076
    %v1078 = vld [vmem:[#allocation2 + $0x5] sm:$0x1]
    %v1079 = vmax.f32 %v1078, %v1077
    %1080 = vst [vmem:[#allocation2 + $0x5] sm:$0x1] %v1079
    %1081 = vset.pattern.permute.xlu0 6
    %1082 = vperm.xlu0 %1081, %v991
    %v1083 = vpop.permute.xlu0 %1082
    %v1085 = vsel %vm995, %v1083, -inf
    %v1086 = vrot.slane %v1085, 4
    %v1087 = vmax.f32 %v1085, %v1086
    %v1088 = vrot.slane %v1087, 2
    %v1089 = vmax.f32 %v1087, %v1088
    %v1090 = vrot.slane %v1089, 1
    %v1091 = vmax.f32 %v1089, %v1090
    %v1092 = vld [vmem:[#allocation2 + $0x6] sm:$0x1]
    %v1093 = vmax.f32 %v1092, %v1091
    %1094 = vst [vmem:[#allocation2 + $0x6] sm:$0x1] %v1093
    %1095 = vset.pattern.permute.xlu0 7
    %1096 = vperm.xlu0 %1095, %v991
    %v1097 = vpop.permute.xlu0 %1096
    %v1099 = vsel %vm995, %v1097, -inf
    %v1100 = vrot.slane %v1099, 4
    %v1101 = vmax.f32 %v1099, %v1100
    %v1102 = vrot.slane %v1101, 2
    %v1103 = vmax.f32 %v1101, %v1102
    %v1104 = vrot.slane %v1103, 1
    %v1105 = vmax.f32 %v1103, %v1104
    %v1106 = vld [vmem:[#allocation2 + $0x7] sm:$0x1]
    %v1107 = vmax.f32 %v1106, %v1105
    %1108 = vst [vmem:[#allocation2 + $0x7] sm:$0x1] %v1107
    %s1109 = scalar_lea.vmem %s0, 72
    %v1110 = vld [vmem:[%s1109] sm:$0xff]
    %s1111 = scalar_lea.vmem %s1, 72
    %v1112 = vld [vmem:[%s1111] sm:$0xff]
    %1113 = vset.pattern.permute.xlu0 0
    %1114 = vperm.xlu0 %1113, %v1110
    %v1115 = vpop.permute.xlu0 %1114
    %vm1116 = vcmp.eq.s32.totalorder %v1115, %v21
    %1118 = vset.pattern.permute.xlu0 0
    %1119 = vperm.xlu0 %1118, %v1112
    %v1120 = vpop.permute.xlu0 %1119
    %v1122 = vsel %vm1116, %v1120, -inf
    %v1123 = vrot.slane %v1122, 4
    %v1124 = vmax.f32 %v1122, %v1123
    %v1125 = vrot.slane %v1124, 2
    %v1126 = vmax.f32 %v1124, %v1125
    %v1127 = vrot.slane %v1126, 1
    %v1128 = vmax.f32 %v1126, %v1127
    %v1129 = vld [vmem:[#allocation2] sm:$0x1]
    %v1130 = vmax.f32 %v1129, %v1128
    %1131 = vst [vmem:[#allocation2] sm:$0x1] %v1130
    %1132 = vset.pattern.permute.xlu0 1
    %1133 = vperm.xlu0 %1132, %v1112
    %v1134 = vpop.permute.xlu0 %1133
    %v1136 = vsel %vm1116, %v1134, -inf
    %v1137 = vrot.slane %v1136, 4
    %v1138 = vmax.f32 %v1136, %v1137
    %v1139 = vrot.slane %v1138, 2
    %v1140 = vmax.f32 %v1138, %v1139
    %v1141 = vrot.slane %v1140, 1
    %v1142 = vmax.f32 %v1140, %v1141
    %v1143 = vld [vmem:[#allocation2 + $0x1] sm:$0x1]
    %v1144 = vmax.f32 %v1143, %v1142
    %1145 = vst [vmem:[#allocation2 + $0x1] sm:$0x1] %v1144
    %1146 = vset.pattern.permute.xlu0 2
    %1147 = vperm.xlu0 %1146, %v1112
    %v1148 = vpop.permute.xlu0 %1147
    %v1150 = vsel %vm1116, %v1148, -inf
    %v1151 = vrot.slane %v1150, 4
    %v1152 = vmax.f32 %v1150, %v1151
    %v1153 = vrot.slane %v1152, 2
    %v1154 = vmax.f32 %v1152, %v1153
    %v1155 = vrot.slane %v1154, 1
    %v1156 = vmax.f32 %v1154, %v1155
    %v1157 = vld [vmem:[#allocation2 + $0x2] sm:$0x1]
    %v1158 = vmax.f32 %v1157, %v1156
    %1159 = vst [vmem:[#allocation2 + $0x2] sm:$0x1] %v1158
    %1160 = vset.pattern.permute.xlu0 3
    %1161 = vperm.xlu0 %1160, %v1112
    %v1162 = vpop.permute.xlu0 %1161
    %v1164 = vsel %vm1116, %v1162, -inf
    %v1165 = vrot.slane %v1164, 4
    %v1166 = vmax.f32 %v1164, %v1165
    %v1167 = vrot.slane %v1166, 2
    %v1168 = vmax.f32 %v1166, %v1167
    %v1169 = vrot.slane %v1168, 1
    %v1170 = vmax.f32 %v1168, %v1169
    %v1171 = vld [vmem:[#allocation2 + $0x3] sm:$0x1]
    %v1172 = vmax.f32 %v1171, %v1170
    %1173 = vst [vmem:[#allocation2 + $0x3] sm:$0x1] %v1172
    %1174 = vset.pattern.permute.xlu0 4
    %1175 = vperm.xlu0 %1174, %v1112
    %v1176 = vpop.permute.xlu0 %1175
    %v1178 = vsel %vm1116, %v1176, -inf
    %v1179 = vrot.slane %v1178, 4
    %v1180 = vmax.f32 %v1178, %v1179
    %v1181 = vrot.slane %v1180, 2
    %v1182 = vmax.f32 %v1180, %v1181
    %v1183 = vrot.slane %v1182, 1
    %v1184 = vmax.f32 %v1182, %v1183
    %v1185 = vld [vmem:[#allocation2 + $0x4] sm:$0x1]
    %v1186 = vmax.f32 %v1185, %v1184
    %1187 = vst [vmem:[#allocation2 + $0x4] sm:$0x1] %v1186
    %1188 = vset.pattern.permute.xlu0 5
    %1189 = vperm.xlu0 %1188, %v1112
    %v1190 = vpop.permute.xlu0 %1189
    %v1192 = vsel %vm1116, %v1190, -inf
    %v1193 = vrot.slane %v1192, 4
    %v1194 = vmax.f32 %v1192, %v1193
    %v1195 = vrot.slane %v1194, 2
    %v1196 = vmax.f32 %v1194, %v1195
    %v1197 = vrot.slane %v1196, 1
    %v1198 = vmax.f32 %v1196, %v1197
    %v1199 = vld [vmem:[#allocation2 + $0x5] sm:$0x1]
    %v1200 = vmax.f32 %v1199, %v1198
    %1201 = vst [vmem:[#allocation2 + $0x5] sm:$0x1] %v1200
    %1202 = vset.pattern.permute.xlu0 6
    %1203 = vperm.xlu0 %1202, %v1112
    %v1204 = vpop.permute.xlu0 %1203
    %v1206 = vsel %vm1116, %v1204, -inf
    %v1207 = vrot.slane %v1206, 4
    %v1208 = vmax.f32 %v1206, %v1207
    %v1209 = vrot.slane %v1208, 2
    %v1210 = vmax.f32 %v1208, %v1209
    %v1211 = vrot.slane %v1210, 1
    %v1212 = vmax.f32 %v1210, %v1211
    %v1213 = vld [vmem:[#allocation2 + $0x6] sm:$0x1]
    %v1214 = vmax.f32 %v1213, %v1212
    %1215 = vst [vmem:[#allocation2 + $0x6] sm:$0x1] %v1214
    %1216 = vset.pattern.permute.xlu0 7
    %1217 = vperm.xlu0 %1216, %v1112
    %v1218 = vpop.permute.xlu0 %1217
    %v1220 = vsel %vm1116, %v1218, -inf
    %v1221 = vrot.slane %v1220, 4
    %v1222 = vmax.f32 %v1220, %v1221
    %v1223 = vrot.slane %v1222, 2
    %v1224 = vmax.f32 %v1222, %v1223
    %v1225 = vrot.slane %v1224, 1
    %v1226 = vmax.f32 %v1224, %v1225
    %v1227 = vld [vmem:[#allocation2 + $0x7] sm:$0x1]
    %v1228 = vmax.f32 %v1227, %v1226
    %1229 = vst [vmem:[#allocation2 + $0x7] sm:$0x1] %v1228
    %s1230 = scalar_lea.vmem %s0, 80
    %v1231 = vld [vmem:[%s1230] sm:$0xff]
    %s1232 = scalar_lea.vmem %s1, 80
    %v1233 = vld [vmem:[%s1232] sm:$0xff]
    %1234 = vset.pattern.permute.xlu0 0
    %1235 = vperm.xlu0 %1234, %v1231
    %v1236 = vpop.permute.xlu0 %1235
    %vm1237 = vcmp.eq.s32.totalorder %v1236, %v21
    %1239 = vset.pattern.permute.xlu0 0
    %1240 = vperm.xlu0 %1239, %v1233
    %v1241 = vpop.permute.xlu0 %1240
    %v1243 = vsel %vm1237, %v1241, -inf
    %v1244 = vrot.slane %v1243, 4
    %v1245 = vmax.f32 %v1243, %v1244
    %v1246 = vrot.slane %v1245, 2
    %v1247 = vmax.f32 %v1245, %v1246
    %v1248 = vrot.slane %v1247, 1
    %v1249 = vmax.f32 %v1247, %v1248
    %v1250 = vld [vmem:[#allocation2] sm:$0x1]
    %v1251 = vmax.f32 %v1250, %v1249
    %1252 = vst [vmem:[#allocation2] sm:$0x1] %v1251
    %1253 = vset.pattern.permute.xlu0 1
    %1254 = vperm.xlu0 %1253, %v1233
    %v1255 = vpop.permute.xlu0 %1254
    %v1257 = vsel %vm1237, %v1255, -inf
    %v1258 = vrot.slane %v1257, 4
    %v1259 = vmax.f32 %v1257, %v1258
    %v1260 = vrot.slane %v1259, 2
    %v1261 = vmax.f32 %v1259, %v1260
    %v1262 = vrot.slane %v1261, 1
    %v1263 = vmax.f32 %v1261, %v1262
    %v1264 = vld [vmem:[#allocation2 + $0x1] sm:$0x1]
    %v1265 = vmax.f32 %v1264, %v1263
    %1266 = vst [vmem:[#allocation2 + $0x1] sm:$0x1] %v1265
    %1267 = vset.pattern.permute.xlu0 2
    %1268 = vperm.xlu0 %1267, %v1233
    %v1269 = vpop.permute.xlu0 %1268
    %v1271 = vsel %vm1237, %v1269, -inf
    %v1272 = vrot.slane %v1271, 4
    %v1273 = vmax.f32 %v1271, %v1272
    %v1274 = vrot.slane %v1273, 2
    %v1275 = vmax.f32 %v1273, %v1274
    %v1276 = vrot.slane %v1275, 1
    %v1277 = vmax.f32 %v1275, %v1276
    %v1278 = vld [vmem:[#allocation2 + $0x2] sm:$0x1]
    %v1279 = vmax.f32 %v1278, %v1277
    %1280 = vst [vmem:[#allocation2 + $0x2] sm:$0x1] %v1279
    %1281 = vset.pattern.permute.xlu0 3
    %1282 = vperm.xlu0 %1281, %v1233
    %v1283 = vpop.permute.xlu0 %1282
    %v1285 = vsel %vm1237, %v1283, -inf
    %v1286 = vrot.slane %v1285, 4
    %v1287 = vmax.f32 %v1285, %v1286
    %v1288 = vrot.slane %v1287, 2
    %v1289 = vmax.f32 %v1287, %v1288
    %v1290 = vrot.slane %v1289, 1
    %v1291 = vmax.f32 %v1289, %v1290
    %v1292 = vld [vmem:[#allocation2 + $0x3] sm:$0x1]
    %v1293 = vmax.f32 %v1292, %v1291
    %1294 = vst [vmem:[#allocation2 + $0x3] sm:$0x1] %v1293
    %1295 = vset.pattern.permute.xlu0 4
    %1296 = vperm.xlu0 %1295, %v1233
    %v1297 = vpop.permute.xlu0 %1296
    %v1299 = vsel %vm1237, %v1297, -inf
    %v1300 = vrot.slane %v1299, 4
    %v1301 = vmax.f32 %v1299, %v1300
    %v1302 = vrot.slane %v1301, 2
    %v1303 = vmax.f32 %v1301, %v1302
    %v1304 = vrot.slane %v1303, 1
    %v1305 = vmax.f32 %v1303, %v1304
    %v1306 = vld [vmem:[#allocation2 + $0x4] sm:$0x1]
    %v1307 = vmax.f32 %v1306, %v1305
    %1308 = vst [vmem:[#allocation2 + $0x4] sm:$0x1] %v1307
    %1309 = vset.pattern.permute.xlu0 5
    %1310 = vperm.xlu0 %1309, %v1233
    %v1311 = vpop.permute.xlu0 %1310
    %v1313 = vsel %vm1237, %v1311, -inf
    %v1314 = vrot.slane %v1313, 4
    %v1315 = vmax.f32 %v1313, %v1314
    %v1316 = vrot.slane %v1315, 2
    %v1317 = vmax.f32 %v1315, %v1316
    %v1318 = vrot.slane %v1317, 1
    %v1319 = vmax.f32 %v1317, %v1318
    %v1320 = vld [vmem:[#allocation2 + $0x5] sm:$0x1]
    %v1321 = vmax.f32 %v1320, %v1319
    %1322 = vst [vmem:[#allocation2 + $0x5] sm:$0x1] %v1321
    %1323 = vset.pattern.permute.xlu0 6
    %1324 = vperm.xlu0 %1323, %v1233
    %v1325 = vpop.permute.xlu0 %1324
    %v1327 = vsel %vm1237, %v1325, -inf
    %v1328 = vrot.slane %v1327, 4
    %v1329 = vmax.f32 %v1327, %v1328
    %v1330 = vrot.slane %v1329, 2
    %v1331 = vmax.f32 %v1329, %v1330
    %v1332 = vrot.slane %v1331, 1
    %v1333 = vmax.f32 %v1331, %v1332
    %v1334 = vld [vmem:[#allocation2 + $0x6] sm:$0x1]
    %v1335 = vmax.f32 %v1334, %v1333
    %1336 = vst [vmem:[#allocation2 + $0x6] sm:$0x1] %v1335
    %1337 = vset.pattern.permute.xlu0 7
    %1338 = vperm.xlu0 %1337, %v1233
    %v1339 = vpop.permute.xlu0 %1338
    %v1341 = vsel %vm1237, %v1339, -inf
    %v1342 = vrot.slane %v1341, 4
    %v1343 = vmax.f32 %v1341, %v1342
    %v1344 = vrot.slane %v1343, 2
    %v1345 = vmax.f32 %v1343, %v1344
    %v1346 = vrot.slane %v1345, 1
    %v1347 = vmax.f32 %v1345, %v1346
    %v1348 = vld [vmem:[#allocation2 + $0x7] sm:$0x1]
    %v1349 = vmax.f32 %v1348, %v1347
    %1350 = vst [vmem:[#allocation2 + $0x7] sm:$0x1] %v1349
    %s1351 = scalar_lea.vmem %s0, 88
    %v1352 = vld [vmem:[%s1351] sm:$0xff]
    %s1353 = scalar_lea.vmem %s1, 88
    %v1354 = vld [vmem:[%s1353] sm:$0xff]
    %1355 = vset.pattern.permute.xlu0 0
    %1356 = vperm.xlu0 %1355, %v1352
    %v1357 = vpop.permute.xlu0 %1356
    %vm1358 = vcmp.eq.s32.totalorder %v1357, %v21
    %1360 = vset.pattern.permute.xlu0 0
    %1361 = vperm.xlu0 %1360, %v1354
    %v1362 = vpop.permute.xlu0 %1361
    %v1364 = vsel %vm1358, %v1362, -inf
    %v1365 = vrot.slane %v1364, 4
    %v1366 = vmax.f32 %v1364, %v1365
    %v1367 = vrot.slane %v1366, 2
    %v1368 = vmax.f32 %v1366, %v1367
    %v1369 = vrot.slane %v1368, 1
    %v1370 = vmax.f32 %v1368, %v1369
    %v1371 = vld [vmem:[#allocation2] sm:$0x1]
    %v1372 = vmax.f32 %v1371, %v1370
    %1373 = vst [vmem:[#allocation2] sm:$0x1] %v1372
    %1374 = vset.pattern.permute.xlu0 1
    %1375 = vperm.xlu0 %1374, %v1354
    %v1376 = vpop.permute.xlu0 %1375
    %v1378 = vsel %vm1358, %v1376, -inf
    %v1379 = vrot.slane %v1378, 4
    %v1380 = vmax.f32 %v1378, %v1379
    %v1381 = vrot.slane %v1380, 2
    %v1382 = vmax.f32 %v1380, %v1381
    %v1383 = vrot.slane %v1382, 1
    %v1384 = vmax.f32 %v1382, %v1383
    %v1385 = vld [vmem:[#allocation2 + $0x1] sm:$0x1]
    %v1386 = vmax.f32 %v1385, %v1384
    %1387 = vst [vmem:[#allocation2 + $0x1] sm:$0x1] %v1386
    %1388 = vset.pattern.permute.xlu0 2
    %1389 = vperm.xlu0 %1388, %v1354
    %v1390 = vpop.permute.xlu0 %1389
    %v1392 = vsel %vm1358, %v1390, -inf
    %v1393 = vrot.slane %v1392, 4
    %v1394 = vmax.f32 %v1392, %v1393
    %v1395 = vrot.slane %v1394, 2
    %v1396 = vmax.f32 %v1394, %v1395
    %v1397 = vrot.slane %v1396, 1
    %v1398 = vmax.f32 %v1396, %v1397
    %v1399 = vld [vmem:[#allocation2 + $0x2] sm:$0x1]
    %v1400 = vmax.f32 %v1399, %v1398
    %1401 = vst [vmem:[#allocation2 + $0x2] sm:$0x1] %v1400
    %1402 = vset.pattern.permute.xlu0 3
    %1403 = vperm.xlu0 %1402, %v1354
    %v1404 = vpop.permute.xlu0 %1403
    %v1406 = vsel %vm1358, %v1404, -inf
    %v1407 = vrot.slane %v1406, 4
    %v1408 = vmax.f32 %v1406, %v1407
    %v1409 = vrot.slane %v1408, 2
    %v1410 = vmax.f32 %v1408, %v1409
    %v1411 = vrot.slane %v1410, 1
    %v1412 = vmax.f32 %v1410, %v1411
    %v1413 = vld [vmem:[#allocation2 + $0x3] sm:$0x1]
    %v1414 = vmax.f32 %v1413, %v1412
    %1415 = vst [vmem:[#allocation2 + $0x3] sm:$0x1] %v1414
    %1416 = vset.pattern.permute.xlu0 4
    %1417 = vperm.xlu0 %1416, %v1354
    %v1418 = vpop.permute.xlu0 %1417
    %v1420 = vsel %vm1358, %v1418, -inf
    %v1421 = vrot.slane %v1420, 4
    %v1422 = vmax.f32 %v1420, %v1421
    %v1423 = vrot.slane %v1422, 2
    %v1424 = vmax.f32 %v1422, %v1423
    %v1425 = vrot.slane %v1424, 1
    %v1426 = vmax.f32 %v1424, %v1425
    %v1427 = vld [vmem:[#allocation2 + $0x4] sm:$0x1]
    %v1428 = vmax.f32 %v1427, %v1426
    %1429 = vst [vmem:[#allocation2 + $0x4] sm:$0x1] %v1428
    %1430 = vset.pattern.permute.xlu0 5
    %1431 = vperm.xlu0 %1430, %v1354
    %v1432 = vpop.permute.xlu0 %1431
    %v1434 = vsel %vm1358, %v1432, -inf
    %v1435 = vrot.slane %v1434, 4
    %v1436 = vmax.f32 %v1434, %v1435
    %v1437 = vrot.slane %v1436, 2
    %v1438 = vmax.f32 %v1436, %v1437
    %v1439 = vrot.slane %v1438, 1
    %v1440 = vmax.f32 %v1438, %v1439
    %v1441 = vld [vmem:[#allocation2 + $0x5] sm:$0x1]
    %v1442 = vmax.f32 %v1441, %v1440
    %1443 = vst [vmem:[#allocation2 + $0x5] sm:$0x1] %v1442
    %1444 = vset.pattern.permute.xlu0 6
    %1445 = vperm.xlu0 %1444, %v1354
    %v1446 = vpop.permute.xlu0 %1445
    %v1448 = vsel %vm1358, %v1446, -inf
    %v1449 = vrot.slane %v1448, 4
    %v1450 = vmax.f32 %v1448, %v1449
    %v1451 = vrot.slane %v1450, 2
    %v1452 = vmax.f32 %v1450, %v1451
    %v1453 = vrot.slane %v1452, 1
    %v1454 = vmax.f32 %v1452, %v1453
    %v1455 = vld [vmem:[#allocation2 + $0x6] sm:$0x1]
    %v1456 = vmax.f32 %v1455, %v1454
    %1457 = vst [vmem:[#allocation2 + $0x6] sm:$0x1] %v1456
    %1458 = vset.pattern.permute.xlu0 7
    %1459 = vperm.xlu0 %1458, %v1354
    %v1460 = vpop.permute.xlu0 %1459
    %v1462 = vsel %vm1358, %v1460, -inf
    %v1463 = vrot.slane %v1462, 4
    %v1464 = vmax.f32 %v1462, %v1463
    %v1465 = vrot.slane %v1464, 2
    %v1466 = vmax.f32 %v1464, %v1465
    %v1467 = vrot.slane %v1466, 1
    %v1468 = vmax.f32 %v1466, %v1467
    %v1469 = vld [vmem:[#allocation2 + $0x7] sm:$0x1]
    %v1470 = vmax.f32 %v1469, %v1468
    %1471 = vst [vmem:[#allocation2 + $0x7] sm:$0x1] %v1470
    %s1472 = scalar_lea.vmem %s0, 96
    %v1473 = vld [vmem:[%s1472] sm:$0xff]
    %s1474 = scalar_lea.vmem %s1, 96
    %v1475 = vld [vmem:[%s1474] sm:$0xff]
    %1476 = vset.pattern.permute.xlu0 0
    %1477 = vperm.xlu0 %1476, %v1473
    %v1478 = vpop.permute.xlu0 %1477
    %vm1479 = vcmp.eq.s32.totalorder %v1478, %v21
    %1481 = vset.pattern.permute.xlu0 0
    %1482 = vperm.xlu0 %1481, %v1475
    %v1483 = vpop.permute.xlu0 %1482
    %v1485 = vsel %vm1479, %v1483, -inf
    %v1486 = vrot.slane %v1485, 4
    %v1487 = vmax.f32 %v1485, %v1486
    %v1488 = vrot.slane %v1487, 2
    %v1489 = vmax.f32 %v1487, %v1488
    %v1490 = vrot.slane %v1489, 1
    %v1491 = vmax.f32 %v1489, %v1490
    %v1492 = vld [vmem:[#allocation2] sm:$0x1]
    %v1493 = vmax.f32 %v1492, %v1491
    %1494 = vst [vmem:[#allocation2] sm:$0x1] %v1493
    %1495 = vset.pattern.permute.xlu0 1
    %1496 = vperm.xlu0 %1495, %v1475
    %v1497 = vpop.permute.xlu0 %1496
    %v1499 = vsel %vm1479, %v1497, -inf
    %v1500 = vrot.slane %v1499, 4
    %v1501 = vmax.f32 %v1499, %v1500
    %v1502 = vrot.slane %v1501, 2
    %v1503 = vmax.f32 %v1501, %v1502
    %v1504 = vrot.slane %v1503, 1
    %v1505 = vmax.f32 %v1503, %v1504
    %v1506 = vld [vmem:[#allocation2 + $0x1] sm:$0x1]
    %v1507 = vmax.f32 %v1506, %v1505
    %1508 = vst [vmem:[#allocation2 + $0x1] sm:$0x1] %v1507
    %1509 = vset.pattern.permute.xlu0 2
    %1510 = vperm.xlu0 %1509, %v1475
    %v1511 = vpop.permute.xlu0 %1510
    %v1513 = vsel %vm1479, %v1511, -inf
    %v1514 = vrot.slane %v1513, 4
    %v1515 = vmax.f32 %v1513, %v1514
    %v1516 = vrot.slane %v1515, 2
    %v1517 = vmax.f32 %v1515, %v1516
    %v1518 = vrot.slane %v1517, 1
    %v1519 = vmax.f32 %v1517, %v1518
    %v1520 = vld [vmem:[#allocation2 + $0x2] sm:$0x1]
    %v1521 = vmax.f32 %v1520, %v1519
    %1522 = vst [vmem:[#allocation2 + $0x2] sm:$0x1] %v1521
    %1523 = vset.pattern.permute.xlu0 3
    %1524 = vperm.xlu0 %1523, %v1475
    %v1525 = vpop.permute.xlu0 %1524
    %v1527 = vsel %vm1479, %v1525, -inf
    %v1528 = vrot.slane %v1527, 4
    %v1529 = vmax.f32 %v1527, %v1528
    %v1530 = vrot.slane %v1529, 2
    %v1531 = vmax.f32 %v1529, %v1530
    %v1532 = vrot.slane %v1531, 1
    %v1533 = vmax.f32 %v1531, %v1532
    %v1534 = vld [vmem:[#allocation2 + $0x3] sm:$0x1]
    %v1535 = vmax.f32 %v1534, %v1533
    %1536 = vst [vmem:[#allocation2 + $0x3] sm:$0x1] %v1535
    %1537 = vset.pattern.permute.xlu0 4
    %1538 = vperm.xlu0 %1537, %v1475
    %v1539 = vpop.permute.xlu0 %1538
    %v1541 = vsel %vm1479, %v1539, -inf
    %v1542 = vrot.slane %v1541, 4
    %v1543 = vmax.f32 %v1541, %v1542
    %v1544 = vrot.slane %v1543, 2
    %v1545 = vmax.f32 %v1543, %v1544
    %v1546 = vrot.slane %v1545, 1
    %v1547 = vmax.f32 %v1545, %v1546
    %v1548 = vld [vmem:[#allocation2 + $0x4] sm:$0x1]
    %v1549 = vmax.f32 %v1548, %v1547
    %1550 = vst [vmem:[#allocation2 + $0x4] sm:$0x1] %v1549
    %1551 = vset.pattern.permute.xlu0 5
    %1552 = vperm.xlu0 %1551, %v1475
    %v1553 = vpop.permute.xlu0 %1552
    %v1555 = vsel %vm1479, %v1553, -inf
    %v1556 = vrot.slane %v1555, 4
    %v1557 = vmax.f32 %v1555, %v1556
    %v1558 = vrot.slane %v1557, 2
    %v1559 = vmax.f32 %v1557, %v1558
    %v1560 = vrot.slane %v1559, 1
    %v1561 = vmax.f32 %v1559, %v1560
    %v1562 = vld [vmem:[#allocation2 + $0x5] sm:$0x1]
    %v1563 = vmax.f32 %v1562, %v1561
    %1564 = vst [vmem:[#allocation2 + $0x5] sm:$0x1] %v1563
    %1565 = vset.pattern.permute.xlu0 6
    %1566 = vperm.xlu0 %1565, %v1475
    %v1567 = vpop.permute.xlu0 %1566
    %v1569 = vsel %vm1479, %v1567, -inf
    %v1570 = vrot.slane %v1569, 4
    %v1571 = vmax.f32 %v1569, %v1570
    %v1572 = vrot.slane %v1571, 2
    %v1573 = vmax.f32 %v1571, %v1572
    %v1574 = vrot.slane %v1573, 1
    %v1575 = vmax.f32 %v1573, %v1574
    %v1576 = vld [vmem:[#allocation2 + $0x6] sm:$0x1]
    %v1577 = vmax.f32 %v1576, %v1575
    %1578 = vst [vmem:[#allocation2 + $0x6] sm:$0x1] %v1577
    %1579 = vset.pattern.permute.xlu0 7
    %1580 = vperm.xlu0 %1579, %v1475
    %v1581 = vpop.permute.xlu0 %1580
    %v1583 = vsel %vm1479, %v1581, -inf
    %v1584 = vrot.slane %v1583, 4
    %v1585 = vmax.f32 %v1583, %v1584
    %v1586 = vrot.slane %v1585, 2
    %v1587 = vmax.f32 %v1585, %v1586
    %v1588 = vrot.slane %v1587, 1
    %v1589 = vmax.f32 %v1587, %v1588
    %v1590 = vld [vmem:[#allocation2 + $0x7] sm:$0x1]
    %v1591 = vmax.f32 %v1590, %v1589
    %1592 = vst [vmem:[#allocation2 + $0x7] sm:$0x1] %v1591
    %s1593 = scalar_lea.vmem %s0, 104
    %v1594 = vld [vmem:[%s1593] sm:$0xff]
    %s1595 = scalar_lea.vmem %s1, 104
    %v1596 = vld [vmem:[%s1595] sm:$0xff]
    %1597 = vset.pattern.permute.xlu0 0
    %1598 = vperm.xlu0 %1597, %v1594
    %v1599 = vpop.permute.xlu0 %1598
    %vm1600 = vcmp.eq.s32.totalorder %v1599, %v21
    %1602 = vset.pattern.permute.xlu0 0
    %1603 = vperm.xlu0 %1602, %v1596
    %v1604 = vpop.permute.xlu0 %1603
    %v1606 = vsel %vm1600, %v1604, -inf
    %v1607 = vrot.slane %v1606, 4
    %v1608 = vmax.f32 %v1606, %v1607
    %v1609 = vrot.slane %v1608, 2
    %v1610 = vmax.f32 %v1608, %v1609
    %v1611 = vrot.slane %v1610, 1
    %v1612 = vmax.f32 %v1610, %v1611
    %v1613 = vld [vmem:[#allocation2] sm:$0x1]
    %v1614 = vmax.f32 %v1613, %v1612
    %1615 = vst [vmem:[#allocation2] sm:$0x1] %v1614
    %1616 = vset.pattern.permute.xlu0 1
    %1617 = vperm.xlu0 %1616, %v1596
    %v1618 = vpop.permute.xlu0 %1617
    %v1620 = vsel %vm1600, %v1618, -inf
    %v1621 = vrot.slane %v1620, 4
    %v1622 = vmax.f32 %v1620, %v1621
    %v1623 = vrot.slane %v1622, 2
    %v1624 = vmax.f32 %v1622, %v1623
    %v1625 = vrot.slane %v1624, 1
    %v1626 = vmax.f32 %v1624, %v1625
    %v1627 = vld [vmem:[#allocation2 + $0x1] sm:$0x1]
    %v1628 = vmax.f32 %v1627, %v1626
    %1629 = vst [vmem:[#allocation2 + $0x1] sm:$0x1] %v1628
    %1630 = vset.pattern.permute.xlu0 2
    %1631 = vperm.xlu0 %1630, %v1596
    %v1632 = vpop.permute.xlu0 %1631
    %v1634 = vsel %vm1600, %v1632, -inf
    %v1635 = vrot.slane %v1634, 4
    %v1636 = vmax.f32 %v1634, %v1635
    %v1637 = vrot.slane %v1636, 2
    %v1638 = vmax.f32 %v1636, %v1637
    %v1639 = vrot.slane %v1638, 1
    %v1640 = vmax.f32 %v1638, %v1639
    %v1641 = vld [vmem:[#allocation2 + $0x2] sm:$0x1]
    %v1642 = vmax.f32 %v1641, %v1640
    %1643 = vst [vmem:[#allocation2 + $0x2] sm:$0x1] %v1642
    %1644 = vset.pattern.permute.xlu0 3
    %1645 = vperm.xlu0 %1644, %v1596
    %v1646 = vpop.permute.xlu0 %1645
    %v1648 = vsel %vm1600, %v1646, -inf
    %v1649 = vrot.slane %v1648, 4
    %v1650 = vmax.f32 %v1648, %v1649
    %v1651 = vrot.slane %v1650, 2
    %v1652 = vmax.f32 %v1650, %v1651
    %v1653 = vrot.slane %v1652, 1
    %v1654 = vmax.f32 %v1652, %v1653
    %v1655 = vld [vmem:[#allocation2 + $0x3] sm:$0x1]
    %v1656 = vmax.f32 %v1655, %v1654
    %1657 = vst [vmem:[#allocation2 + $0x3] sm:$0x1] %v1656
    %1658 = vset.pattern.permute.xlu0 4
    %1659 = vperm.xlu0 %1658, %v1596
    %v1660 = vpop.permute.xlu0 %1659
    %v1662 = vsel %vm1600, %v1660, -inf
    %v1663 = vrot.slane %v1662, 4
    %v1664 = vmax.f32 %v1662, %v1663
    %v1665 = vrot.slane %v1664, 2
    %v1666 = vmax.f32 %v1664, %v1665
    %v1667 = vrot.slane %v1666, 1
    %v1668 = vmax.f32 %v1666, %v1667
    %v1669 = vld [vmem:[#allocation2 + $0x4] sm:$0x1]
    %v1670 = vmax.f32 %v1669, %v1668
    %1671 = vst [vmem:[#allocation2 + $0x4] sm:$0x1] %v1670
    %1672 = vset.pattern.permute.xlu0 5
    %1673 = vperm.xlu0 %1672, %v1596
    %v1674 = vpop.permute.xlu0 %1673
    %v1676 = vsel %vm1600, %v1674, -inf
    %v1677 = vrot.slane %v1676, 4
    %v1678 = vmax.f32 %v1676, %v1677
    %v1679 = vrot.slane %v1678, 2
    %v1680 = vmax.f32 %v1678, %v1679
    %v1681 = vrot.slane %v1680, 1
    %v1682 = vmax.f32 %v1680, %v1681
    %v1683 = vld [vmem:[#allocation2 + $0x5] sm:$0x1]
    %v1684 = vmax.f32 %v1683, %v1682
    %1685 = vst [vmem:[#allocation2 + $0x5] sm:$0x1] %v1684
    %1686 = vset.pattern.permute.xlu0 6
    %1687 = vperm.xlu0 %1686, %v1596
    %v1688 = vpop.permute.xlu0 %1687
    %v1690 = vsel %vm1600, %v1688, -inf
    %v1691 = vrot.slane %v1690, 4
    %v1692 = vmax.f32 %v1690, %v1691
    %v1693 = vrot.slane %v1692, 2
    %v1694 = vmax.f32 %v1692, %v1693
    %v1695 = vrot.slane %v1694, 1
    %v1696 = vmax.f32 %v1694, %v1695
    %v1697 = vld [vmem:[#allocation2 + $0x6] sm:$0x1]
    %v1698 = vmax.f32 %v1697, %v1696
    %1699 = vst [vmem:[#allocation2 + $0x6] sm:$0x1] %v1698
    %1700 = vset.pattern.permute.xlu0 7
    %1701 = vperm.xlu0 %1700, %v1596
    %v1702 = vpop.permute.xlu0 %1701
    %v1704 = vsel %vm1600, %v1702, -inf
    %v1705 = vrot.slane %v1704, 4
    %v1706 = vmax.f32 %v1704, %v1705
    %v1707 = vrot.slane %v1706, 2
    %v1708 = vmax.f32 %v1706, %v1707
    %v1709 = vrot.slane %v1708, 1
    %v1710 = vmax.f32 %v1708, %v1709
    %v1711 = vld [vmem:[#allocation2 + $0x7] sm:$0x1]
    %v1712 = vmax.f32 %v1711, %v1710
    %1713 = vst [vmem:[#allocation2 + $0x7] sm:$0x1] %v1712
    %s1714 = scalar_lea.vmem %s0, 112
    %v1715 = vld [vmem:[%s1714] sm:$0xff]
    %s1716 = scalar_lea.vmem %s1, 112
    %v1717 = vld [vmem:[%s1716] sm:$0xff]
    %1718 = vset.pattern.permute.xlu0 0
    %1719 = vperm.xlu0 %1718, %v1715
    %v1720 = vpop.permute.xlu0 %1719
    %vm1721 = vcmp.eq.s32.totalorder %v1720, %v21
    %1723 = vset.pattern.permute.xlu0 0
    %1724 = vperm.xlu0 %1723, %v1717
    %v1725 = vpop.permute.xlu0 %1724
    %v1727 = vsel %vm1721, %v1725, -inf
    %v1728 = vrot.slane %v1727, 4
    %v1729 = vmax.f32 %v1727, %v1728
    %v1730 = vrot.slane %v1729, 2
    %v1731 = vmax.f32 %v1729, %v1730
    %v1732 = vrot.slane %v1731, 1
    %v1733 = vmax.f32 %v1731, %v1732
    %v1734 = vld [vmem:[#allocation2] sm:$0x1]
    %v1735 = vmax.f32 %v1734, %v1733
    %1736 = vst [vmem:[#allocation2] sm:$0x1] %v1735
    %1737 = vset.pattern.permute.xlu0 1
    %1738 = vperm.xlu0 %1737, %v1717
    %v1739 = vpop.permute.xlu0 %1738
    %v1741 = vsel %vm1721, %v1739, -inf
    %v1742 = vrot.slane %v1741, 4
    %v1743 = vmax.f32 %v1741, %v1742
    %v1744 = vrot.slane %v1743, 2
    %v1745 = vmax.f32 %v1743, %v1744
    %v1746 = vrot.slane %v1745, 1
    %v1747 = vmax.f32 %v1745, %v1746
    %v1748 = vld [vmem:[#allocation2 + $0x1] sm:$0x1]
    %v1749 = vmax.f32 %v1748, %v1747
    %1750 = vst [vmem:[#allocation2 + $0x1] sm:$0x1] %v1749
    %1751 = vset.pattern.permute.xlu0 2
    %1752 = vperm.xlu0 %1751, %v1717
    %v1753 = vpop.permute.xlu0 %1752
    %v1755 = vsel %vm1721, %v1753, -inf
    %v1756 = vrot.slane %v1755, 4
    %v1757 = vmax.f32 %v1755, %v1756
    %v1758 = vrot.slane %v1757, 2
    %v1759 = vmax.f32 %v1757, %v1758
    %v1760 = vrot.slane %v1759, 1
    %v1761 = vmax.f32 %v1759, %v1760
    %v1762 = vld [vmem:[#allocation2 + $0x2] sm:$0x1]
    %v1763 = vmax.f32 %v1762, %v1761
    %1764 = vst [vmem:[#allocation2 + $0x2] sm:$0x1] %v1763
    %1765 = vset.pattern.permute.xlu0 3
    %1766 = vperm.xlu0 %1765, %v1717
    %v1767 = vpop.permute.xlu0 %1766
    %v1769 = vsel %vm1721, %v1767, -inf
    %v1770 = vrot.slane %v1769, 4
    %v1771 = vmax.f32 %v1769, %v1770
    %v1772 = vrot.slane %v1771, 2
    %v1773 = vmax.f32 %v1771, %v1772
    %v1774 = vrot.slane %v1773, 1
    %v1775 = vmax.f32 %v1773, %v1774
    %v1776 = vld [vmem:[#allocation2 + $0x3] sm:$0x1]
    %v1777 = vmax.f32 %v1776, %v1775
    %1778 = vst [vmem:[#allocation2 + $0x3] sm:$0x1] %v1777
    %1779 = vset.pattern.permute.xlu0 4
    %1780 = vperm.xlu0 %1779, %v1717
    %v1781 = vpop.permute.xlu0 %1780
    %v1783 = vsel %vm1721, %v1781, -inf
    %v1784 = vrot.slane %v1783, 4
    %v1785 = vmax.f32 %v1783, %v1784
    %v1786 = vrot.slane %v1785, 2
    %v1787 = vmax.f32 %v1785, %v1786
    %v1788 = vrot.slane %v1787, 1
    %v1789 = vmax.f32 %v1787, %v1788
    %v1790 = vld [vmem:[#allocation2 + $0x4] sm:$0x1]
    %v1791 = vmax.f32 %v1790, %v1789
    %1792 = vst [vmem:[#allocation2 + $0x4] sm:$0x1] %v1791
    %1793 = vset.pattern.permute.xlu0 5
    %1794 = vperm.xlu0 %1793, %v1717
    %v1795 = vpop.permute.xlu0 %1794
    %v1797 = vsel %vm1721, %v1795, -inf
    %v1798 = vrot.slane %v1797, 4
    %v1799 = vmax.f32 %v1797, %v1798
    %v1800 = vrot.slane %v1799, 2
    %v1801 = vmax.f32 %v1799, %v1800
    %v1802 = vrot.slane %v1801, 1
    %v1803 = vmax.f32 %v1801, %v1802
    %v1804 = vld [vmem:[#allocation2 + $0x5] sm:$0x1]
    %v1805 = vmax.f32 %v1804, %v1803
    %1806 = vst [vmem:[#allocation2 + $0x5] sm:$0x1] %v1805
    %1807 = vset.pattern.permute.xlu0 6
    %1808 = vperm.xlu0 %1807, %v1717
    %v1809 = vpop.permute.xlu0 %1808
    %v1811 = vsel %vm1721, %v1809, -inf
    %v1812 = vrot.slane %v1811, 4
    %v1813 = vmax.f32 %v1811, %v1812
    %v1814 = vrot.slane %v1813, 2
    %v1815 = vmax.f32 %v1813, %v1814
    %v1816 = vrot.slane %v1815, 1
    %v1817 = vmax.f32 %v1815, %v1816
    %v1818 = vld [vmem:[#allocation2 + $0x6] sm:$0x1]
    %v1819 = vmax.f32 %v1818, %v1817
    %1820 = vst [vmem:[#allocation2 + $0x6] sm:$0x1] %v1819
    %1821 = vset.pattern.permute.xlu0 7
    %1822 = vperm.xlu0 %1821, %v1717
    %v1823 = vpop.permute.xlu0 %1822
    %v1825 = vsel %vm1721, %v1823, -inf
    %v1826 = vrot.slane %v1825, 4
    %v1827 = vmax.f32 %v1825, %v1826
    %v1828 = vrot.slane %v1827, 2
    %v1829 = vmax.f32 %v1827, %v1828
    %v1830 = vrot.slane %v1829, 1
    %v1831 = vmax.f32 %v1829, %v1830
    %v1832 = vld [vmem:[#allocation2 + $0x7] sm:$0x1]
    %v1833 = vmax.f32 %v1832, %v1831
    %1834 = vst [vmem:[#allocation2 + $0x7] sm:$0x1] %v1833
    %s1835 = scalar_lea.vmem %s0, 120
    %v1836 = vld [vmem:[%s1835] sm:$0xff]
    %s1837 = scalar_lea.vmem %s1, 120
    %v1838 = vld [vmem:[%s1837] sm:$0xff]
    %1839 = vset.pattern.permute.xlu0 0
    %1840 = vperm.xlu0 %1839, %v1836
    %v1841 = vpop.permute.xlu0 %1840
    %vm1842 = vcmp.eq.s32.totalorder %v1841, %v21
    %1844 = vset.pattern.permute.xlu0 0
    %1845 = vperm.xlu0 %1844, %v1838
    %v1846 = vpop.permute.xlu0 %1845
    %v1848 = vsel %vm1842, %v1846, -inf
    %v1849 = vrot.slane %v1848, 4
    %v1850 = vmax.f32 %v1848, %v1849
    %v1851 = vrot.slane %v1850, 2
    %v1852 = vmax.f32 %v1850, %v1851
    %v1853 = vrot.slane %v1852, 1
    %v1854 = vmax.f32 %v1852, %v1853
    %v1855 = vld [vmem:[#allocation2] sm:$0x1]
    %v1856 = vmax.f32 %v1855, %v1854
    %1857 = vst [vmem:[#allocation2] sm:$0x1] %v1856
    %1858 = vset.pattern.permute.xlu0 1
    %1859 = vperm.xlu0 %1858, %v1838
    %v1860 = vpop.permute.xlu0 %1859
    %v1862 = vsel %vm1842, %v1860, -inf
    %v1863 = vrot.slane %v1862, 4
    %v1864 = vmax.f32 %v1862, %v1863
    %v1865 = vrot.slane %v1864, 2
    %v1866 = vmax.f32 %v1864, %v1865
    %v1867 = vrot.slane %v1866, 1
    %v1868 = vmax.f32 %v1866, %v1867
    %v1869 = vld [vmem:[#allocation2 + $0x1] sm:$0x1]
    %v1870 = vmax.f32 %v1869, %v1868
    %1871 = vst [vmem:[#allocation2 + $0x1] sm:$0x1] %v1870
    %1872 = vset.pattern.permute.xlu0 2
    %1873 = vperm.xlu0 %1872, %v1838
    %v1874 = vpop.permute.xlu0 %1873
    %v1876 = vsel %vm1842, %v1874, -inf
    %v1877 = vrot.slane %v1876, 4
    %v1878 = vmax.f32 %v1876, %v1877
    %v1879 = vrot.slane %v1878, 2
    %v1880 = vmax.f32 %v1878, %v1879
    %v1881 = vrot.slane %v1880, 1
    %v1882 = vmax.f32 %v1880, %v1881
    %v1883 = vld [vmem:[#allocation2 + $0x2] sm:$0x1]
    %v1884 = vmax.f32 %v1883, %v1882
    %1885 = vst [vmem:[#allocation2 + $0x2] sm:$0x1] %v1884
    %1886 = vset.pattern.permute.xlu0 3
    %1887 = vperm.xlu0 %1886, %v1838
    %v1888 = vpop.permute.xlu0 %1887
    %v1890 = vsel %vm1842, %v1888, -inf
    %v1891 = vrot.slane %v1890, 4
    %v1892 = vmax.f32 %v1890, %v1891
    %v1893 = vrot.slane %v1892, 2
    %v1894 = vmax.f32 %v1892, %v1893
    %v1895 = vrot.slane %v1894, 1
    %v1896 = vmax.f32 %v1894, %v1895
    %v1897 = vld [vmem:[#allocation2 + $0x3] sm:$0x1]
    %v1898 = vmax.f32 %v1897, %v1896
    %1899 = vst [vmem:[#allocation2 + $0x3] sm:$0x1] %v1898
    %1900 = vset.pattern.permute.xlu0 4
    %1901 = vperm.xlu0 %1900, %v1838
    %v1902 = vpop.permute.xlu0 %1901
    %v1904 = vsel %vm1842, %v1902, -inf
    %v1905 = vrot.slane %v1904, 4
    %v1906 = vmax.f32 %v1904, %v1905
    %v1907 = vrot.slane %v1906, 2
    %v1908 = vmax.f32 %v1906, %v1907
    %v1909 = vrot.slane %v1908, 1
    %v1910 = vmax.f32 %v1908, %v1909
    %v1911 = vld [vmem:[#allocation2 + $0x4] sm:$0x1]
    %v1912 = vmax.f32 %v1911, %v1910
    %1913 = vst [vmem:[#allocation2 + $0x4] sm:$0x1] %v1912
    %1914 = vset.pattern.permute.xlu0 5
    %1915 = vperm.xlu0 %1914, %v1838
    %v1916 = vpop.permute.xlu0 %1915
    %v1918 = vsel %vm1842, %v1916, -inf
    %v1919 = vrot.slane %v1918, 4
    %v1920 = vmax.f32 %v1918, %v1919
    %v1921 = vrot.slane %v1920, 2
    %v1922 = vmax.f32 %v1920, %v1921
    %v1923 = vrot.slane %v1922, 1
    %v1924 = vmax.f32 %v1922, %v1923
    %v1925 = vld [vmem:[#allocation2 + $0x5] sm:$0x1]
    %v1926 = vmax.f32 %v1925, %v1924
    %1927 = vst [vmem:[#allocation2 + $0x5] sm:$0x1] %v1926
    %1928 = vset.pattern.permute.xlu0 6
    %1929 = vperm.xlu0 %1928, %v1838
    %v1930 = vpop.permute.xlu0 %1929
    %v1932 = vsel %vm1842, %v1930, -inf
    %v1933 = vrot.slane %v1932, 4
    %v1934 = vmax.f32 %v1932, %v1933
    %v1935 = vrot.slane %v1934, 2
    %v1936 = vmax.f32 %v1934, %v1935
    %v1937 = vrot.slane %v1936, 1
    %v1938 = vmax.f32 %v1936, %v1937
    %v1939 = vld [vmem:[#allocation2 + $0x6] sm:$0x1]
    %v1940 = vmax.f32 %v1939, %v1938
    %1941 = vst [vmem:[#allocation2 + $0x6] sm:$0x1] %v1940
    %1942 = vset.pattern.permute.xlu0 7
    %1943 = vperm.xlu0 %1942, %v1838
    %v1944 = vpop.permute.xlu0 %1943
    %v1946 = vsel %vm1842, %v1944, -inf
    %v1947 = vrot.slane %v1946, 4
    %v1948 = vmax.f32 %v1946, %v1947
    %v1949 = vrot.slane %v1948, 2
    %v1950 = vmax.f32 %v1948, %v1949
    %v1951 = vrot.slane %v1950, 1
    %v1952 = vmax.f32 %v1950, %v1951
    %v1953 = vld [vmem:[#allocation2 + $0x7] sm:$0x1]
    %v1954 = vmax.f32 %v1953, %v1952
    %1955 = vst [vmem:[#allocation2 + $0x7] sm:$0x1] %v1954
    // Predicated region
    $region14: #{tpu_custom_call.1} parent=1 // pred_check
      %p1956 = pneg %p12
    $region15: #{tpu_custom_call.1} parent=1 // pred_check_branch
      %1958 = sbr.rel (%p1956) target = $region17
    $region16: #{tpu_custom_call.1} parent=1 // pred_region
      %v1959 = vld [vmem:[#allocation2] sm:$0xff]
      %1960 = vst [vmem:[#allocation3] sm:$0xff] %v1959
    $region17: #{tpu_custom_call.1} parent=1 // pred_fallthru
      _
    // Predicated region
    $region18: #{tpu_custom_call.1} parent=1 // pred_check
      _
    $region19: #{tpu_custom_call.1} parent=1 // pred_check_branch
      %1962 = sbr.rel (0) target = $region21
    $region20: #{tpu_custom_call.1} parent=1 // pred_region
      %s1964 = ssub.s32 128, 128
      %1965 = vsyncadd [#allocation4], %s1964
      %s1967 = sshll.u32 [#allocation3], 4
      %s1968 = int_to_ptr.vmem [resolvable:$true] %s1967
      %1970 = dma.vmem_to_hbm [thread:$0]  %s1968, 128, %s2, [#allocation4]
    $region21: #{tpu_custom_call.1} parent=1 // pred_fallthru
      _
    // Predicated region
    $region22: #{tpu_custom_call.1} parent=1 // pred_check
      _
    $region23: #{tpu_custom_call.1} parent=1 // pred_check_branch
      %1972 = sbr.rel (0) target = $region25
    $region24: #{tpu_custom_call.1} parent=1 // pred_region
      %1973 = dma.done [#allocation4], 128
    $region25: #{tpu_custom_call.1} parent=1 // pred_fallthru
      _
    %1974 = vsyncpa [#allocation4], 1

</llo_original>
